<compile_context>
chip_gen: v7x
topology: tpu7x:2x2x1
jax: 0.10.0
libtpu: 0.0.40
codegen_flags: <defaults>
</compile_context>

<pallas_src>
import math
import jax
import jax.numpy as jnp
from jax.experimental import pallas as pl
from jax.experimental.pallas import tpu as pltpu

# ---- model hyper-parameters (small shapes consistent with the module) ----
NUM_HIDDENS = 32
N_HEAD = 2
HEAD_DIM = NUM_HIDDENS // N_HEAD
N_LAYER = 2
MAX_LEN = 8          # num_steps == max_len
VOCAB = 64
MAX_SEG = 3
SEG_PAD = 8          # segment table padded to 8 rows (zeros) for clean tiling
DFF = NUM_HIDDENS * 4
PADDING_IDX = 0
LN_EPS = 1e-5        # PyTorch nn.LayerNorm default
NEG_BIAS = -1e9      # additive key-padding bias (replaces masked_fill(-inf))
MLM_PAD = 128        # MLM logits padded to 128 lanes (lane-dense store / MXU N)
NSP_PAD = 128        # NSP logits padded to 128 lanes


def _layer_norm(x, g, b):
    mu = jnp.mean(x, axis=-1, keepdims=True)
    var = jnp.mean((x - mu) ** 2, axis=-1, keepdims=True)
    return (x - mu) * jax.lax.rsqrt(var + LN_EPS) * g + b


# --------------------- fully fused BERT forward kernel ---------------------
def bert_fused_kernel(tok_col_ref, seg_col_ref, tok_row_ref, blkmask_ref,
                      wemb_ref, semb_ref, pos_ref,
                      wqkv_ref, bqkv_ref, wo_ref, bo_ref,
                      g1_ref, be1_ref, w1_ref, b1_ref,
                      w2_ref, b2_ref, g2_ref, be2_ref,
                      wmlm_ref, bmlm_ref, wn0_ref, wn1_ref,
                      sel_ref, bnsp_ref,
                      mlm_ref, nsp_ref):
    BS = tok_col_ref.shape[0]          # flattened batch*seq rows (static)
    H = NUM_HIDDENS
    HD = HEAD_DIM

    # ---- input embedding: gather-free one-hot matmuls (MXU) ----
    tok_col = tok_col_ref[...]                                           # [BS,1] i32
    seg_col = seg_col_ref[...]                                           # [BS,1] i32
    word_oh = (jax.lax.broadcasted_iota(jnp.int32, (BS, VOCAB), 1)
               == tok_col).astype(jnp.float32)                           # [BS,V]
    seg_oh = (jax.lax.broadcasted_iota(jnp.int32, (BS, SEG_PAD), 1)
              == seg_col).astype(jnp.float32)                            # [BS,8]
    x = (jnp.dot(word_oh, wemb_ref[...], preferred_element_type=jnp.float32)
         + jnp.dot(seg_oh, semb_ref[...], preferred_element_type=jnp.float32)
         + pos_ref[...])                                                 # [BS,H]

    # ---- additive attention mask: block-diag over batch + key-padding bias.
    # Built ONCE per forward and reused by every layer / head.
    key_pad = jnp.where(tok_row_ref[...] == PADDING_IDX, NEG_BIAS, 0.0)  # [1,BS]
    mask = blkmask_ref[...] + key_pad                                    # [BS,BS]

    # matches torch: score / (sqrt(dk) + 1e-8)
    scale = 1.0 / (math.sqrt(float(HD)) + 1e-8)
    dn = (((1,), (1,)), ((), ()))      # contract last dims of both (no kh.T)

    # TODO(synk): dropout (o_drop / ffn dropout) treated as identity (inference mode).
    for l in range(N_LAYER):                         # static unroll over layers
        # fused Q|K|V projection for the whole flattened batch: [BS, 3H]
        qkv = jnp.dot(x, wqkv_ref[l], preferred_element_type=jnp.float32) + bqkv_ref[l]
        wo_l = wo_ref[l]                             # [H, H]

        # block-diagonal attention over the flattened batch, per head;
        # head re-combination folded into the output projection as a sum.
        o = None
        for h in range(N_HEAD):                      # static unroll over heads
            qh = qkv[:, h * HD:(h + 1) * HD]
            kh = qkv[:, H + h * HD:H + (h + 1) * HD]
            vh = qkv[:, 2 * H + h * HD:2 * H + (h + 1) * HD]
            s = (jax.lax.dot_general(qh, kh, dn,
                                     preferred_element_type=jnp.float32) * scale
                 + mask)                             # [BS, BS]
            s = s - jnp.max(s, axis=-1, keepdims=True)
            e = jnp.exp(s)
            attn = e * pl.reciprocal(jnp.sum(e, axis=-1, keepdims=True), approx=True)
            ctx_h = jnp.dot(attn, vh, preferred_element_type=jnp.float32)   # [BS,HD]
            o_h = jnp.dot(ctx_h, wo_l[h * HD:(h + 1) * HD, :],
                          preferred_element_type=jnp.float32)               # [BS,H]
            o = o_h if o is None else o + o_h
        o = o + bo_ref[l]

        # residual + LayerNorm
        y = _layer_norm(x + o, g1_ref[l], be1_ref[l])

        # position-wise FFN + residual + LayerNorm
        h1 = jnp.maximum(
            jnp.dot(y, w1_ref[l], preferred_element_type=jnp.float32) + b1_ref[l], 0.0)
        f = jnp.dot(h1, w2_ref[l], preferred_element_type=jnp.float32) + b2_ref[l]
        x = _layer_norm(y + f, g2_ref[l], be2_ref[l])

    # ----- MLM head: [BS,H] x [H,128] (lane-dense store, VOCAB padded to 128) -----
    mlm_ref[...] = (jnp.dot(x, wmlm_ref[...], preferred_element_type=jnp.float32)
                    + bmlm_ref[...])

    # ----- NSP head: z.reshape(B, S*H) @ Wnsp + b, reshape-free -----
    # p[r, o] = sum_h z[r, h] * Wn_o[r, h]   (Wn_o pre-tiled per row in the wrapper)
    p0 = jnp.sum(x * wn0_ref[...], axis=1, keepdims=True)                # [BS,1]
    p1 = jnp.sum(x * wn1_ref[...], axis=1, keepdims=True)                # [BS,1]
    p = jnp.concatenate(
        [p0, p1, jnp.zeros((BS, NSP_PAD - 2), jnp.float32)], axis=1)     # [BS,128]
    # segment-sum over the S rows of each batch element via a [B, B*S] 0/1 matrix
    nsp_ref[...] = (jnp.dot(sel_ref[...], p, preferred_element_type=jnp.float32)
                    + bnsp_ref[...])


# --------------------------- parameter init ---------------------------
def init_params(key):
    ks = iter(jax.random.split(key, 8 + N_LAYER * 16))

    def linear(in_f, out_f):
        bound = 1.0 / math.sqrt(in_f)
        w = jax.random.uniform(next(ks), (in_f, out_f), jnp.float32, -bound, bound)
        b = jax.random.uniform(next(ks), (1, out_f), jnp.float32, -bound, bound)
        return w, b

    params = {
        "word_embed": 0.1 * jax.random.normal(next(ks), (VOCAB, NUM_HIDDENS), jnp.float32),
        "segment_embed": 0.1 * jax.random.normal(next(ks), (MAX_SEG, NUM_HIDDENS), jnp.float32),
        # kaiming_normal_(mode='fan_out', relu): std = sqrt(2 / fan_out) = sqrt(2 / H)
        "position_embed": math.sqrt(2.0 / NUM_HIDDENS)
        * jax.random.normal(next(ks), (1, MAX_LEN, NUM_HIDDENS), jnp.float32),
        "layers": [],
    }
    for _ in range(N_LAYER):
        lp = {}
        lp["wq"], lp["bq"] = linear(NUM_HIDDENS, NUM_HIDDENS)
        lp["wk"], lp["bk"] = linear(NUM_HIDDENS, NUM_HIDDENS)
        lp["wv"], lp["bv"] = linear(NUM_HIDDENS, NUM_HIDDENS)
        lp["wo"], lp["bo"] = linear(NUM_HIDDENS, NUM_HIDDENS)
        lp["ln1_g"] = jnp.ones((1, NUM_HIDDENS), jnp.float32)
        lp["ln1_b"] = jnp.zeros((1, NUM_HIDDENS), jnp.float32)
        lp["w1"], lp["b1"] = linear(NUM_HIDDENS, DFF)
        lp["w2"], lp["b2"] = linear(DFF, NUM_HIDDENS)
        lp["ln2_g"] = jnp.ones((1, NUM_HIDDENS), jnp.float32)
        lp["ln2_b"] = jnp.zeros((1, NUM_HIDDENS), jnp.float32)
        params["layers"].append(lp)
    params["mlm_w"], params["mlm_b"] = linear(NUM_HIDDENS, VOCAB)
    params["nsp_w"], params["nsp_b"] = linear(NUM_HIDDENS * MAX_LEN, 2)
    return params


def pack_params(params, batch_size):
    """One-time rearrangement of parameters into kernel-friendly stacked slabs."""
    layers = params["layers"]
    BS = batch_size * MAX_LEN

    def stack(fn):
        return jnp.stack([fn(lp) for lp in layers], axis=0)

    packed = {
        "word_embed": params["word_embed"],                              # [V, H]
        # segment table padded to 8 rows (ids are < 3, padded rows never hit)
        "segment_embed_pad": jnp.zeros((SEG_PAD, NUM_HIDDENS), jnp.float32)
        .at[:MAX_SEG].set(params["segment_embed"]),
        # position embedding pre-flattened/tiled to the [B*S, H] row layout
        "pos_flat": jnp.tile(params["position_embed"].reshape(MAX_LEN, NUM_HIDDENS),
                             (batch_size, 1)),                           # [B*S, H]
        # merged QKV projection: [L, H, 3H] / [L, 1, 3H]
        "wqkv": stack(lambda lp: jnp.concatenate([lp["wq"], lp["wk"], lp["wv"]], axis=1)),
        "bqkv": stack(lambda lp: jnp.concatenate([lp["bq"], lp["bk"], lp["bv"]], axis=1)),
        "wo": stack(lambda lp: lp["wo"]),  "bo": stack(lambda lp: lp["bo"]),
        "g1": stack(lambda lp: lp["ln1_g"]), "be1": stack(lambda lp: lp["ln1_b"]),
        "w1": stack(lambda lp: lp["w1"]),  "b1": stack(lambda lp: lp["b1"]),
        "w2": stack(lambda lp: lp["w2"]),  "b2": stack(lambda lp: lp["b2"]),
        "g2": stack(lambda lp: lp["ln2_g"]), "be2": stack(lambda lp: lp["ln2_b"]),
    }
    # block-diagonal-over-batch additive mask (0 inside a sequence, -1e9 across)
    same = jnp.kron(jnp.eye(batch_size, dtype=jnp.float32),
                    jnp.ones((MAX_LEN, MAX_LEN), jnp.float32))           # [B*S, B*S]
    packed["block_mask"] = jnp.where(same > 0.5, 0.0, NEG_BIAS)
    # MLM head padded to 128 lanes
    packed["wmlm_pad"] = (jnp.zeros((NUM_HIDDENS, MLM_PAD), jnp.float32)
                          .at[:, :VOCAB].set(params["mlm_w"]))
    packed["bmlm_pad"] = (jnp.zeros((1, MLM_PAD), jnp.float32)
                          .at[:, :VOCAB].set(params["mlm_b"]))
    # NSP weight [S*H, 2]: pre-arrange so the kernel needs no reshape.
    w3 = params["nsp_w"].reshape(MAX_LEN, NUM_HIDDENS, 2)                # [S, H, 2]
    packed["wn0"] = jnp.tile(w3[:, :, 0], (batch_size, 1))               # [B*S, H]
    packed["wn1"] = jnp.tile(w3[:, :, 1], (batch_size, 1))               # [B*S, H]
    # segment-sum selector: sel[b, b*S + s] = 1
    packed["sel"] = jnp.kron(jnp.eye(batch_size, dtype=jnp.float32),
                             jnp.ones((1, MAX_LEN), jnp.float32))        # [B, B*S]
    packed["bnsp_pad"] = (jnp.zeros((1, NSP_PAD), jnp.float32)
                          .at[:, :2].set(params["nsp_b"]))
    del BS
    return packed


# ----------------------------- forward pass -----------------------------
@jax.jit
def bert_forward(packed, seqs, segs):
    bsz, seq_len = seqs.shape
    BS = bsz * seq_len
    tok_col = seqs.reshape(BS, 1).astype(jnp.int32)       # per-row token ids
    seg_col = segs.reshape(BS, 1).astype(jnp.int32)       # per-row segment ids
    tok_row = seqs.reshape(1, BS).astype(jnp.int32)       # key-axis token ids

    operands = (
        tok_col, seg_col, tok_row, packed["block_mask"],
        packed["word_embed"], packed["segment_embed_pad"], packed["pos_flat"],
        packed["wqkv"], packed["bqkv"], packed["wo"], packed["bo"],
        packed["g1"], packed["be1"], packed["w1"], packed["b1"],
        packed["w2"], packed["b2"], packed["g2"], packed["be2"],
        packed["wmlm_pad"], packed["bmlm_pad"], packed["wn0"], packed["wn1"],
        packed["sel"], packed["bnsp_pad"],
    )

    vmem_spec = pl.BlockSpec(memory_space=pltpu.MemorySpace.VMEM)
    mlm_pad, nsp_pad = pl.pallas_call(
        bert_fused_kernel,
        out_shape=(jax.ShapeDtypeStruct((BS, MLM_PAD), jnp.float32),
                   jax.ShapeDtypeStruct((bsz, NSP_PAD), jnp.float32)),
        in_specs=[vmem_spec] * len(operands),
        out_specs=(vmem_spec, vmem_spec),
        # rough advisory cost for XLA scheduling around the single fused call
        cost_estimate=pl.CostEstimate(flops=1_060_000, transcendentals=1_200,
                                      bytes_accessed=260_000),
    )(*operands)

    mlm_logits = mlm_pad[:, :VOCAB].reshape(bsz, seq_len, VOCAB)
    nsp_logits = nsp_pad[:, :2]
    return mlm_logits, nsp_logits


# ------------------- plain-JAX reference (verification) -------------------
def bert_forward_ref(params, seqs, segs):
    B, S = seqs.shape
    x = (params["word_embed"][seqs] + params["segment_embed"][segs]
         + params["position_embed"])                                    # [B,S,H]
    key_bias = jnp.where(seqs == PADDING_IDX, NEG_BIAS, 0.0)[:, None, None, :]
    for lp in params["layers"]:
        q = x @ lp["wq"] + lp["bq"]
        k = x @ lp["wk"] + lp["bk"]
        v = x @ lp["wv"] + lp["bv"]

        def split(t):
            return t.reshape(B, S, N_HEAD, HEAD_DIM).transpose(0, 2, 1, 3)

        qh, kh, vh = split(q), split(k), split(v)
        score = (jnp.einsum("bhqd,bhkd->bhqk", qh, kh)
                 / (math.sqrt(float(HEAD_DIM)) + 1e-8) + key_bias)
        attn = jax.nn.softmax(score, axis=-1)
        ctx = jnp.einsum("bhqk,bhkd->bhqd", attn, vh)
        ctx = ctx.transpose(0, 2, 1, 3).reshape(B, S, NUM_HIDDENS)
        x = _layer_norm(x + ctx @ lp["wo"] + lp["bo"], lp["ln1_g"], lp["ln1_b"])
        h1 = jax.nn.relu(x @ lp["w1"] + lp["b1"])
        x = _layer_norm(x + h1 @ lp["w2"] + lp["b2"], lp["ln2_g"], lp["ln2_b"])
    mlm = x @ params["mlm_w"] + params["mlm_b"]
    nsp = x.reshape(B, -1) @ params["nsp_w"] + params["nsp_b"]
    return mlm, nsp


if __name__ == "__main__":
    key = jax.random.PRNGKey(0)
    pkey, skey, gkey = jax.random.split(key, 3)
    params = init_params(pkey)

    B = 2
    seqs = jax.random.randint(skey, (B, MAX_LEN), 1, VOCAB, dtype=jnp.int32)
    seqs = seqs.at[1, -2:].set(PADDING_IDX)      # trailing <PAD> tokens on sequence 1
    segs = jax.random.randint(gkey, (B, MAX_LEN), 0, MAX_SEG, dtype=jnp.int32)

    packed = pack_params(params, B)              # one-time weight packing
    mlm_logits, nsp_logits = bert_forward(packed, seqs, segs)
    jax.block_until_ready((mlm_logits, nsp_logits))

    assert mlm_logits.shape == (B, MAX_LEN, VOCAB)
    assert nsp_logits.shape == (B, 2)
    assert bool(jnp.all(jnp.isfinite(mlm_logits))) and bool(jnp.all(jnp.isfinite(nsp_logits)))

    # verify against a plain-JAX reference (exact softmax divide, f32 matmuls);
    # loose tolerance covers the approx-reciprocal softmax inside the kernel.
    with jax.default_matmul_precision("highest"):
        mlm_want, nsp_want = bert_forward_ref(params, seqs, segs)
    assert bool(jnp.allclose(mlm_logits, mlm_want, atol=5e-2, rtol=5e-2))
    assert bool(jnp.allclose(nsp_logits, nsp_want, atol=5e-2, rtol=5e-2))

    print("KERNEL_OK")
</pallas_src>

<mosaic_0001>
module attributes {stable_mosaic.version = 11 : i64} {
  func.func @bert_fused_kernel(%arg0: memref<16x1xi32, #tpu.memory_space<vmem>>, %arg1: memref<16x1xi32, #tpu.memory_space<vmem>>, %arg2: memref<1x16xi32, #tpu.memory_space<vmem>>, %arg3: memref<16x16xf32, #tpu.memory_space<vmem>>, %arg4: memref<64x32xf32, #tpu.memory_space<vmem>>, %arg5: memref<8x32xf32, #tpu.memory_space<vmem>>, %arg6: memref<16x32xf32, #tpu.memory_space<vmem>>, %arg7: memref<2x32x96xf32, #tpu.memory_space<vmem>>, %arg8: memref<2x1x96xf32, #tpu.memory_space<vmem>>, %arg9: memref<2x32x32xf32, #tpu.memory_space<vmem>>, %arg10: memref<2x1x32xf32, #tpu.memory_space<vmem>>, %arg11: memref<2x1x32xf32, #tpu.memory_space<vmem>>, %arg12: memref<2x1x32xf32, #tpu.memory_space<vmem>>, %arg13: memref<2x32x128xf32, #tpu.memory_space<vmem>>, %arg14: memref<2x1x128xf32, #tpu.memory_space<vmem>>, %arg15: memref<2x128x32xf32, #tpu.memory_space<vmem>>, %arg16: memref<2x1x32xf32, #tpu.memory_space<vmem>>, %arg17: memref<2x1x32xf32, #tpu.memory_space<vmem>>, %arg18: memref<2x1x32xf32, #tpu.memory_space<vmem>>, %arg19: memref<32x128xf32, #tpu.memory_space<vmem>>, %arg20: memref<1x128xf32, #tpu.memory_space<vmem>>, %arg21: memref<16x32xf32, #tpu.memory_space<vmem>>, %arg22: memref<16x32xf32, #tpu.memory_space<vmem>>, %arg23: memref<2x16xf32, #tpu.memory_space<vmem>>, %arg24: memref<1x128xf32, #tpu.memory_space<vmem>>, %arg25: memref<16x128xf32, #tpu.memory_space<vmem>>, %arg26: memref<2x128xf32, #tpu.memory_space<vmem>>) attributes {dimension_semantics = [], scalar_prefetch = 0 : i64, scratch_operands = 0 : i64, tpu.core_type = #tpu.core_type<tc>} {
    %c0 = arith.constant 0 : index
    %c0_0 = arith.constant 0 : index
    %0 = vector.load %arg0[%c0, %c0_0] : memref<16x1xi32, #tpu.memory_space<vmem>>, vector<16x1xi32>
    %c0_1 = arith.constant 0 : index
    %c0_2 = arith.constant 0 : index
    %1 = vector.load %arg1[%c0_1, %c0_2] : memref<16x1xi32, #tpu.memory_space<vmem>>, vector<16x1xi32>
    %2 = tpu.iota {dimensions = array<i32: 1>} : vector<16x64xi32>
    %3 = vector.broadcast %0 : vector<16x1xi32> to vector<16x64xi32>
    %4 = arith.cmpi eq, %2, %3 : vector<16x64xi32>
    %5 = arith.extui %4 : vector<16x64xi1> to vector<16x64xi32>
    %6 = arith.sitofp %5 : vector<16x64xi32> to vector<16x64xf32>
    %7 = tpu.iota {dimensions = array<i32: 1>} : vector<16x8xi32>
    %8 = vector.broadcast %1 : vector<16x1xi32> to vector<16x8xi32>
    %9 = arith.cmpi eq, %7, %8 : vector<16x8xi32>
    %10 = arith.extui %9 : vector<16x8xi1> to vector<16x8xi32>
    %11 = arith.sitofp %10 : vector<16x8xi32> to vector<16x8xf32>
    %c0_3 = arith.constant 0 : index
    %c0_4 = arith.constant 0 : index
    %12 = vector.load %arg4[%c0_3, %c0_4] : memref<64x32xf32, #tpu.memory_space<vmem>>, vector<64x32xf32>
    %cst = arith.constant dense<0.000000e+00> : vector<16x32xf32>
    %13 = tpu.matmul %6, %12, %cst {dimension_numbers = #tpu.dot_dimension_numbers<[1], [0], [0], [1], [0, 0, 1, 1], [], []>} : vector<16x64xf32>, vector<64x32xf32>, vector<16x32xf32> -> vector<16x32xf32>
    %c0_5 = arith.constant 0 : index
    %c0_6 = arith.constant 0 : index
    %14 = vector.load %arg5[%c0_5, %c0_6] : memref<8x32xf32, #tpu.memory_space<vmem>>, vector<8x32xf32>
    %cst_7 = arith.constant dense<0.000000e+00> : vector<16x32xf32>
    %15 = tpu.matmul %11, %14, %cst_7 {dimension_numbers = #tpu.dot_dimension_numbers<[1], [0], [0], [1], [0, 0, 1, 1], [], []>} : vector<16x8xf32>, vector<8x32xf32>, vector<16x32xf32> -> vector<16x32xf32>
    %16 = arith.addf %13, %15 : vector<16x32xf32>
    %c0_8 = arith.constant 0 : index
    %c0_9 = arith.constant 0 : index
    %17 = vector.load %arg6[%c0_8, %c0_9] : memref<16x32xf32, #tpu.memory_space<vmem>>, vector<16x32xf32>
    %18 = arith.addf %16, %17 : vector<16x32xf32>
    %c0_10 = arith.constant 0 : index
    %c0_11 = arith.constant 0 : index
    %19 = vector.load %arg2[%c0_10, %c0_11] : memref<1x16xi32, #tpu.memory_space<vmem>>, vector<1x16xi32>
    %c0_i32 = arith.constant 0 : i32
    %20 = vector.broadcast %c0_i32 : i32 to vector<1x16xi32>
    %21 = arith.cmpi eq, %19, %20 : vector<1x16xi32>
    %cst_12 = arith.constant -1.000000e+09 : f32
    %cst_13 = arith.constant 0.000000e+00 : f32
    %22 = vector.broadcast %cst_12 : f32 to vector<1x16xf32>
    %23 = vector.broadcast %cst_13 : f32 to vector<1x16xf32>
    %24 = arith.select %21, %22, %23 : vector<1x16xi1>, vector<1x16xf32>
    %c0_14 = arith.constant 0 : index
    %c0_15 = arith.constant 0 : index
    %25 = vector.load %arg3[%c0_14, %c0_15] : memref<16x16xf32, #tpu.memory_space<vmem>>, vector<16x16xf32>
    %26 = vector.shape_cast %25 : vector<16x16xf32> to vector<16x16xf32>
    %27 = vector.broadcast %24 : vector<1x16xf32> to vector<16x16xf32>
    %28 = arith.addf %26, %27 : vector<16x16xf32>
    %c0_16 = arith.constant 0 : index
    %c0_17 = arith.constant 0 : index
    %c0_18 = arith.constant 0 : index
    %29 = vector.load %arg7[%c0_16, %c0_17, %c0_18] : memref<2x32x96xf32, #tpu.memory_space<vmem>>, vector<1x32x96xf32>
    %30 = vector.shape_cast %29 : vector<1x32x96xf32> to vector<32x96xf32>
    %cst_19 = arith.constant dense<0.000000e+00> : vector<16x96xf32>
    %31 = tpu.matmul %18, %30, %cst_19 {dimension_numbers = #tpu.dot_dimension_numbers<[1], [0], [0], [1], [0, 0, 1, 1], [], []>} : vector<16x32xf32>, vector<32x96xf32>, vector<16x96xf32> -> vector<16x96xf32>
    %c0_20 = arith.constant 0 : index
    %c0_21 = arith.constant 0 : index
    %c0_22 = arith.constant 0 : index
    %32 = vector.load %arg8[%c0_20, %c0_21, %c0_22] : memref<2x1x96xf32, #tpu.memory_space<vmem>>, vector<1x1x96xf32>
    %33 = vector.shape_cast %32 : vector<1x1x96xf32> to vector<1x96xf32>
    %34 = vector.broadcast %33 : vector<1x96xf32> to vector<16x96xf32>
    %35 = arith.addf %31, %34 : vector<16x96xf32>
    %c0_23 = arith.constant 0 : index
    %c0_24 = arith.constant 0 : index
    %c0_25 = arith.constant 0 : index
    %36 = vector.load %arg9[%c0_23, %c0_24, %c0_25] : memref<2x32x32xf32, #tpu.memory_space<vmem>>, vector<1x32x32xf32>
    %37 = vector.shape_cast %36 : vector<1x32x32xf32> to vector<32x32xf32>
    %38 = vector.extract_strided_slice %35 {offsets = [0, 0], sizes = [16, 16], strides = [1, 1]} : vector<16x96xf32> to vector<16x16xf32>
    %39 = vector.extract_strided_slice %35 {offsets = [0, 32], sizes = [16, 16], strides = [1, 1]} : vector<16x96xf32> to vector<16x16xf32>
    %40 = vector.extract_strided_slice %35 {offsets = [0, 64], sizes = [16, 16], strides = [1, 1]} : vector<16x96xf32> to vector<16x16xf32>
    %cst_26 = arith.constant dense<0.000000e+00> : vector<16x16xf32>
    %41 = tpu.matmul %38, %39, %cst_26 {dimension_numbers = #tpu.dot_dimension_numbers<[1], [1], [0], [0], [0, 0, 1, 0], [], []>} : vector<16x16xf32>, vector<16x16xf32>, vector<16x16xf32> -> vector<16x16xf32>
    %cst_27 = arith.constant 2.500000e-01 : f32
    %42 = vector.broadcast %cst_27 : f32 to vector<16x16xf32>
    %43 = arith.mulf %41, %42 : vector<16x16xf32>
    %44 = arith.addf %43, %28 : vector<16x16xf32>
    %cst_28 = arith.constant dense<0xFF800000> : vector<16xf32>
    %45 = vector.multi_reduction <maximumf>, %44, %cst_28 [1] : vector<16x16xf32> to vector<16xf32>
    %46 = vector.shape_cast %45 : vector<16xf32> to vector<16x1xf32>
    %47 = vector.broadcast %46 : vector<16x1xf32> to vector<16x16xf32>
    %48 = arith.subf %44, %47 : vector<16x16xf32>
    %49 = math.exp %48 : vector<16x16xf32>
    %cst_29 = arith.constant dense<0.000000e+00> : vector<16xf32>
    %50 = vector.multi_reduction <add>, %49, %cst_29 [1] : vector<16x16xf32> to vector<16xf32>
    %51 = vector.shape_cast %50 : vector<16xf32> to vector<16x1xf32>
    %52 = tpu.reciprocal %51 {approx = true} : vector<16x1xf32> -> vector<16x1xf32>
    %53 = vector.broadcast %52 : vector<16x1xf32> to vector<16x16xf32>
    %54 = arith.mulf %49, %53 : vector<16x16xf32>
    %cst_30 = arith.constant dense<0.000000e+00> : vector<16x16xf32>
    %55 = tpu.matmul %54, %40, %cst_30 {dimension_numbers = #tpu.dot_dimension_numbers<[1], [0], [0], [1], [0, 0, 1, 1], [], []>} : vector<16x16xf32>, vector<16x16xf32>, vector<16x16xf32> -> vector<16x16xf32>
    %56 = vector.extract_strided_slice %37 {offsets = [0, 0], sizes = [16, 32], strides = [1, 1]} : vector<32x32xf32> to vector<16x32xf32>
    %cst_31 = arith.constant dense<0.000000e+00> : vector<16x32xf32>
    %57 = tpu.matmul %55, %56, %cst_31 {dimension_numbers = #tpu.dot_dimension_numbers<[1], [0], [0], [1], [0, 0, 1, 1], [], []>} : vector<16x16xf32>, vector<16x32xf32>, vector<16x32xf32> -> vector<16x32xf32>
    %58 = vector.extract_strided_slice %35 {offsets = [0, 16], sizes = [16, 16], strides = [1, 1]} : vector<16x96xf32> to vector<16x16xf32>
    %59 = vector.extract_strided_slice %35 {offsets = [0, 48], sizes = [16, 16], strides = [1, 1]} : vector<16x96xf32> to vector<16x16xf32>
    %60 = vector.extract_strided_slice %35 {offsets = [0, 80], sizes = [16, 16], strides = [1, 1]} : vector<16x96xf32> to vector<16x16xf32>
    %cst_32 = arith.constant dense<0.000000e+00> : vector<16x16xf32>
    %61 = tpu.matmul %58, %59, %cst_32 {dimension_numbers = #tpu.dot_dimension_numbers<[1], [1], [0], [0], [0, 0, 1, 0], [], []>} : vector<16x16xf32>, vector<16x16xf32>, vector<16x16xf32> -> vector<16x16xf32>
    %cst_33 = arith.constant 2.500000e-01 : f32
    %62 = vector.broadcast %cst_33 : f32 to vector<16x16xf32>
    %63 = arith.mulf %61, %62 : vector<16x16xf32>
    %64 = arith.addf %63, %28 : vector<16x16xf32>
    %cst_34 = arith.constant dense<0xFF800000> : vector<16xf32>
    %65 = vector.multi_reduction <maximumf>, %64, %cst_34 [1] : vector<16x16xf32> to vector<16xf32>
    %66 = vector.shape_cast %65 : vector<16xf32> to vector<16x1xf32>
    %67 = vector.broadcast %66 : vector<16x1xf32> to vector<16x16xf32>
    %68 = arith.subf %64, %67 : vector<16x16xf32>
    %69 = math.exp %68 : vector<16x16xf32>
    %cst_35 = arith.constant dense<0.000000e+00> : vector<16xf32>
    %70 = vector.multi_reduction <add>, %69, %cst_35 [1] : vector<16x16xf32> to vector<16xf32>
    %71 = vector.shape_cast %70 : vector<16xf32> to vector<16x1xf32>
    %72 = tpu.reciprocal %71 {approx = true} : vector<16x1xf32> -> vector<16x1xf32>
    %73 = vector.broadcast %72 : vector<16x1xf32> to vector<16x16xf32>
    %74 = arith.mulf %69, %73 : vector<16x16xf32>
    %cst_36 = arith.constant dense<0.000000e+00> : vector<16x16xf32>
    %75 = tpu.matmul %74, %60, %cst_36 {dimension_numbers = #tpu.dot_dimension_numbers<[1], [0], [0], [1], [0, 0, 1, 1], [], []>} : vector<16x16xf32>, vector<16x16xf32>, vector<16x16xf32> -> vector<16x16xf32>
    %76 = vector.extract_strided_slice %37 {offsets = [16, 0], sizes = [16, 32], strides = [1, 1]} : vector<32x32xf32> to vector<16x32xf32>
    %cst_37 = arith.constant dense<0.000000e+00> : vector<16x32xf32>
    %77 = tpu.matmul %75, %76, %cst_37 {dimension_numbers = #tpu.dot_dimension_numbers<[1], [0], [0], [1], [0, 0, 1, 1], [], []>} : vector<16x16xf32>, vector<16x32xf32>, vector<16x32xf32> -> vector<16x32xf32>
    %78 = arith.addf %57, %77 : vector<16x32xf32>
    %c0_38 = arith.constant 0 : index
    %c0_39 = arith.constant 0 : index
    %c0_40 = arith.constant 0 : index
    %79 = vector.load %arg10[%c0_38, %c0_39, %c0_40] : memref<2x1x32xf32, #tpu.memory_space<vmem>>, vector<1x1x32xf32>
    %80 = vector.shape_cast %79 : vector<1x1x32xf32> to vector<1x32xf32>
    %81 = vector.broadcast %80 : vector<1x32xf32> to vector<16x32xf32>
    %82 = arith.addf %78, %81 : vector<16x32xf32>
    %83 = arith.addf %18, %82 : vector<16x32xf32>
    %c0_41 = arith.constant 0 : index
    %c0_42 = arith.constant 0 : index
    %c0_43 = arith.constant 0 : index
    %84 = vector.load %arg11[%c0_41, %c0_42, %c0_43] : memref<2x1x32xf32, #tpu.memory_space<vmem>>, vector<1x1x32xf32>
    %85 = vector.shape_cast %84 : vector<1x1x32xf32> to vector<1x32xf32>
    %c0_44 = arith.constant 0 : index
    %c0_45 = arith.constant 0 : index
    %c0_46 = arith.constant 0 : index
    %86 = vector.load %arg12[%c0_44, %c0_45, %c0_46] : memref<2x1x32xf32, #tpu.memory_space<vmem>>, vector<1x1x32xf32>
    %87 = vector.shape_cast %86 : vector<1x1x32xf32> to vector<1x32xf32>
    %cst_47 = arith.constant dense<0.000000e+00> : vector<16xf32>
    %88 = vector.multi_reduction <add>, %83, %cst_47 [1] : vector<16x32xf32> to vector<16xf32>
    %89 = vector.shape_cast %88 : vector<16xf32> to vector<16x1xf32>
    %cst_48 = arith.constant 3.200000e+01 : f32
    %90 = vector.broadcast %cst_48 : f32 to vector<16x1xf32>
    %91 = arith.divf %89, %90 : vector<16x1xf32>
    %92 = vector.broadcast %91 : vector<16x1xf32> to vector<16x32xf32>
    %93 = arith.subf %83, %92 : vector<16x32xf32>
    %94 = arith.mulf %93, %93 : vector<16x32xf32>
    %cst_49 = arith.constant dense<0.000000e+00> : vector<16xf32>
    %95 = vector.multi_reduction <add>, %94, %cst_49 [1] : vector<16x32xf32> to vector<16xf32>
    %96 = vector.shape_cast %95 : vector<16xf32> to vector<16x1xf32>
    %cst_50 = arith.constant 3.200000e+01 : f32
    %97 = vector.broadcast %cst_50 : f32 to vector<16x1xf32>
    %98 = arith.divf %96, %97 : vector<16x1xf32>
    %99 = vector.broadcast %91 : vector<16x1xf32> to vector<16x32xf32>
    %100 = arith.subf %83, %99 : vector<16x32xf32>
    %cst_51 = arith.constant 9.99999974E-6 : f32
    %101 = vector.broadcast %cst_51 : f32 to vector<16x1xf32>
    %102 = arith.addf %98, %101 : vector<16x1xf32>
    %103 = math.rsqrt %102 : vector<16x1xf32>
    %104 = vector.broadcast %103 : vector<16x1xf32> to vector<16x32xf32>
    %105 = arith.mulf %100, %104 : vector<16x32xf32>
    %106 = vector.broadcast %85 : vector<1x32xf32> to vector<16x32xf32>
    %107 = arith.mulf %105, %106 : vector<16x32xf32>
    %108 = vector.broadcast %87 : vector<1x32xf32> to vector<16x32xf32>
    %109 = arith.addf %107, %108 : vector<16x32xf32>
    %c0_52 = arith.constant 0 : index
    %c0_53 = arith.constant 0 : index
    %c0_54 = arith.constant 0 : index
    %110 = vector.load %arg13[%c0_52, %c0_53, %c0_54] : memref<2x32x128xf32, #tpu.memory_space<vmem>>, vector<1x32x128xf32>
    %111 = vector.shape_cast %110 : vector<1x32x128xf32> to vector<32x128xf32>
    %cst_55 = arith.constant dense<0.000000e+00> : vector<16x128xf32>
    %112 = tpu.matmul %109, %111, %cst_55 {dimension_numbers = #tpu.dot_dimension_numbers<[1], [0], [0], [1], [0, 0, 1, 1], [], []>} : vector<16x32xf32>, vector<32x128xf32>, vector<16x128xf32> -> vector<16x128xf32>
    %c0_56 = arith.constant 0 : index
    %c0_57 = arith.constant 0 : index
    %c0_58 = arith.constant 0 : index
    %113 = vector.load %arg14[%c0_56, %c0_57, %c0_58] : memref<2x1x128xf32, #tpu.memory_space<vmem>>, vector<1x1x128xf32>
    %114 = vector.shape_cast %113 : vector<1x1x128xf32> to vector<1x128xf32>
    %115 = vector.broadcast %114 : vector<1x128xf32> to vector<16x128xf32>
    %116 = arith.addf %112, %115 : vector<16x128xf32>
    %cst_59 = arith.constant 0.000000e+00 : f32
    %117 = vector.broadcast %cst_59 : f32 to vector<16x128xf32>
    %118 = arith.maximumf %116, %117 : vector<16x128xf32>
    %c0_60 = arith.constant 0 : index
    %c0_61 = arith.constant 0 : index
    %c0_62 = arith.constant 0 : index
    %119 = vector.load %arg15[%c0_60, %c0_61, %c0_62] : memref<2x128x32xf32, #tpu.memory_space<vmem>>, vector<1x128x32xf32>
    %120 = vector.shape_cast %119 : vector<1x128x32xf32> to vector<128x32xf32>
    %cst_63 = arith.constant dense<0.000000e+00> : vector<16x32xf32>
    %121 = tpu.matmul %118, %120, %cst_63 {dimension_numbers = #tpu.dot_dimension_numbers<[1], [0], [0], [1], [0, 0, 1, 1], [], []>} : vector<16x128xf32>, vector<128x32xf32>, vector<16x32xf32> -> vector<16x32xf32>
    %c0_64 = arith.constant 0 : index
    %c0_65 = arith.constant 0 : index
    %c0_66 = arith.constant 0 : index
    %122 = vector.load %arg16[%c0_64, %c0_65, %c0_66] : memref<2x1x32xf32, #tpu.memory_space<vmem>>, vector<1x1x32xf32>
    %123 = vector.shape_cast %122 : vector<1x1x32xf32> to vector<1x32xf32>
    %124 = vector.broadcast %123 : vector<1x32xf32> to vector<16x32xf32>
    %125 = arith.addf %121, %124 : vector<16x32xf32>
    %126 = arith.addf %109, %125 : vector<16x32xf32>
    %c0_67 = arith.constant 0 : index
    %c0_68 = arith.constant 0 : index
    %c0_69 = arith.constant 0 : index
    %127 = vector.load %arg17[%c0_67, %c0_68, %c0_69] : memref<2x1x32xf32, #tpu.memory_space<vmem>>, vector<1x1x32xf32>
    %128 = vector.shape_cast %127 : vector<1x1x32xf32> to vector<1x32xf32>
    %c0_70 = arith.constant 0 : index
    %c0_71 = arith.constant 0 : index
    %c0_72 = arith.constant 0 : index
    %129 = vector.load %arg18[%c0_70, %c0_71, %c0_72] : memref<2x1x32xf32, #tpu.memory_space<vmem>>, vector<1x1x32xf32>
    %130 = vector.shape_cast %129 : vector<1x1x32xf32> to vector<1x32xf32>
    %cst_73 = arith.constant dense<0.000000e+00> : vector<16xf32>
    %131 = vector.multi_reduction <add>, %126, %cst_73 [1] : vector<16x32xf32> to vector<16xf32>
    %132 = vector.shape_cast %131 : vector<16xf32> to vector<16x1xf32>
    %cst_74 = arith.constant 3.200000e+01 : f32
    %133 = vector.broadcast %cst_74 : f32 to vector<16x1xf32>
    %134 = arith.divf %132, %133 : vector<16x1xf32>
    %135 = vector.broadcast %134 : vector<16x1xf32> to vector<16x32xf32>
    %136 = arith.subf %126, %135 : vector<16x32xf32>
    %137 = arith.mulf %136, %136 : vector<16x32xf32>
    %cst_75 = arith.constant dense<0.000000e+00> : vector<16xf32>
    %138 = vector.multi_reduction <add>, %137, %cst_75 [1] : vector<16x32xf32> to vector<16xf32>
    %139 = vector.shape_cast %138 : vector<16xf32> to vector<16x1xf32>
    %cst_76 = arith.constant 3.200000e+01 : f32
    %140 = vector.broadcast %cst_76 : f32 to vector<16x1xf32>
    %141 = arith.divf %139, %140 : vector<16x1xf32>
    %142 = vector.broadcast %134 : vector<16x1xf32> to vector<16x32xf32>
    %143 = arith.subf %126, %142 : vector<16x32xf32>
    %cst_77 = arith.constant 9.99999974E-6 : f32
    %144 = vector.broadcast %cst_77 : f32 to vector<16x1xf32>
    %145 = arith.addf %141, %144 : vector<16x1xf32>
    %146 = math.rsqrt %145 : vector<16x1xf32>
    %147 = vector.broadcast %146 : vector<16x1xf32> to vector<16x32xf32>
    %148 = arith.mulf %143, %147 : vector<16x32xf32>
    %149 = vector.broadcast %128 : vector<1x32xf32> to vector<16x32xf32>
    %150 = arith.mulf %148, %149 : vector<16x32xf32>
    %151 = vector.broadcast %130 : vector<1x32xf32> to vector<16x32xf32>
    %152 = arith.addf %150, %151 : vector<16x32xf32>
    %c1 = arith.constant 1 : index
    %c0_78 = arith.constant 0 : index
    %c0_79 = arith.constant 0 : index
    %153 = vector.load %arg7[%c1, %c0_78, %c0_79] : memref<2x32x96xf32, #tpu.memory_space<vmem>>, vector<1x32x96xf32>
    %154 = vector.shape_cast %153 : vector<1x32x96xf32> to vector<32x96xf32>
    %cst_80 = arith.constant dense<0.000000e+00> : vector<16x96xf32>
    %155 = tpu.matmul %152, %154, %cst_80 {dimension_numbers = #tpu.dot_dimension_numbers<[1], [0], [0], [1], [0, 0, 1, 1], [], []>} : vector<16x32xf32>, vector<32x96xf32>, vector<16x96xf32> -> vector<16x96xf32>
    %c1_81 = arith.constant 1 : index
    %c0_82 = arith.constant 0 : index
    %c0_83 = arith.constant 0 : index
    %156 = vector.load %arg8[%c1_81, %c0_82, %c0_83] : memref<2x1x96xf32, #tpu.memory_space<vmem>>, vector<1x1x96xf32>
    %157 = vector.shape_cast %156 : vector<1x1x96xf32> to vector<1x96xf32>
    %158 = vector.broadcast %157 : vector<1x96xf32> to vector<16x96xf32>
    %159 = arith.addf %155, %158 : vector<16x96xf32>
    %c1_84 = arith.constant 1 : index
    %c0_85 = arith.constant 0 : index
    %c0_86 = arith.constant 0 : index
    %160 = vector.load %arg9[%c1_84, %c0_85, %c0_86] : memref<2x32x32xf32, #tpu.memory_space<vmem>>, vector<1x32x32xf32>
    %161 = vector.shape_cast %160 : vector<1x32x32xf32> to vector<32x32xf32>
    %162 = vector.extract_strided_slice %159 {offsets = [0, 0], sizes = [16, 16], strides = [1, 1]} : vector<16x96xf32> to vector<16x16xf32>
    %163 = vector.extract_strided_slice %159 {offsets = [0, 32], sizes = [16, 16], strides = [1, 1]} : vector<16x96xf32> to vector<16x16xf32>
    %164 = vector.extract_strided_slice %159 {offsets = [0, 64], sizes = [16, 16], strides = [1, 1]} : vector<16x96xf32> to vector<16x16xf32>
    %cst_87 = arith.constant dense<0.000000e+00> : vector<16x16xf32>
    %165 = tpu.matmul %162, %163, %cst_87 {dimension_numbers = #tpu.dot_dimension_numbers<[1], [1], [0], [0], [0, 0, 1, 0], [], []>} : vector<16x16xf32>, vector<16x16xf32>, vector<16x16xf32> -> vector<16x16xf32>
    %cst_88 = arith.constant 2.500000e-01 : f32
    %166 = vector.broadcast %cst_88 : f32 to vector<16x16xf32>
    %167 = arith.mulf %165, %166 : vector<16x16xf32>
    %168 = arith.addf %167, %28 : vector<16x16xf32>
    %cst_89 = arith.constant dense<0xFF800000> : vector<16xf32>
    %169 = vector.multi_reduction <maximumf>, %168, %cst_89 [1] : vector<16x16xf32> to vector<16xf32>
    %170 = vector.shape_cast %169 : vector<16xf32> to vector<16x1xf32>
    %171 = vector.broadcast %170 : vector<16x1xf32> to vector<16x16xf32>
    %172 = arith.subf %168, %171 : vector<16x16xf32>
    %173 = math.exp %172 : vector<16x16xf32>
    %cst_90 = arith.constant dense<0.000000e+00> : vector<16xf32>
    %174 = vector.multi_reduction <add>, %173, %cst_90 [1] : vector<16x16xf32> to vector<16xf32>
    %175 = vector.shape_cast %174 : vector<16xf32> to vector<16x1xf32>
    %176 = tpu.reciprocal %175 {approx = true} : vector<16x1xf32> -> vector<16x1xf32>
    %177 = vector.broadcast %176 : vector<16x1xf32> to vector<16x16xf32>
    %178 = arith.mulf %173, %177 : vector<16x16xf32>
    %cst_91 = arith.constant dense<0.000000e+00> : vector<16x16xf32>
    %179 = tpu.matmul %178, %164, %cst_91 {dimension_numbers = #tpu.dot_dimension_numbers<[1], [0], [0], [1], [0, 0, 1, 1], [], []>} : vector<16x16xf32>, vector<16x16xf32>, vector<16x16xf32> -> vector<16x16xf32>
    %180 = vector.extract_strided_slice %161 {offsets = [0, 0], sizes = [16, 32], strides = [1, 1]} : vector<32x32xf32> to vector<16x32xf32>
    %cst_92 = arith.constant dense<0.000000e+00> : vector<16x32xf32>
    %181 = tpu.matmul %179, %180, %cst_92 {dimension_numbers = #tpu.dot_dimension_numbers<[1], [0], [0], [1], [0, 0, 1, 1], [], []>} : vector<16x16xf32>, vector<16x32xf32>, vector<16x32xf32> -> vector<16x32xf32>
    %182 = vector.extract_strided_slice %159 {offsets = [0, 16], sizes = [16, 16], strides = [1, 1]} : vector<16x96xf32> to vector<16x16xf32>
    %183 = vector.extract_strided_slice %159 {offsets = [0, 48], sizes = [16, 16], strides = [1, 1]} : vector<16x96xf32> to vector<16x16xf32>
    %184 = vector.extract_strided_slice %159 {offsets = [0, 80], sizes = [16, 16], strides = [1, 1]} : vector<16x96xf32> to vector<16x16xf32>
    %cst_93 = arith.constant dense<0.000000e+00> : vector<16x16xf32>
    %185 = tpu.matmul %182, %183, %cst_93 {dimension_numbers = #tpu.dot_dimension_numbers<[1], [1], [0], [0], [0, 0, 1, 0], [], []>} : vector<16x16xf32>, vector<16x16xf32>, vector<16x16xf32> -> vector<16x16xf32>
    %cst_94 = arith.constant 2.500000e-01 : f32
    %186 = vector.broadcast %cst_94 : f32 to vector<16x16xf32>
    %187 = arith.mulf %185, %186 : vector<16x16xf32>
    %188 = arith.addf %187, %28 : vector<16x16xf32>
    %cst_95 = arith.constant dense<0xFF800000> : vector<16xf32>
    %189 = vector.multi_reduction <maximumf>, %188, %cst_95 [1] : vector<16x16xf32> to vector<16xf32>
    %190 = vector.shape_cast %189 : vector<16xf32> to vector<16x1xf32>
    %191 = vector.broadcast %190 : vector<16x1xf32> to vector<16x16xf32>
    %192 = arith.subf %188, %191 : vector<16x16xf32>
    %193 = math.exp %192 : vector<16x16xf32>
    %cst_96 = arith.constant dense<0.000000e+00> : vector<16xf32>
    %194 = vector.multi_reduction <add>, %193, %cst_96 [1] : vector<16x16xf32> to vector<16xf32>
    %195 = vector.shape_cast %194 : vector<16xf32> to vector<16x1xf32>
    %196 = tpu.reciprocal %195 {approx = true} : vector<16x1xf32> -> vector<16x1xf32>
    %197 = vector.broadcast %196 : vector<16x1xf32> to vector<16x16xf32>
    %198 = arith.mulf %193, %197 : vector<16x16xf32>
    %cst_97 = arith.constant dense<0.000000e+00> : vector<16x16xf32>
    %199 = tpu.matmul %198, %184, %cst_97 {dimension_numbers = #tpu.dot_dimension_numbers<[1], [0], [0], [1], [0, 0, 1, 1], [], []>} : vector<16x16xf32>, vector<16x16xf32>, vector<16x16xf32> -> vector<16x16xf32>
    %200 = vector.extract_strided_slice %161 {offsets = [16, 0], sizes = [16, 32], strides = [1, 1]} : vector<32x32xf32> to vector<16x32xf32>
    %cst_98 = arith.constant dense<0.000000e+00> : vector<16x32xf32>
    %201 = tpu.matmul %199, %200, %cst_98 {dimension_numbers = #tpu.dot_dimension_numbers<[1], [0], [0], [1], [0, 0, 1, 1], [], []>} : vector<16x16xf32>, vector<16x32xf32>, vector<16x32xf32> -> vector<16x32xf32>
    %202 = arith.addf %181, %201 : vector<16x32xf32>
    %c1_99 = arith.constant 1 : index
    %c0_100 = arith.constant 0 : index
    %c0_101 = arith.constant 0 : index
    %203 = vector.load %arg10[%c1_99, %c0_100, %c0_101] : memref<2x1x32xf32, #tpu.memory_space<vmem>>, vector<1x1x32xf32>
    %204 = vector.shape_cast %203 : vector<1x1x32xf32> to vector<1x32xf32>
    %205 = vector.broadcast %204 : vector<1x32xf32> to vector<16x32xf32>
    %206 = arith.addf %202, %205 : vector<16x32xf32>
    %207 = arith.addf %152, %206 : vector<16x32xf32>
    %c1_102 = arith.constant 1 : index
    %c0_103 = arith.constant 0 : index
    %c0_104 = arith.constant 0 : index
    %208 = vector.load %arg11[%c1_102, %c0_103, %c0_104] : memref<2x1x32xf32, #tpu.memory_space<vmem>>, vector<1x1x32xf32>
    %209 = vector.shape_cast %208 : vector<1x1x32xf32> to vector<1x32xf32>
    %c1_105 = arith.constant 1 : index
    %c0_106 = arith.constant 0 : index
    %c0_107 = arith.constant 0 : index
    %210 = vector.load %arg12[%c1_105, %c0_106, %c0_107] : memref<2x1x32xf32, #tpu.memory_space<vmem>>, vector<1x1x32xf32>
    %211 = vector.shape_cast %210 : vector<1x1x32xf32> to vector<1x32xf32>
    %cst_108 = arith.constant dense<0.000000e+00> : vector<16xf32>
    %212 = vector.multi_reduction <add>, %207, %cst_108 [1] : vector<16x32xf32> to vector<16xf32>
    %213 = vector.shape_cast %212 : vector<16xf32> to vector<16x1xf32>
    %cst_109 = arith.constant 3.200000e+01 : f32
    %214 = vector.broadcast %cst_109 : f32 to vector<16x1xf32>
    %215 = arith.divf %213, %214 : vector<16x1xf32>
    %216 = vector.broadcast %215 : vector<16x1xf32> to vector<16x32xf32>
    %217 = arith.subf %207, %216 : vector<16x32xf32>
    %218 = arith.mulf %217, %217 : vector<16x32xf32>
    %cst_110 = arith.constant dense<0.000000e+00> : vector<16xf32>
    %219 = vector.multi_reduction <add>, %218, %cst_110 [1] : vector<16x32xf32> to vector<16xf32>
    %220 = vector.shape_cast %219 : vector<16xf32> to vector<16x1xf32>
    %cst_111 = arith.constant 3.200000e+01 : f32
    %221 = vector.broadcast %cst_111 : f32 to vector<16x1xf32>
    %222 = arith.divf %220, %221 : vector<16x1xf32>
    %223 = vector.broadcast %215 : vector<16x1xf32> to vector<16x32xf32>
    %224 = arith.subf %207, %223 : vector<16x32xf32>
    %cst_112 = arith.constant 9.99999974E-6 : f32
    %225 = vector.broadcast %cst_112 : f32 to vector<16x1xf32>
    %226 = arith.addf %222, %225 : vector<16x1xf32>
    %227 = math.rsqrt %226 : vector<16x1xf32>
    %228 = vector.broadcast %227 : vector<16x1xf32> to vector<16x32xf32>
    %229 = arith.mulf %224, %228 : vector<16x32xf32>
    %230 = vector.broadcast %209 : vector<1x32xf32> to vector<16x32xf32>
    %231 = arith.mulf %229, %230 : vector<16x32xf32>
    %232 = vector.broadcast %211 : vector<1x32xf32> to vector<16x32xf32>
    %233 = arith.addf %231, %232 : vector<16x32xf32>
    %c1_113 = arith.constant 1 : index
    %c0_114 = arith.constant 0 : index
    %c0_115 = arith.constant 0 : index
    %234 = vector.load %arg13[%c1_113, %c0_114, %c0_115] : memref<2x32x128xf32, #tpu.memory_space<vmem>>, vector<1x32x128xf32>
    %235 = vector.shape_cast %234 : vector<1x32x128xf32> to vector<32x128xf32>
    %cst_116 = arith.constant dense<0.000000e+00> : vector<16x128xf32>
    %236 = tpu.matmul %233, %235, %cst_116 {dimension_numbers = #tpu.dot_dimension_numbers<[1], [0], [0], [1], [0, 0, 1, 1], [], []>} : vector<16x32xf32>, vector<32x128xf32>, vector<16x128xf32> -> vector<16x128xf32>
    %c1_117 = arith.constant 1 : index
    %c0_118 = arith.constant 0 : index
    %c0_119 = arith.constant 0 : index
    %237 = vector.load %arg14[%c1_117, %c0_118, %c0_119] : memref<2x1x128xf32, #tpu.memory_space<vmem>>, vector<1x1x128xf32>
    %238 = vector.shape_cast %237 : vector<1x1x128xf32> to vector<1x128xf32>
    %239 = vector.broadcast %238 : vector<1x128xf32> to vector<16x128xf32>
    %240 = arith.addf %236, %239 : vector<16x128xf32>
    %cst_120 = arith.constant 0.000000e+00 : f32
    %241 = vector.broadcast %cst_120 : f32 to vector<16x128xf32>
    %242 = arith.maximumf %240, %241 : vector<16x128xf32>
    %c1_121 = arith.constant 1 : index
    %c0_122 = arith.constant 0 : index
    %c0_123 = arith.constant 0 : index
    %243 = vector.load %arg15[%c1_121, %c0_122, %c0_123] : memref<2x128x32xf32, #tpu.memory_space<vmem>>, vector<1x128x32xf32>
    %244 = vector.shape_cast %243 : vector<1x128x32xf32> to vector<128x32xf32>
    %cst_124 = arith.constant dense<0.000000e+00> : vector<16x32xf32>
    %245 = tpu.matmul %242, %244, %cst_124 {dimension_numbers = #tpu.dot_dimension_numbers<[1], [0], [0], [1], [0, 0, 1, 1], [], []>} : vector<16x128xf32>, vector<128x32xf32>, vector<16x32xf32> -> vector<16x32xf32>
    %c1_125 = arith.constant 1 : index
    %c0_126 = arith.constant 0 : index
    %c0_127 = arith.constant 0 : index
    %246 = vector.load %arg16[%c1_125, %c0_126, %c0_127] : memref<2x1x32xf32, #tpu.memory_space<vmem>>, vector<1x1x32xf32>
    %247 = vector.shape_cast %246 : vector<1x1x32xf32> to vector<1x32xf32>
    %248 = vector.broadcast %247 : vector<1x32xf32> to vector<16x32xf32>
    %249 = arith.addf %245, %248 : vector<16x32xf32>
    %250 = arith.addf %233, %249 : vector<16x32xf32>
    %c1_128 = arith.constant 1 : index
    %c0_129 = arith.constant 0 : index
    %c0_130 = arith.constant 0 : index
    %251 = vector.load %arg17[%c1_128, %c0_129, %c0_130] : memref<2x1x32xf32, #tpu.memory_space<vmem>>, vector<1x1x32xf32>
    %252 = vector.shape_cast %251 : vector<1x1x32xf32> to vector<1x32xf32>
    %c1_131 = arith.constant 1 : index
    %c0_132 = arith.constant 0 : index
    %c0_133 = arith.constant 0 : index
    %253 = vector.load %arg18[%c1_131, %c0_132, %c0_133] : memref<2x1x32xf32, #tpu.memory_space<vmem>>, vector<1x1x32xf32>
    %254 = vector.shape_cast %253 : vector<1x1x32xf32> to vector<1x32xf32>
    %cst_134 = arith.constant dense<0.000000e+00> : vector<16xf32>
    %255 = vector.multi_reduction <add>, %250, %cst_134 [1] : vector<16x32xf32> to vector<16xf32>
    %256 = vector.shape_cast %255 : vector<16xf32> to vector<16x1xf32>
    %cst_135 = arith.constant 3.200000e+01 : f32
    %257 = vector.broadcast %cst_135 : f32 to vector<16x1xf32>
    %258 = arith.divf %256, %257 : vector<16x1xf32>
    %259 = vector.broadcast %258 : vector<16x1xf32> to vector<16x32xf32>
    %260 = arith.subf %250, %259 : vector<16x32xf32>
    %261 = arith.mulf %260, %260 : vector<16x32xf32>
    %cst_136 = arith.constant dense<0.000000e+00> : vector<16xf32>
    %262 = vector.multi_reduction <add>, %261, %cst_136 [1] : vector<16x32xf32> to vector<16xf32>
    %263 = vector.shape_cast %262 : vector<16xf32> to vector<16x1xf32>
    %cst_137 = arith.constant 3.200000e+01 : f32
    %264 = vector.broadcast %cst_137 : f32 to vector<16x1xf32>
    %265 = arith.divf %263, %264 : vector<16x1xf32>
    %266 = vector.broadcast %258 : vector<16x1xf32> to vector<16x32xf32>
    %267 = arith.subf %250, %266 : vector<16x32xf32>
    %cst_138 = arith.constant 9.99999974E-6 : f32
    %268 = vector.broadcast %cst_138 : f32 to vector<16x1xf32>
    %269 = arith.addf %265, %268 : vector<16x1xf32>
    %270 = math.rsqrt %269 : vector<16x1xf32>
    %271 = vector.broadcast %270 : vector<16x1xf32> to vector<16x32xf32>
    %272 = arith.mulf %267, %271 : vector<16x32xf32>
    %273 = vector.broadcast %252 : vector<1x32xf32> to vector<16x32xf32>
    %274 = arith.mulf %272, %273 : vector<16x32xf32>
    %275 = vector.broadcast %254 : vector<1x32xf32> to vector<16x32xf32>
    %276 = arith.addf %274, %275 : vector<16x32xf32>
    %c0_139 = arith.constant 0 : index
    %c0_140 = arith.constant 0 : index
    %277 = vector.load %arg19[%c0_139, %c0_140] : memref<32x128xf32, #tpu.memory_space<vmem>>, vector<32x128xf32>
    %cst_141 = arith.constant dense<0.000000e+00> : vector<16x128xf32>
    %278 = tpu.matmul %276, %277, %cst_141 {dimension_numbers = #tpu.dot_dimension_numbers<[1], [0], [0], [1], [0, 0, 1, 1], [], []>} : vector<16x32xf32>, vector<32x128xf32>, vector<16x128xf32> -> vector<16x128xf32>
    %c0_142 = arith.constant 0 : index
    %c0_143 = arith.constant 0 : index
    %279 = vector.load %arg20[%c0_142, %c0_143] : memref<1x128xf32, #tpu.memory_space<vmem>>, vector<1x128xf32>
    %280 = vector.broadcast %279 : vector<1x128xf32> to vector<16x128xf32>
    %281 = arith.addf %278, %280 : vector<16x128xf32>
    %c0_144 = arith.constant 0 : index
    %c0_145 = arith.constant 0 : index
    %282 = vector.load %arg25[%c0_144, %c0_145] : memref<16x128xf32, #tpu.memory_space<vmem>>, vector<16x128xf32>
    tpu.vector_store %arg25[%c0_144, %c0_145], %281 {strides = array<i32>} : memref<16x128xf32, #tpu.memory_space<vmem>>, vector<16x128xf32>,
    %c0_146 = arith.constant 0 : index
    %c0_147 = arith.constant 0 : index
    %283 = vector.load %arg21[%c0_146, %c0_147] : memref<16x32xf32, #tpu.memory_space<vmem>>, vector<16x32xf32>
    %284 = arith.mulf %276, %283 : vector<16x32xf32>
    %cst_148 = arith.constant dense<0.000000e+00> : vector<16xf32>
    %285 = vector.multi_reduction <add>, %284, %cst_148 [1] : vector<16x32xf32> to vector<16xf32>
    %286 = vector.shape_cast %285 : vector<16xf32> to vector<16x1xf32>
    %c0_149 = arith.constant 0 : index
    %c0_150 = arith.constant 0 : index
    %287 = vector.load %arg22[%c0_149, %c0_150] : memref<16x32xf32, #tpu.memory_space<vmem>>, vector<16x32xf32>
    %288 = arith.mulf %276, %287 : vector<16x32xf32>
    %cst_151 = arith.constant dense<0.000000e+00> : vector<16xf32>
    %289 = vector.multi_reduction <add>, %288, %cst_151 [1] : vector<16x32xf32> to vector<16xf32>
    %290 = vector.shape_cast %289 : vector<16xf32> to vector<16x1xf32>
    %cst_152 = arith.constant 0.000000e+00 : f32
    %291 = vector.broadcast %cst_152 : f32 to vector<16x126xf32>
    %292 = tpu.concatenate %286, %290, %291 in 1 : vector<16x1xf32>, vector<16x1xf32>, vector<16x126xf32> -> vector<16x128xf32>
    %c0_153 = arith.constant 0 : index
    %c0_154 = arith.constant 0 : index
    %293 = vector.load %arg23[%c0_153, %c0_154] : memref<2x16xf32, #tpu.memory_space<vmem>>, vector<2x16xf32>
    %cst_155 = arith.constant dense<0.000000e+00> : vector<2x128xf32>
    %294 = tpu.matmul %293, %292, %cst_155 {dimension_numbers = #tpu.dot_dimension_numbers<[1], [0], [0], [1], [0, 0, 1, 1], [], []>} : vector<2x16xf32>, vector<16x128xf32>, vector<2x128xf32> -> vector<2x128xf32>
    %c0_156 = arith.constant 0 : index
    %c0_157 = arith.constant 0 : index
    %295 = vector.load %arg24[%c0_156, %c0_157] : memref<1x128xf32, #tpu.memory_space<vmem>>, vector<1x128xf32>
    %296 = vector.broadcast %295 : vector<1x128xf32> to vector<2x128xf32>
    %297 = arith.addf %294, %296 : vector<2x128xf32>
    %c0_158 = arith.constant 0 : index
    %c0_159 = arith.constant 0 : index
    %298 = vector.load %arg26[%c0_158, %c0_159] : memref<2x128xf32, #tpu.memory_space<vmem>>, vector<2x128xf32>
    tpu.vector_store %arg26[%c0_158, %c0_159], %297 {strides = array<i32>} : memref<2x128xf32, #tpu.memory_space<vmem>>, vector<2x128xf32>,
    return
  }
}

</mosaic_0001>

<llo_original>
// kernel: bert_forward.1
$region0: #{bert_forward.1}
  #allocation0 [shape = 'u32[]', space=smem, size = 0x4, offset = 0x4, fixed_abs, tag = 'smem constant byte address 0x4 - core index']
  #allocation1 [shape = 'u32[144,128]{1,0:T(1,128)}', space=vmem, size = 0x12000, scoped, tag = 'internal scratch']
  %s0 = inlined_call_operand.vmem [shape: s32[16,1], index: 0, kind: input, shape index: {}]
  %s1 = inlined_call_operand.vmem [shape: s32[16,1], index: 1, kind: input, shape index: {}]
  %s2 = inlined_call_operand.vmem [shape: s32[1,16], index: 2, kind: input, shape index: {}]
  %s3 = inlined_call_operand.vmem [shape: f32[16,16], index: 3, kind: input, shape index: {}]
  %s4 = inlined_call_operand.vmem [shape: f32[64,32], index: 4, kind: input, shape index: {}]
  %s5 = inlined_call_operand.vmem [shape: f32[8,32], index: 5, kind: input, shape index: {}]
  %s6 = inlined_call_operand.vmem [shape: f32[16,32], index: 6, kind: input, shape index: {}]
  %s7 = inlined_call_operand.vmem [shape: f32[2,32,96], index: 7, kind: input, shape index: {}]
  %s8 = inlined_call_operand.vmem [shape: f32[2,1,96], index: 8, kind: input, shape index: {}]
  %s9 = inlined_call_operand.vmem [shape: f32[2,32,32], index: 9, kind: input, shape index: {}]
  %s10 = inlined_call_operand.vmem [shape: f32[2,1,32], index: 10, kind: input, shape index: {}]
  %s11 = inlined_call_operand.vmem [shape: f32[2,1,32], index: 11, kind: input, shape index: {}]
  %s12 = inlined_call_operand.vmem [shape: f32[2,1,32], index: 12, kind: input, shape index: {}]
  %s13 = inlined_call_operand.vmem [shape: f32[2,32,128], index: 13, kind: input, shape index: {}]
  %s14 = inlined_call_operand.vmem [shape: f32[2,1,128], index: 14, kind: input, shape index: {}]
  %s15 = inlined_call_operand.vmem [shape: f32[2,128,32], index: 15, kind: input, shape index: {}]
  %s16 = inlined_call_operand.vmem [shape: f32[2,1,32], index: 16, kind: input, shape index: {}]
  %s17 = inlined_call_operand.vmem [shape: f32[2,1,32], index: 17, kind: input, shape index: {}]
  %s18 = inlined_call_operand.vmem [shape: f32[2,1,32], index: 18, kind: input, shape index: {}]
  %s19 = inlined_call_operand.vmem [shape: f32[32,128], index: 19, kind: input, shape index: {}]
  %s20 = inlined_call_operand.vmem [shape: f32[1,128], index: 20, kind: input, shape index: {}]
  %s21 = inlined_call_operand.vmem [shape: f32[16,32], index: 21, kind: input, shape index: {}]
  %s22 = inlined_call_operand.vmem [shape: f32[16,32], index: 22, kind: input, shape index: {}]
  %s23 = inlined_call_operand.vmem [shape: f32[2,16], index: 23, kind: input, shape index: {}]
  %s24 = inlined_call_operand.vmem [shape: f32[1,128], index: 24, kind: input, shape index: {}]
  %s25 = inlined_call_operand.vmem [shape: f32[16,128], index: 25, kind: output, shape index: {0}]
  %s26 = inlined_call_operand.hbm [shape: f32[2,128], index: 26, kind: output, shape index: {1}]
  %27 = xla_tuple %s25, %s26
  %s28 = sld [smem:[#allocation0]]
  $region118: #{bert_forward.1} parent=0
    _
  %s30 = ssub.s32 1, %s28
  %s31 = scalar_select 0, %s30, %s28
  $region1: #{bert_forward.1} parent=0
    #allocation2 [shape = 'u8[1024]{0}', space=vmem, size = 0x400, scoped, tag = 'output window, operand 1, single buffered']
    #allocation3 [shape = 's32[1]{0}', space=sflag, size = 0x4, scoped, tag = 'scoped memory for bert_forward.1']
    %32 = vsyncpa [#allocation3], 0
    // Predicated region
    $region2: #{bert_forward.1} parent=1 // pred_check
      _
    $region3: #{bert_forward.1} parent=1 // pred_check_branch
      %34 = sbr.rel (0) target = $region5
    $region4: #{bert_forward.1} parent=1 // pred_region
      _
    $region5: #{bert_forward.1} parent=1 // pred_fallthru
      _
    // Predicated region
    $region6: #{bert_forward.1} parent=1 // pred_check
      _
    $region7: #{bert_forward.1} parent=1 // pred_check_branch
      %36 = sbr.rel (0) target = $region9
    $region8: #{bert_forward.1} parent=1 // pred_region
      _
    $region9: #{bert_forward.1} parent=1 // pred_fallthru
      _
    // Predicated region
    $region10: #{bert_forward.1} parent=1 // pred_check
      _
    $region11: #{bert_forward.1} parent=1 // pred_check_branch
      %38 = sbr.rel (0) target = $region13
    $region12: #{bert_forward.1} parent=1 // pred_region
      _
    $region13: #{bert_forward.1} parent=1 // pred_fallthru
      _
    // Predicated region
    $region14: #{bert_forward.1} parent=1 // pred_check
      _
    $region15: #{bert_forward.1} parent=1 // pred_check_branch
      %40 = sbr.rel (0) target = $region17
    $region16: #{bert_forward.1} parent=1 // pred_region
      _
    $region17: #{bert_forward.1} parent=1 // pred_fallthru
      _
    // Predicated region
    $region18: #{bert_forward.1} parent=1 // pred_check
      _
    $region19: #{bert_forward.1} parent=1 // pred_check_branch
      %42 = sbr.rel (0) target = $region21
    $region20: #{bert_forward.1} parent=1 // pred_region
      _
    $region21: #{bert_forward.1} parent=1 // pred_fallthru
      _
    // Predicated region
    $region22: #{bert_forward.1} parent=1 // pred_check
      _
    $region23: #{bert_forward.1} parent=1 // pred_check_branch
      %44 = sbr.rel (0) target = $region25
    $region24: #{bert_forward.1} parent=1 // pred_region
      _
    $region25: #{bert_forward.1} parent=1 // pred_fallthru
      _
    // Predicated region
    $region26: #{bert_forward.1} parent=1 // pred_check
      _
    $region27: #{bert_forward.1} parent=1 // pred_check_branch
      %46 = sbr.rel (0) target = $region29
    $region28: #{bert_forward.1} parent=1 // pred_region
      _
    $region29: #{bert_forward.1} parent=1 // pred_fallthru
      _
    // Predicated region
    $region30: #{bert_forward.1} parent=1 // pred_check
      _
    $region31: #{bert_forward.1} parent=1 // pred_check_branch
      %48 = sbr.rel (0) target = $region33
    $region32: #{bert_forward.1} parent=1 // pred_region
      _
    $region33: #{bert_forward.1} parent=1 // pred_fallthru
      _
    // Predicated region
    $region34: #{bert_forward.1} parent=1 // pred_check
      _
    $region35: #{bert_forward.1} parent=1 // pred_check_branch
      %50 = sbr.rel (0) target = $region37
    $region36: #{bert_forward.1} parent=1 // pred_region
      _
    $region37: #{bert_forward.1} parent=1 // pred_fallthru
      _
    // Predicated region
    $region38: #{bert_forward.1} parent=1 // pred_check
      _
    $region39: #{bert_forward.1} parent=1 // pred_check_branch
      %52 = sbr.rel (0) target = $region41
    $region40: #{bert_forward.1} parent=1 // pred_region
      _
    $region41: #{bert_forward.1} parent=1 // pred_fallthru
      _
    // Predicated region
    $region42: #{bert_forward.1} parent=1 // pred_check
      _
    $region43: #{bert_forward.1} parent=1 // pred_check_branch
      %54 = sbr.rel (0) target = $region45
    $region44: #{bert_forward.1} parent=1 // pred_region
      _
    $region45: #{bert_forward.1} parent=1 // pred_fallthru
      _
    // Predicated region
    $region46: #{bert_forward.1} parent=1 // pred_check
      _
    $region47: #{bert_forward.1} parent=1 // pred_check_branch
      %56 = sbr.rel (0) target = $region49
    $region48: #{bert_forward.1} parent=1 // pred_region
      _
    $region49: #{bert_forward.1} parent=1 // pred_fallthru
      _
    // Predicated region
    $region50: #{bert_forward.1} parent=1 // pred_check
      _
    $region51: #{bert_forward.1} parent=1 // pred_check_branch
      %58 = sbr.rel (0) target = $region53
    $region52: #{bert_forward.1} parent=1 // pred_region
      _
    $region53: #{bert_forward.1} parent=1 // pred_fallthru
      _
    // Predicated region
    $region54: #{bert_forward.1} parent=1 // pred_check
      _
    $region55: #{bert_forward.1} parent=1 // pred_check_branch
      %60 = sbr.rel (0) target = $region57
    $region56: #{bert_forward.1} parent=1 // pred_region
      _
    $region57: #{bert_forward.1} parent=1 // pred_fallthru
      _
    // Predicated region
    $region58: #{bert_forward.1} parent=1 // pred_check
      _
    $region59: #{bert_forward.1} parent=1 // pred_check_branch
      %62 = sbr.rel (0) target = $region61
    $region60: #{bert_forward.1} parent=1 // pred_region
      _
    $region61: #{bert_forward.1} parent=1 // pred_fallthru
      _
    // Predicated region
    $region62: #{bert_forward.1} parent=1 // pred_check
      _
    $region63: #{bert_forward.1} parent=1 // pred_check_branch
      %64 = sbr.rel (0) target = $region65
    $region64: #{bert_forward.1} parent=1 // pred_region
      _
    $region65: #{bert_forward.1} parent=1 // pred_fallthru
      _
    // Predicated region
    $region66: #{bert_forward.1} parent=1 // pred_check
      _
    $region67: #{bert_forward.1} parent=1 // pred_check_branch
      %66 = sbr.rel (0) target = $region69
    $region68: #{bert_forward.1} parent=1 // pred_region
      _
    $region69: #{bert_forward.1} parent=1 // pred_fallthru
      _
    // Predicated region
    $region70: #{bert_forward.1} parent=1 // pred_check
      _
    $region71: #{bert_forward.1} parent=1 // pred_check_branch
      %68 = sbr.rel (0) target = $region73
    $region72: #{bert_forward.1} parent=1 // pred_region
      _
    $region73: #{bert_forward.1} parent=1 // pred_fallthru
      _
    // Predicated region
    $region74: #{bert_forward.1} parent=1 // pred_check
      _
    $region75: #{bert_forward.1} parent=1 // pred_check_branch
      %70 = sbr.rel (0) target = $region77
    $region76: #{bert_forward.1} parent=1 // pred_region
      _
    $region77: #{bert_forward.1} parent=1 // pred_fallthru
      _
    // Predicated region
    $region78: #{bert_forward.1} parent=1 // pred_check
      _
    $region79: #{bert_forward.1} parent=1 // pred_check_branch
      %72 = sbr.rel (0) target = $region81
    $region80: #{bert_forward.1} parent=1 // pred_region
      _
    $region81: #{bert_forward.1} parent=1 // pred_fallthru
      _
    // Predicated region
    $region82: #{bert_forward.1} parent=1 // pred_check
      _
    $region83: #{bert_forward.1} parent=1 // pred_check_branch
      %74 = sbr.rel (0) target = $region85
    $region84: #{bert_forward.1} parent=1 // pred_region
      _
    $region85: #{bert_forward.1} parent=1 // pred_fallthru
      _
    // Predicated region
    $region86: #{bert_forward.1} parent=1 // pred_check
      _
    $region87: #{bert_forward.1} parent=1 // pred_check_branch
      %76 = sbr.rel (0) target = $region89
    $region88: #{bert_forward.1} parent=1 // pred_region
      _
    $region89: #{bert_forward.1} parent=1 // pred_fallthru
      _
    // Predicated region
    $region90: #{bert_forward.1} parent=1 // pred_check
      _
    $region91: #{bert_forward.1} parent=1 // pred_check_branch
      %78 = sbr.rel (0) target = $region93
    $region92: #{bert_forward.1} parent=1 // pred_region
      _
    $region93: #{bert_forward.1} parent=1 // pred_fallthru
      _
    // Predicated region
    $region94: #{bert_forward.1} parent=1 // pred_check
      _
    $region95: #{bert_forward.1} parent=1 // pred_check_branch
      %80 = sbr.rel (0) target = $region97
    $region96: #{bert_forward.1} parent=1 // pred_region
      _
    $region97: #{bert_forward.1} parent=1 // pred_fallthru
      _
    // Predicated region
    $region98: #{bert_forward.1} parent=1 // pred_check
      _
    $region99: #{bert_forward.1} parent=1 // pred_check_branch
      %82 = sbr.rel (0) target = $region101
    $region100: #{bert_forward.1} parent=1 // pred_region
      _
    $region101: #{bert_forward.1} parent=1 // pred_fallthru
      _
    %v83 = vld [vmem:[%s0] sm:$0xff]
    %v84 = vld [vmem:[%s0 + $0x8] sm:$0xff]
    %v85 = vld [vmem:[%s1] sm:$0xff]
    %v86 = vld [vmem:[%s1 + $0x8] sm:$0xff]
    %v87 = vlaneseq
    %v88 = vand.u32 %v87, 127
    %89 = vset.pattern.permute.xlu0 0
    %90 = vperm.xlu0 %89, %v83
    %v91 = vpop.permute.xlu0 %90
    %92 = vset.pattern.permute.xlu0 0
    %93 = vperm.xlu0 %92, %v84
    %v94 = vpop.permute.xlu0 %93
    %vm95 = vcmp.eq.s32.totalorder %v88, %v91
    %vm96 = vcmp.eq.s32.totalorder %v88, %v94
    %v97 = vsel %vm95, 1, 0
    %v98 = vsel %vm96, 1, 0
    %v99 = vcvt.s32.f32 %v97
    %v100 = vcvt.s32.f32 %v98
    %101 = vset.pattern.permute.xlu0 0
    %102 = vperm.xlu0 %101, %v85
    %v103 = vpop.permute.xlu0 %102
    %104 = vset.pattern.permute.xlu0 0
    %105 = vperm.xlu0 %104, %v86
    %v106 = vpop.permute.xlu0 %105
    %vm107 = vcmp.eq.s32.totalorder %v88, %v103
    %vm108 = vcmp.eq.s32.totalorder %v88, %v106
    %v109 = vsel %vm107, 1, 0
    %v110 = vsel %vm108, 1, 0
    %v111 = vcvt.s32.f32 %v109
    %v112 = vcvt.s32.f32 %v110
    %v113 = vld [vmem:[%s4] sm:$0xff]
    %v114 = vld [vmem:[%s4 + $0x8] sm:$0xff]
    %v115 = vld [vmem:[%s4 + $0x10] sm:$0xff]
    %v116 = vld [vmem:[%s4 + $0x18] sm:$0xff]
    %v117 = vld [vmem:[%s4 + $0x20] sm:$0xff]
    %v118 = vld [vmem:[%s4 + $0x28] sm:$0xff]
    %v119 = vld [vmem:[%s4 + $0x30] sm:$0xff]
    %v120 = vld [vmem:[%s4 + $0x38] sm:$0xff]
    %v121 = vld [vmem:[%s5] sm:$0xff]
    %vm122 = vcmask 64512
    %v124 = vsel %vm122, %v111, 0
    %v127 = vsel %vm122, %v112, 0
    %129 = vmatprep.subr.mxu0 0.0
    %130 = vmatpush1.msra.mxu0 %v121
    %131 = vmatprep.subr.mxu0 0.0
    %132 = vmatpush1.msra.mxu0 0.0
    %133 = vmatprep.subr.mxu0 0.0
    %134 = vmatpush1.msra.mxu0 0.0
    %135 = vmatprep.subr.mxu0 0.0
    %136 = vmatpush1.msra.mxu0 0.0
    %137 = vmatprep.subr.mxu0 0.0
    %138 = vmatpush1.msra.mxu0 0.0
    %139 = vmatprep.subr.mxu0 0.0
    %140 = vmatpush1.msra.mxu0 0.0
    %141 = vmatprep.subr.mxu0 0.0
    %142 = vmatpush1.msra.mxu0 0.0
    %143 = vmatprep.subr.mxu0 0.0
    %144 = vmatpush1.msra.mxu0 0.0
    %145 = vmatprep.subr.mxu0 0.0
    %146 = vmatpush1.msra.mxu0 0.0
    %147 = vmatprep.subr.mxu0 0.0
    %148 = vmatpush1.msra.mxu0 0.0
    %149 = vmatprep.subr.mxu0 0.0
    %150 = vmatpush1.msra.mxu0 0.0
    %151 = vmatprep.subr.mxu0 0.0
    %152 = vmatpush1.msra.mxu0 0.0
    %153 = vmatprep.subr.mxu0 0.0
    %154 = vmatpush1.msra.mxu0 0.0
    %155 = vmatprep.subr.mxu0 0.0
    %156 = vmatpush1.msra.mxu0 0.0
    %157 = vmatprep.subr.mxu0 0.0
    %158 = vmatpush1.msra.mxu0 0.0
    %159 = vmatprep.subr.mxu0 0.0
    %160 = vmatpush1.msra.mxu0 0.0
    %161 = vmatprep.subr.mxu0 0.0
    %162 = vmatpush1.msra.mxu0 0.0
    %163 = vmatprep.subr.mxu0 0.0
    %164 = vmatpush1.msra.mxu0 0.0
    %165 = vmatprep.subr.mxu0 0.0
    %166 = vmatpush1.msra.mxu0 0.0
    %167 = vmatprep.subr.mxu0 0.0
    %168 = vmatpush1.msra.mxu0 0.0
    %169 = vmatprep.subr.mxu0 0.0
    %170 = vmatpush1.msra.mxu0 0.0
    %171 = vmatprep.subr.mxu0 0.0
    %172 = vmatpush1.msra.mxu0 0.0
    %173 = vmatprep.subr.mxu0 0.0
    %174 = vmatpush1.msra.mxu0 0.0
    %175 = vmatprep.subr.mxu0 0.0
    %176 = vmatpush1.msra.mxu0 0.0
    %177 = vmatprep.subr.mxu0 0.0
    %178 = vmatpush1.msra.mxu0 0.0
    %179 = vmatprep.subr.mxu0 0.0
    %180 = vmatpush1.msra.mxu0 0.0
    %181 = vmatprep.subr.mxu0 0.0
    %182 = vmatpush1.msra.mxu0 0.0
    %183 = vmatprep.subr.mxu0 0.0
    %184 = vmatpush1.msra.mxu0 0.0
    %185 = vmatprep.subr.mxu0 0.0
    %186 = vmatpush1.msra.mxu0 0.0
    %187 = vmatprep.subr.mxu0 0.0
    %188 = vmatpush1.msra.mxu0 0.0
    %189 = vmatprep.subr.mxu0 0.0
    %190 = vmatpush1.msra.mxu0 0.0
    %191 = vmatprep.subr.mxu0 0.0
    %192 = vmatpush1.msra.mxu0 0.0
    %193 = vmatprep.mubr.f32.mxu0 0.0
    %194 = vmatmul.mubr.f32.gmra.mrb[0].mxu0 %v124
    %v195 = vpop.f32.mrb[0].mxu0
    %v196 = vadd.f32 0.0, %v195
    %v197 = vpop.f32.mrb[0].mxu0
    %198 = vmatprep.mubr.f32.mxu0 0.0
    %199 = vmatmul.mubr.f32.gmra.mrb[0].mxu0 %v127
    %v200 = vpop.f32.mrb[0].mxu0
    %v201 = vadd.f32 0.0, %v200
    %v202 = vpop.f32.mrb[0].mxu0
    %203 = vdwg.mxu0
    %vm204 = vcmask 523264
    %v206 = vsel %vm204, %v99, 0
    %v209 = vsel %vm204, %v100, 0
    %211 = vmatprep.subr.mxu0 0.0
    %212 = vmatpush1.msra.mxu0 %v113
    %213 = vmatprep.subr.mxu0 0.0
    %214 = vmatpush1.msra.mxu0 %v114
    %215 = vmatprep.subr.mxu0 0.0
    %216 = vmatpush1.msra.mxu0 %v115
    %217 = vmatprep.subr.mxu0 0.0
    %218 = vmatpush1.msra.mxu0 %v116
    %219 = vmatprep.subr.mxu0 0.0
    %220 = vmatpush1.msra.mxu0 %v117
    %221 = vmatprep.subr.mxu0 0.0
    %222 = vmatpush1.msra.mxu0 %v118
    %223 = vmatprep.subr.mxu0 0.0
    %224 = vmatpush1.msra.mxu0 %v119
    %225 = vmatprep.subr.mxu0 0.0
    %226 = vmatpush1.msra.mxu0 %v120
    %227 = vmatprep.subr.mxu0 0.0
    %228 = vmatpush1.msra.mxu0 0.0
    %229 = vmatprep.subr.mxu0 0.0
    %230 = vmatpush1.msra.mxu0 0.0
    %231 = vmatprep.subr.mxu0 0.0
    %232 = vmatpush1.msra.mxu0 0.0
    %233 = vmatprep.subr.mxu0 0.0
    %234 = vmatpush1.msra.mxu0 0.0
    %235 = vmatprep.subr.mxu0 0.0
    %236 = vmatpush1.msra.mxu0 0.0
    %237 = vmatprep.subr.mxu0 0.0
    %238 = vmatpush1.msra.mxu0 0.0
    %239 = vmatprep.subr.mxu0 0.0
    %240 = vmatpush1.msra.mxu0 0.0
    %241 = vmatprep.subr.mxu0 0.0
    %242 = vmatpush1.msra.mxu0 0.0
    %243 = vmatprep.subr.mxu0 0.0
    %244 = vmatpush1.msra.mxu0 0.0
    %245 = vmatprep.subr.mxu0 0.0
    %246 = vmatpush1.msra.mxu0 0.0
    %247 = vmatprep.subr.mxu0 0.0
    %248 = vmatpush1.msra.mxu0 0.0
    %249 = vmatprep.subr.mxu0 0.0
    %250 = vmatpush1.msra.mxu0 0.0
    %251 = vmatprep.subr.mxu0 0.0
    %252 = vmatpush1.msra.mxu0 0.0
    %253 = vmatprep.subr.mxu0 0.0
    %254 = vmatpush1.msra.mxu0 0.0
    %255 = vmatprep.subr.mxu0 0.0
    %256 = vmatpush1.msra.mxu0 0.0
    %257 = vmatprep.subr.mxu0 0.0
    %258 = vmatpush1.msra.mxu0 0.0
    %259 = vmatprep.subr.mxu0 0.0
    %260 = vmatpush1.msra.mxu0 0.0
    %261 = vmatprep.subr.mxu0 0.0
    %262 = vmatpush1.msra.mxu0 0.0
    %263 = vmatprep.subr.mxu0 0.0
    %264 = vmatpush1.msra.mxu0 0.0
    %265 = vmatprep.subr.mxu0 0.0
    %266 = vmatpush1.msra.mxu0 0.0
    %267 = vmatprep.subr.mxu0 0.0
    %268 = vmatpush1.msra.mxu0 0.0
    %269 = vmatprep.subr.mxu0 0.0
    %270 = vmatpush1.msra.mxu0 0.0
    %271 = vmatprep.subr.mxu0 0.0
    %272 = vmatpush1.msra.mxu0 0.0
    %273 = vmatprep.subr.mxu0 0.0
    %274 = vmatpush1.msra.mxu0 0.0
    %275 = vmatprep.mubr.f32.mxu0 0.0
    %276 = vmatmul.mubr.f32.gmra.mrb[0].mxu0 %v206
    %v277 = vpop.f32.mrb[0].mxu0
    %v278 = vadd.f32 %v196, %v277
    %v279 = vpop.f32.mrb[0].mxu0
    %280 = vmatprep.mubr.f32.mxu0 0.0
    %281 = vmatmul.mubr.f32.gmra.mrb[0].mxu0 %v209
    %v282 = vpop.f32.mrb[0].mxu0
    %v283 = vadd.f32 %v201, %v282
    %v284 = vpop.f32.mrb[0].mxu0
    %285 = vdwg.mxu0
    %v286 = vld [vmem:[%s6] sm:$0xff]
    %v287 = vld [vmem:[%s6 + $0x8] sm:$0xff]
    %v288 = vadd.f32 %v278, %v286
    %v289 = vadd.f32 %v283, %v287
    %v290 = vld [vmem:[%s2] sm:$0x1]
    %vm291 = vcmp.eq.s32.totalorder %v290, 0
    %v292 = vsel %vm291, -1e+09, 0.0
    %v293 = vld [vmem:[%s3] sm:$0xff]
    %v294 = vld [vmem:[%s3 + $0x8] sm:$0xff]
    %v296 = vlaneseq
    %v297 = vshrl.u32 %v296, 7
    %v298 = vsub.s32 0, %v297
    %v299 = vrot.slane %v292, %v298
    %v301 = vadd.f32 %v293, %v299
    %v302 = vadd.f32 %v294, %v299
    %v303 = vld [vmem:[%s7] sm:$0xff]
    %v304 = vld [vmem:[%s7 + $0x8] sm:$0xff]
    %v305 = vld [vmem:[%s7 + $0x10] sm:$0xff]
    %v306 = vld [vmem:[%s7 + $0x18] sm:$0xff]
    %v307 = vld [vmem:[%s8] sm:$0x1]
    %v309 = vlaneseq
    %v310 = vshrl.u32 %v309, 7
    %v311 = vsub.s32 0, %v310
    %v312 = vrot.slane %v307, %v311
    %vm314 = vcmask 261120
    %v316 = vsel %vm314, %v288, 0
    %v319 = vsel %vm314, %v289, 0
    %321 = vmatprep.subr.mxu0 0.0
    %322 = vmatpush1.msra.mxu0 %v303
    %323 = vmatprep.subr.mxu0 0.0
    %324 = vmatpush1.msra.mxu0 %v304
    %325 = vmatprep.subr.mxu0 0.0
    %326 = vmatpush1.msra.mxu0 %v305
    %327 = vmatprep.subr.mxu0 0.0
    %328 = vmatpush1.msra.mxu0 %v306
    %329 = vmatprep.subr.mxu0 0.0
    %330 = vmatpush1.msra.mxu0 0.0
    %331 = vmatprep.subr.mxu0 0.0
    %332 = vmatpush1.msra.mxu0 0.0
    %333 = vmatprep.subr.mxu0 0.0
    %334 = vmatpush1.msra.mxu0 0.0
    %335 = vmatprep.subr.mxu0 0.0
    %336 = vmatpush1.msra.mxu0 0.0
    %337 = vmatprep.subr.mxu0 0.0
    %338 = vmatpush1.msra.mxu0 0.0
    %339 = vmatprep.subr.mxu0 0.0
    %340 = vmatpush1.msra.mxu0 0.0
    %341 = vmatprep.subr.mxu0 0.0
    %342 = vmatpush1.msra.mxu0 0.0
    %343 = vmatprep.subr.mxu0 0.0
    %344 = vmatpush1.msra.mxu0 0.0
    %345 = vmatprep.subr.mxu0 0.0
    %346 = vmatpush1.msra.mxu0 0.0
    %347 = vmatprep.subr.mxu0 0.0
    %348 = vmatpush1.msra.mxu0 0.0
    %349 = vmatprep.subr.mxu0 0.0
    %350 = vmatpush1.msra.mxu0 0.0
    %351 = vmatprep.subr.mxu0 0.0
    %352 = vmatpush1.msra.mxu0 0.0
    %353 = vmatprep.subr.mxu0 0.0
    %354 = vmatpush1.msra.mxu0 0.0
    %355 = vmatprep.subr.mxu0 0.0
    %356 = vmatpush1.msra.mxu0 0.0
    %357 = vmatprep.subr.mxu0 0.0
    %358 = vmatpush1.msra.mxu0 0.0
    %359 = vmatprep.subr.mxu0 0.0
    %360 = vmatpush1.msra.mxu0 0.0
    %361 = vmatprep.subr.mxu0 0.0
    %362 = vmatpush1.msra.mxu0 0.0
    %363 = vmatprep.subr.mxu0 0.0
    %364 = vmatpush1.msra.mxu0 0.0
    %365 = vmatprep.subr.mxu0 0.0
    %366 = vmatpush1.msra.mxu0 0.0
    %367 = vmatprep.subr.mxu0 0.0
    %368 = vmatpush1.msra.mxu0 0.0
    %369 = vmatprep.subr.mxu0 0.0
    %370 = vmatpush1.msra.mxu0 0.0
    %371 = vmatprep.subr.mxu0 0.0
    %372 = vmatpush1.msra.mxu0 0.0
    %373 = vmatprep.subr.mxu0 0.0
    %374 = vmatpush1.msra.mxu0 0.0
    %375 = vmatprep.subr.mxu0 0.0
    %376 = vmatpush1.msra.mxu0 0.0
    %377 = vmatprep.subr.mxu0 0.0
    %378 = vmatpush1.msra.mxu0 0.0
    %379 = vmatprep.subr.mxu0 0.0
    %380 = vmatpush1.msra.mxu0 0.0
    %381 = vmatprep.subr.mxu0 0.0
    %382 = vmatpush1.msra.mxu0 0.0
    %383 = vmatprep.subr.mxu0 0.0
    %384 = vmatpush1.msra.mxu0 0.0
    %385 = vmatprep.mubr.f32.mxu0 0.0
    %386 = vmatmul.mubr.f32.gmra.mrb[0].mxu0 %v316
    %v387 = vpop.f32.mrb[0].mxu0
    %v388 = vadd.f32 %v312, %v387
    %v389 = vpop.f32.mrb[0].mxu0
    %390 = vmatprep.mubr.f32.mxu0 0.0
    %391 = vmatmul.mubr.f32.gmra.mrb[0].mxu0 %v319
    %v392 = vpop.f32.mrb[0].mxu0
    %v393 = vadd.f32 %v312, %v392
    %v394 = vpop.f32.mrb[0].mxu0
    %395 = vdwg.mxu0
    %v396 = vld [vmem:[%s9] sm:$0xff]
    %v397 = vld [vmem:[%s9 + $0x8] sm:$0xff]
    %v398 = vld [vmem:[%s9 + $0x10] sm:$0xff]
    %v399 = vld [vmem:[%s9 + $0x18] sm:$0xff]
    %402 = vrot.lane.b32.xlu0 %v388, 96
    %v403 = vpop.permute.xlu0 %402
    %404 = vrot.lane.b32.xlu0 %v393, 96
    %v405 = vpop.permute.xlu0 %404
    %vm406 = vcmask 130048
    %v407 = vsel %vm406, %v388, 0
    %v409 = vsel %vm406, %v393, 0
    %v411 = vsel %vm406, %v403, 0
    %v413 = vsel %vm406, %v405, 0
    %415 = vmatprep.subr.mxu0 0.0
    %416 = vmatpush1.xpose.msra.mxu0 %v411
    %417 = vmatprep.subr.mxu0 0.0
    %418 = vmatpush1.xpose.msra.mxu0 %v413
    %419 = vmatprep.subr.mxu0 0.0
    %420 = vmatpush1.xpose.msra.mxu0 0.0
    %421 = vmatprep.subr.mxu0 0.0
    %422 = vmatpush1.xpose.msra.mxu0 0.0
    %423 = vmatprep.subr.mxu0 0.0
    %424 = vmatpush1.xpose.msra.mxu0 0.0
    %425 = vmatprep.subr.mxu0 0.0
    %426 = vmatpush1.xpose.msra.mxu0 0.0
    %427 = vmatprep.subr.mxu0 0.0
    %428 = vmatpush1.xpose.msra.mxu0 0.0
    %429 = vmatprep.subr.mxu0 0.0
    %430 = vmatpush1.xpose.msra.mxu0 0.0
    %431 = vmatprep.subr.mxu0 0.0
    %432 = vmatpush1.xpose.msra.mxu0 0.0
    %433 = vmatprep.subr.mxu0 0.0
    %434 = vmatpush1.xpose.msra.mxu0 0.0
    %435 = vmatprep.subr.mxu0 0.0
    %436 = vmatpush1.xpose.msra.mxu0 0.0
    %437 = vmatprep.subr.mxu0 0.0
    %438 = vmatpush1.xpose.msra.mxu0 0.0
    %439 = vmatprep.subr.mxu0 0.0
    %440 = vmatpush1.xpose.msra.mxu0 0.0
    %441 = vmatprep.subr.mxu0 0.0
    %442 = vmatpush1.xpose.msra.mxu0 0.0
    %443 = vmatprep.subr.mxu0 0.0
    %444 = vmatpush1.xpose.msra.mxu0 0.0
    %445 = vmatprep.subr.mxu0 0.0
    %446 = vmatpush1.xpose.msra.mxu0 0.0
    %447 = vmatprep.subr.mxu0 0.0
    %448 = vmatpush1.xpose.msra.mxu0 0.0
    %449 = vmatprep.subr.mxu0 0.0
    %450 = vmatpush1.xpose.msra.mxu0 0.0
    %451 = vmatprep.subr.mxu0 0.0
    %452 = vmatpush1.xpose.msra.mxu0 0.0
    %453 = vmatprep.subr.mxu0 0.0
    %454 = vmatpush1.xpose.msra.mxu0 0.0
    %455 = vmatprep.subr.mxu0 0.0
    %456 = vmatpush1.xpose.msra.mxu0 0.0
    %457 = vmatprep.subr.mxu0 0.0
    %458 = vmatpush1.xpose.msra.mxu0 0.0
    %459 = vmatprep.subr.mxu0 0.0
    %460 = vmatpush1.xpose.msra.mxu0 0.0
    %461 = vmatprep.subr.mxu0 0.0
    %462 = vmatpush1.xpose.msra.mxu0 0.0
    %463 = vmatprep.subr.mxu0 0.0
    %464 = vmatpush1.xpose.msra.mxu0 0.0
    %465 = vmatprep.subr.mxu0 0.0
    %466 = vmatpush1.xpose.msra.mxu0 0.0
    %467 = vmatprep.subr.mxu0 0.0
    %468 = vmatpush1.xpose.msra.mxu0 0.0
    %469 = vmatprep.subr.mxu0 0.0
    %470 = vmatpush1.xpose.msra.mxu0 0.0
    %471 = vmatprep.subr.mxu0 0.0
    %472 = vmatpush1.xpose.msra.mxu0 0.0
    %473 = vmatprep.subr.mxu0 0.0
    %474 = vmatpush1.xpose.msra.mxu0 0.0
    %475 = vmatprep.subr.mxu0 0.0
    %476 = vmatpush1.xpose.msra.mxu0 0.0
    %477 = vmatprep.subr.mxu0 0.0
    %478 = vmatpush1.xpose.msra.mxu0 0.0
    %479 = vmatprep.mubr.f32.mxu0 0.0
    %480 = vmatmul.mubr.f32.gmra.mrb[0].mxu0 %v407
    %v481 = vpop.f32.mrb[0].mxu0
    %v482 = vadd.f32 0.0, %v481
    %v483 = vpop.f32.mrb[0].mxu0
    %484 = vmatprep.mubr.f32.mxu0 0.0
    %485 = vmatmul.mubr.f32.gmra.mrb[0].mxu0 %v409
    %v486 = vpop.f32.mrb[0].mxu0
    %v487 = vadd.f32 0.0, %v486
    %v488 = vpop.f32.mrb[0].mxu0
    %489 = vdwg.mxu0
    %v490 = vmul.f32 %v482, 0.25
    %v491 = vmul.f32 %v487, 0.25
    %v492 = vadd.f32 %v490, %v301
    %v493 = vadd.f32 %v491, %v302
    %v494 = vsel %vm406, %v492, -inf
    %495 = vmax.xlane.f32.xlu0 %v494
    %v496 = vpop.xlane.xlu0 %495
    %v497 = vsel %vm406, %v493, -inf
    %498 = vmax.xlane.f32.xlu0 %v497
    %v499 = vpop.xlane.xlu0 %498
    %v500 = vsub.f32 %v492, %v496
    %v501 = vsub.f32 %v493, %v499
    %v502 = vmul.f32 %v500, 1.442695
    %v503 = vpow.pop %v502
    %v504 = vmul.f32 %v501, 1.442695
    %v505 = vpow.pop %v504
    %v506 = vsel %vm406, %v503, 0.0
    %507 = vadd.xlane.f32.xlu0 %v506
    %v508 = vpop.xlane.xlu0 %507
    %v509 = vsel %vm406, %v505, 0.0
    %510 = vadd.xlane.f32.xlu0 %v509
    %v511 = vpop.xlane.xlu0 %510
    %v512 = vrcp.pop %v508
    %v513 = vrcp.pop %v511
    %v514 = vmul.f32 %v503, %v512
    %v515 = vmul.f32 %v505, %v513
    %516 = vrot.lane.b32.xlu0 %v388, 64
    %v517 = vpop.permute.xlu0 %516
    %518 = vrot.lane.b32.xlu0 %v393, 64
    %v519 = vpop.permute.xlu0 %518
    %v523 = vsel %vm406, %v514, 0
    %v526 = vsel %vm406, %v515, 0
    %528 = vmatprep.subr.mxu0 0.0
    %529 = vmatpush1.msra.mxu0 %v517
    %530 = vmatprep.subr.mxu0 0.0
    %531 = vmatpush1.msra.mxu0 %v519
    %532 = vmatprep.subr.mxu0 0.0
    %533 = vmatpush1.msra.mxu0 0.0
    %534 = vmatprep.subr.mxu0 0.0
    %535 = vmatpush1.msra.mxu0 0.0
    %536 = vmatprep.subr.mxu0 0.0
    %537 = vmatpush1.msra.mxu0 0.0
    %538 = vmatprep.subr.mxu0 0.0
    %539 = vmatpush1.msra.mxu0 0.0
    %540 = vmatprep.subr.mxu0 0.0
    %541 = vmatpush1.msra.mxu0 0.0
    %542 = vmatprep.subr.mxu0 0.0
    %543 = vmatpush1.msra.mxu0 0.0
    %544 = vmatprep.subr.mxu0 0.0
    %545 = vmatpush1.msra.mxu0 0.0
    %546 = vmatprep.subr.mxu0 0.0
    %547 = vmatpush1.msra.mxu0 0.0
    %548 = vmatprep.subr.mxu0 0.0
    %549 = vmatpush1.msra.mxu0 0.0
    %550 = vmatprep.subr.mxu0 0.0
    %551 = vmatpush1.msra.mxu0 0.0
    %552 = vmatprep.subr.mxu0 0.0
    %553 = vmatpush1.msra.mxu0 0.0
    %554 = vmatprep.subr.mxu0 0.0
    %555 = vmatpush1.msra.mxu0 0.0
    %556 = vmatprep.subr.mxu0 0.0
    %557 = vmatpush1.msra.mxu0 0.0
    %558 = vmatprep.subr.mxu0 0.0
    %559 = vmatpush1.msra.mxu0 0.0
    %560 = vmatprep.subr.mxu0 0.0
    %561 = vmatpush1.msra.mxu0 0.0
    %562 = vmatprep.subr.mxu0 0.0
    %563 = vmatpush1.msra.mxu0 0.0
    %564 = vmatprep.subr.mxu0 0.0
    %565 = vmatpush1.msra.mxu0 0.0
    %566 = vmatprep.subr.mxu0 0.0
    %567 = vmatpush1.msra.mxu0 0.0
    %568 = vmatprep.subr.mxu0 0.0
    %569 = vmatpush1.msra.mxu0 0.0
    %570 = vmatprep.subr.mxu0 0.0
    %571 = vmatpush1.msra.mxu0 0.0
    %572 = vmatprep.subr.mxu0 0.0
    %573 = vmatpush1.msra.mxu0 0.0
    %574 = vmatprep.subr.mxu0 0.0
    %575 = vmatpush1.msra.mxu0 0.0
    %576 = vmatprep.subr.mxu0 0.0
    %577 = vmatpush1.msra.mxu0 0.0
    %578 = vmatprep.subr.mxu0 0.0
    %579 = vmatpush1.msra.mxu0 0.0
    %580 = vmatprep.subr.mxu0 0.0
    %581 = vmatpush1.msra.mxu0 0.0
    %582 = vmatprep.subr.mxu0 0.0
    %583 = vmatpush1.msra.mxu0 0.0
    %584 = vmatprep.subr.mxu0 0.0
    %585 = vmatpush1.msra.mxu0 0.0
    %586 = vmatprep.subr.mxu0 0.0
    %587 = vmatpush1.msra.mxu0 0.0
    %588 = vmatprep.subr.mxu0 0.0
    %589 = vmatpush1.msra.mxu0 0.0
    %590 = vmatprep.subr.mxu0 0.0
    %591 = vmatpush1.msra.mxu0 0.0
    %592 = vmatprep.mubr.f32.mxu0 0.0
    %593 = vmatmul.mubr.f32.gmra.mrb[0].mxu0 %v523
    %v594 = vpop.f32.mrb[0].mxu0
    %v595 = vadd.f32 0.0, %v594
    %v596 = vpop.f32.mrb[0].mxu0
    %597 = vmatprep.mubr.f32.mxu0 0.0
    %598 = vmatmul.mubr.f32.gmra.mrb[0].mxu0 %v526
    %v599 = vpop.f32.mrb[0].mxu0
    %v600 = vadd.f32 0.0, %v599
    %v601 = vpop.f32.mrb[0].mxu0
    %602 = vdwg.mxu0
    %603 = vrot.lane.b32.xlu0 %v388, 112
    %v604 = vpop.permute.xlu0 %603
    %605 = vrot.lane.b32.xlu0 %v393, 112
    %v606 = vpop.permute.xlu0 %605
    %607 = vrot.lane.b32.xlu0 %v388, 80
    %v608 = vpop.permute.xlu0 %607
    %609 = vrot.lane.b32.xlu0 %v393, 80
    %v610 = vpop.permute.xlu0 %609
    %v611 = vsel %vm406, %v604, 0
    %v613 = vsel %vm406, %v606, 0
    %v615 = vsel %vm406, %v608, 0
    %v617 = vsel %vm406, %v610, 0
    %619 = vmatprep.subr.mxu0 0.0
    %620 = vmatpush1.xpose.msra.mxu0 %v615
    %621 = vmatprep.subr.mxu0 0.0
    %622 = vmatpush1.xpose.msra.mxu0 %v617
    %623 = vmatprep.subr.mxu0 0.0
    %624 = vmatpush1.xpose.msra.mxu0 0.0
    %625 = vmatprep.subr.mxu0 0.0
    %626 = vmatpush1.xpose.msra.mxu0 0.0
    %627 = vmatprep.subr.mxu0 0.0
    %628 = vmatpush1.xpose.msra.mxu0 0.0
    %629 = vmatprep.subr.mxu0 0.0
    %630 = vmatpush1.xpose.msra.mxu0 0.0
    %631 = vmatprep.subr.mxu0 0.0
    %632 = vmatpush1.xpose.msra.mxu0 0.0
    %633 = vmatprep.subr.mxu0 0.0
    %634 = vmatpush1.xpose.msra.mxu0 0.0
    %635 = vmatprep.subr.mxu0 0.0
    %636 = vmatpush1.xpose.msra.mxu0 0.0
    %637 = vmatprep.subr.mxu0 0.0
    %638 = vmatpush1.xpose.msra.mxu0 0.0
    %639 = vmatprep.subr.mxu0 0.0
    %640 = vmatpush1.xpose.msra.mxu0 0.0
    %641 = vmatprep.subr.mxu0 0.0
    %642 = vmatpush1.xpose.msra.mxu0 0.0
    %643 = vmatprep.subr.mxu0 0.0
    %644 = vmatpush1.xpose.msra.mxu0 0.0
    %645 = vmatprep.subr.mxu0 0.0
    %646 = vmatpush1.xpose.msra.mxu0 0.0
    %647 = vmatprep.subr.mxu0 0.0
    %648 = vmatpush1.xpose.msra.mxu0 0.0
    %649 = vmatprep.subr.mxu0 0.0
    %650 = vmatpush1.xpose.msra.mxu0 0.0
    %651 = vmatprep.subr.mxu0 0.0
    %652 = vmatpush1.xpose.msra.mxu0 0.0
    %653 = vmatprep.subr.mxu0 0.0
    %654 = vmatpush1.xpose.msra.mxu0 0.0
    %655 = vmatprep.subr.mxu0 0.0
    %656 = vmatpush1.xpose.msra.mxu0 0.0
    %657 = vmatprep.subr.mxu0 0.0
    %658 = vmatpush1.xpose.msra.mxu0 0.0
    %659 = vmatprep.subr.mxu0 0.0
    %660 = vmatpush1.xpose.msra.mxu0 0.0
    %661 = vmatprep.subr.mxu0 0.0
    %662 = vmatpush1.xpose.msra.mxu0 0.0
    %663 = vmatprep.subr.mxu0 0.0
    %664 = vmatpush1.xpose.msra.mxu0 0.0
    %665 = vmatprep.subr.mxu0 0.0
    %666 = vmatpush1.xpose.msra.mxu0 0.0
    %667 = vmatprep.subr.mxu0 0.0
    %668 = vmatpush1.xpose.msra.mxu0 0.0
    %669 = vmatprep.subr.mxu0 0.0
    %670 = vmatpush1.xpose.msra.mxu0 0.0
    %671 = vmatprep.subr.mxu0 0.0
    %672 = vmatpush1.xpose.msra.mxu0 0.0
    %673 = vmatprep.subr.mxu0 0.0
    %674 = vmatpush1.xpose.msra.mxu0 0.0
    %675 = vmatprep.subr.mxu0 0.0
    %676 = vmatpush1.xpose.msra.mxu0 0.0
    %677 = vmatprep.subr.mxu0 0.0
    %678 = vmatpush1.xpose.msra.mxu0 0.0
    %679 = vmatprep.subr.mxu0 0.0
    %680 = vmatpush1.xpose.msra.mxu0 0.0
    %681 = vmatprep.subr.mxu0 0.0
    %682 = vmatpush1.xpose.msra.mxu0 0.0
    %683 = vmatprep.mubr.f32.mxu0 0.0
    %684 = vmatmul.mubr.f32.gmra.mrb[0].mxu0 %v611
    %v685 = vpop.f32.mrb[0].mxu0
    %v686 = vadd.f32 0.0, %v685
    %v687 = vpop.f32.mrb[0].mxu0
    %688 = vmatprep.mubr.f32.mxu0 0.0
    %689 = vmatmul.mubr.f32.gmra.mrb[0].mxu0 %v613
    %v690 = vpop.f32.mrb[0].mxu0
    %v691 = vadd.f32 0.0, %v690
    %v692 = vpop.f32.mrb[0].mxu0
    %693 = vdwg.mxu0
    %v694 = vmul.f32 %v686, 0.25
    %v695 = vmul.f32 %v691, 0.25
    %v696 = vadd.f32 %v694, %v301
    %v697 = vadd.f32 %v695, %v302
    %v698 = vsel %vm406, %v696, -inf
    %699 = vmax.xlane.f32.xlu0 %v698
    %v700 = vpop.xlane.xlu0 %699
    %v701 = vsel %vm406, %v697, -inf
    %702 = vmax.xlane.f32.xlu0 %v701
    %v703 = vpop.xlane.xlu0 %702
    %v704 = vsub.f32 %v696, %v700
    %v705 = vsub.f32 %v697, %v703
    %v706 = vmul.f32 %v704, 1.442695
    %v707 = vpow.pop %v706
    %v708 = vmul.f32 %v705, 1.442695
    %v709 = vpow.pop %v708
    %v710 = vsel %vm406, %v707, 0.0
    %711 = vadd.xlane.f32.xlu0 %v710
    %v712 = vpop.xlane.xlu0 %711
    %v713 = vsel %vm406, %v709, 0.0
    %714 = vadd.xlane.f32.xlu0 %v713
    %v715 = vpop.xlane.xlu0 %714
    %v716 = vrcp.pop %v712
    %v717 = vrcp.pop %v715
    %v718 = vmul.f32 %v707, %v716
    %v719 = vmul.f32 %v709, %v717
    %720 = vrot.lane.b32.xlu0 %v388, 48
    %v721 = vpop.permute.xlu0 %720
    %722 = vrot.lane.b32.xlu0 %v393, 48
    %v723 = vpop.permute.xlu0 %722
    %v727 = vsel %vm406, %v718, 0
    %v730 = vsel %vm406, %v719, 0
    %732 = vmatprep.subr.mxu0 0.0
    %733 = vmatpush1.msra.mxu0 %v721
    %734 = vmatprep.subr.mxu0 0.0
    %735 = vmatpush1.msra.mxu0 %v723
    %736 = vmatprep.subr.mxu0 0.0
    %737 = vmatpush1.msra.mxu0 0.0
    %738 = vmatprep.subr.mxu0 0.0
    %739 = vmatpush1.msra.mxu0 0.0
    %740 = vmatprep.subr.mxu0 0.0
    %741 = vmatpush1.msra.mxu0 0.0
    %742 = vmatprep.subr.mxu0 0.0
    %743 = vmatpush1.msra.mxu0 0.0
    %744 = vmatprep.subr.mxu0 0.0
    %745 = vmatpush1.msra.mxu0 0.0
    %746 = vmatprep.subr.mxu0 0.0
    %747 = vmatpush1.msra.mxu0 0.0
    %748 = vmatprep.subr.mxu0 0.0
    %749 = vmatpush1.msra.mxu0 0.0
    %750 = vmatprep.subr.mxu0 0.0
    %751 = vmatpush1.msra.mxu0 0.0
    %752 = vmatprep.subr.mxu0 0.0
    %753 = vmatpush1.msra.mxu0 0.0
    %754 = vmatprep.subr.mxu0 0.0
    %755 = vmatpush1.msra.mxu0 0.0
    %756 = vmatprep.subr.mxu0 0.0
    %757 = vmatpush1.msra.mxu0 0.0
    %758 = vmatprep.subr.mxu0 0.0
    %759 = vmatpush1.msra.mxu0 0.0
    %760 = vmatprep.subr.mxu0 0.0
    %761 = vmatpush1.msra.mxu0 0.0
    %762 = vmatprep.subr.mxu0 0.0
    %763 = vmatpush1.msra.mxu0 0.0
    %764 = vmatprep.subr.mxu0 0.0
    %765 = vmatpush1.msra.mxu0 0.0
    %766 = vmatprep.subr.mxu0 0.0
    %767 = vmatpush1.msra.mxu0 0.0
    %768 = vmatprep.subr.mxu0 0.0
    %769 = vmatpush1.msra.mxu0 0.0
    %770 = vmatprep.subr.mxu0 0.0
    %771 = vmatpush1.msra.mxu0 0.0
    %772 = vmatprep.subr.mxu0 0.0
    %773 = vmatpush1.msra.mxu0 0.0
    %774 = vmatprep.subr.mxu0 0.0
    %775 = vmatpush1.msra.mxu0 0.0
    %776 = vmatprep.subr.mxu0 0.0
    %777 = vmatpush1.msra.mxu0 0.0
    %778 = vmatprep.subr.mxu0 0.0
    %779 = vmatpush1.msra.mxu0 0.0
    %780 = vmatprep.subr.mxu0 0.0
    %781 = vmatpush1.msra.mxu0 0.0
    %782 = vmatprep.subr.mxu0 0.0
    %783 = vmatpush1.msra.mxu0 0.0
    %784 = vmatprep.subr.mxu0 0.0
    %785 = vmatpush1.msra.mxu0 0.0
    %786 = vmatprep.subr.mxu0 0.0
    %787 = vmatpush1.msra.mxu0 0.0
    %788 = vmatprep.subr.mxu0 0.0
    %789 = vmatpush1.msra.mxu0 0.0
    %790 = vmatprep.subr.mxu0 0.0
    %791 = vmatpush1.msra.mxu0 0.0
    %792 = vmatprep.subr.mxu0 0.0
    %793 = vmatpush1.msra.mxu0 0.0
    %794 = vmatprep.subr.mxu0 0.0
    %795 = vmatpush1.msra.mxu0 0.0
    %796 = vmatprep.mubr.f32.mxu0 0.0
    %797 = vmatmul.mubr.f32.gmra.mrb[0].mxu0 %v727
    %v798 = vpop.f32.mrb[0].mxu0
    %v799 = vadd.f32 0.0, %v798
    %v800 = vpop.f32.mrb[0].mxu0
    %801 = vmatprep.mubr.f32.mxu0 0.0
    %802 = vmatmul.mubr.f32.gmra.mrb[0].mxu0 %v730
    %v803 = vpop.f32.mrb[0].mxu0
    %v804 = vadd.f32 0.0, %v803
    %v805 = vpop.f32.mrb[0].mxu0
    %806 = vdwg.mxu0
    %v808 = vsel %vm406, %v799, 0
    %v811 = vsel %vm406, %v804, 0
    %813 = vmatprep.subr.mxu0 0.0
    %814 = vmatpush1.msra.mxu0 %v398
    %815 = vmatprep.subr.mxu0 0.0
    %816 = vmatpush1.msra.mxu0 %v399
    %817 = vmatprep.subr.mxu0 0.0
    %818 = vmatpush1.msra.mxu0 0.0
    %819 = vmatprep.subr.mxu0 0.0
    %820 = vmatpush1.msra.mxu0 0.0
    %821 = vmatprep.subr.mxu0 0.0
    %822 = vmatpush1.msra.mxu0 0.0
    %823 = vmatprep.subr.mxu0 0.0
    %824 = vmatpush1.msra.mxu0 0.0
    %825 = vmatprep.subr.mxu0 0.0
    %826 = vmatpush1.msra.mxu0 0.0
    %827 = vmatprep.subr.mxu0 0.0
    %828 = vmatpush1.msra.mxu0 0.0
    %829 = vmatprep.subr.mxu0 0.0
    %830 = vmatpush1.msra.mxu0 0.0
    %831 = vmatprep.subr.mxu0 0.0
    %832 = vmatpush1.msra.mxu0 0.0
    %833 = vmatprep.subr.mxu0 0.0
    %834 = vmatpush1.msra.mxu0 0.0
    %835 = vmatprep.subr.mxu0 0.0
    %836 = vmatpush1.msra.mxu0 0.0
    %837 = vmatprep.subr.mxu0 0.0
    %838 = vmatpush1.msra.mxu0 0.0
    %839 = vmatprep.subr.mxu0 0.0
    %840 = vmatpush1.msra.mxu0 0.0
    %841 = vmatprep.subr.mxu0 0.0
    %842 = vmatpush1.msra.mxu0 0.0
    %843 = vmatprep.subr.mxu0 0.0
    %844 = vmatpush1.msra.mxu0 0.0
    %845 = vmatprep.subr.mxu0 0.0
    %846 = vmatpush1.msra.mxu0 0.0
    %847 = vmatprep.subr.mxu0 0.0
    %848 = vmatpush1.msra.mxu0 0.0
    %849 = vmatprep.subr.mxu0 0.0
    %850 = vmatpush1.msra.mxu0 0.0
    %851 = vmatprep.subr.mxu0 0.0
    %852 = vmatpush1.msra.mxu0 0.0
    %853 = vmatprep.subr.mxu0 0.0
    %854 = vmatpush1.msra.mxu0 0.0
    %855 = vmatprep.subr.mxu0 0.0
    %856 = vmatpush1.msra.mxu0 0.0
    %857 = vmatprep.subr.mxu0 0.0
    %858 = vmatpush1.msra.mxu0 0.0
    %859 = vmatprep.subr.mxu0 0.0
    %860 = vmatpush1.msra.mxu0 0.0
    %861 = vmatprep.subr.mxu0 0.0
    %862 = vmatpush1.msra.mxu0 0.0
    %863 = vmatprep.subr.mxu0 0.0
    %864 = vmatpush1.msra.mxu0 0.0
    %865 = vmatprep.subr.mxu0 0.0
    %866 = vmatpush1.msra.mxu0 0.0
    %867 = vmatprep.subr.mxu0 0.0
    %868 = vmatpush1.msra.mxu0 0.0
    %869 = vmatprep.subr.mxu0 0.0
    %870 = vmatpush1.msra.mxu0 0.0
    %871 = vmatprep.subr.mxu0 0.0
    %872 = vmatpush1.msra.mxu0 0.0
    %873 = vmatprep.subr.mxu0 0.0
    %874 = vmatpush1.msra.mxu0 0.0
    %875 = vmatprep.subr.mxu0 0.0
    %876 = vmatpush1.msra.mxu0 0.0
    %877 = vmatprep.mubr.f32.mxu0 0.0
    %878 = vmatmul.mubr.f32.gmra.mrb[0].mxu0 %v808
    %v879 = vpop.f32.mrb[0].mxu0
    %v880 = vadd.f32 0.0, %v879
    %v881 = vpop.f32.mrb[0].mxu0
    %882 = vmatprep.mubr.f32.mxu0 0.0
    %883 = vmatmul.mubr.f32.gmra.mrb[0].mxu0 %v811
    %v884 = vpop.f32.mrb[0].mxu0
    %v885 = vadd.f32 0.0, %v884
    %v886 = vpop.f32.mrb[0].mxu0
    %887 = vdwg.mxu0
    %v889 = vsel %vm406, %v595, 0
    %v892 = vsel %vm406, %v600, 0
    %894 = vmatprep.subr.mxu0 0.0
    %895 = vmatpush1.msra.mxu0 %v396
    %896 = vmatprep.subr.mxu0 0.0
    %897 = vmatpush1.msra.mxu0 %v397
    %898 = vmatprep.subr.mxu0 0.0
    %899 = vmatpush1.msra.mxu0 0.0
    %900 = vmatprep.subr.mxu0 0.0
    %901 = vmatpush1.msra.mxu0 0.0
    %902 = vmatprep.subr.mxu0 0.0
    %903 = vmatpush1.msra.mxu0 0.0
    %904 = vmatprep.subr.mxu0 0.0
    %905 = vmatpush1.msra.mxu0 0.0
    %906 = vmatprep.subr.mxu0 0.0
    %907 = vmatpush1.msra.mxu0 0.0
    %908 = vmatprep.subr.mxu0 0.0
    %909 = vmatpush1.msra.mxu0 0.0
    %910 = vmatprep.subr.mxu0 0.0
    %911 = vmatpush1.msra.mxu0 0.0
    %912 = vmatprep.subr.mxu0 0.0
    %913 = vmatpush1.msra.mxu0 0.0
    %914 = vmatprep.subr.mxu0 0.0
    %915 = vmatpush1.msra.mxu0 0.0
    %916 = vmatprep.subr.mxu0 0.0
    %917 = vmatpush1.msra.mxu0 0.0
    %918 = vmatprep.subr.mxu0 0.0
    %919 = vmatpush1.msra.mxu0 0.0
    %920 = vmatprep.subr.mxu0 0.0
    %921 = vmatpush1.msra.mxu0 0.0
    %922 = vmatprep.subr.mxu0 0.0
    %923 = vmatpush1.msra.mxu0 0.0
    %924 = vmatprep.subr.mxu0 0.0
    %925 = vmatpush1.msra.mxu0 0.0
    %926 = vmatprep.subr.mxu0 0.0
    %927 = vmatpush1.msra.mxu0 0.0
    %928 = vmatprep.subr.mxu0 0.0
    %929 = vmatpush1.msra.mxu0 0.0
    %930 = vmatprep.subr.mxu0 0.0
    %931 = vmatpush1.msra.mxu0 0.0
    %932 = vmatprep.subr.mxu0 0.0
    %933 = vmatpush1.msra.mxu0 0.0
    %934 = vmatprep.subr.mxu0 0.0
    %935 = vmatpush1.msra.mxu0 0.0
    %936 = vmatprep.subr.mxu0 0.0
    %937 = vmatpush1.msra.mxu0 0.0
    %938 = vmatprep.subr.mxu0 0.0
    %939 = vmatpush1.msra.mxu0 0.0
    %940 = vmatprep.subr.mxu0 0.0
    %941 = vmatpush1.msra.mxu0 0.0
    %942 = vmatprep.subr.mxu0 0.0
    %943 = vmatpush1.msra.mxu0 0.0
    %944 = vmatprep.subr.mxu0 0.0
    %945 = vmatpush1.msra.mxu0 0.0
    %946 = vmatprep.subr.mxu0 0.0
    %947 = vmatpush1.msra.mxu0 0.0
    %948 = vmatprep.subr.mxu0 0.0
    %949 = vmatpush1.msra.mxu0 0.0
    %950 = vmatprep.subr.mxu0 0.0
    %951 = vmatpush1.msra.mxu0 0.0
    %952 = vmatprep.subr.mxu0 0.0
    %953 = vmatpush1.msra.mxu0 0.0
    %954 = vmatprep.subr.mxu0 0.0
    %955 = vmatpush1.msra.mxu0 0.0
    %956 = vmatprep.subr.mxu0 0.0
    %957 = vmatpush1.msra.mxu0 0.0
    %958 = vmatprep.mubr.f32.mxu0 0.0
    %959 = vmatmul.mubr.f32.gmra.mrb[0].mxu0 %v889
    %v960 = vpop.f32.mrb[0].mxu0
    %v961 = vadd.f32 %v880, %v960
    %v962 = vpop.f32.mrb[0].mxu0
    %963 = vmatprep.mubr.f32.mxu0 0.0
    %964 = vmatmul.mubr.f32.gmra.mrb[0].mxu0 %v892
    %v965 = vpop.f32.mrb[0].mxu0
    %v966 = vadd.f32 %v885, %v965
    %v967 = vpop.f32.mrb[0].mxu0
    %968 = vdwg.mxu0
    %v969 = vld [vmem:[%s10] sm:$0x1]
    %v971 = vlaneseq
    %v972 = vshrl.u32 %v971, 7
    %v973 = vsub.s32 0, %v972
    %v974 = vrot.slane %v969, %v973
    %v976 = vadd.f32 %v961, %v974
    %v977 = vadd.f32 %v966, %v974
    %v978 = vadd.f32 %v288, %v976
    %v979 = vadd.f32 %v289, %v977
    %v980 = vld [vmem:[%s11] sm:$0x1]
    %v981 = vld [vmem:[%s12] sm:$0x1]
    %v982 = vsel %vm314, %v978, 0.0
    %983 = vadd.xlane.f32.xlu0 %v982
    %v984 = vpop.xlane.xlu0 %983
    %v985 = vsel %vm314, %v979, 0.0
    %986 = vadd.xlane.f32.xlu0 %v985
    %v987 = vpop.xlane.xlu0 %986
    %v988 = vrcp.pop 32.0
    %v989 = vmul.f32 %v984, %v988
    %v990 = vmul.f32 %v987, %v988
    %v991 = vsub.f32 %v978, %v989
    %v992 = vsub.f32 %v979, %v990
    %v993 = vmul.f32 %v991, %v991
    %v994 = vmul.f32 %v992, %v992
    %v995 = vsel %vm314, %v993, 0.0
    %996 = vadd.xlane.f32.xlu0 %v995
    %v997 = vpop.xlane.xlu0 %996
    %v998 = vsel %vm314, %v994, 0.0
    %999 = vadd.xlane.f32.xlu0 %v998
    %v1000 = vpop.xlane.xlu0 %999
    %v1001 = vmul.f32 %v997, %v988
    %v1002 = vmul.f32 %v1000, %v988
    %v1003 = vadd.f32 %v1001, 1e-05
    %v1004 = vadd.f32 %v1002, 1e-05
    %v1005 = vrsqrt.pop %v1003
    %v1006 = vrsqrt.pop %v1004
    %v1007 = vmul.f32 %v991, %v1005
    %v1008 = vmul.f32 %v992, %v1006
    %v1010 = vlaneseq
    %v1011 = vshrl.u32 %v1010, 7
    %v1012 = vsub.s32 0, %v1011
    %v1013 = vrot.slane %v980, %v1012
    %v1015 = vmul.f32 %v1007, %v1013
    %v1016 = vmul.f32 %v1008, %v1013
    %v1018 = vlaneseq
    %v1019 = vshrl.u32 %v1018, 7
    %v1020 = vsub.s32 0, %v1019
    %v1021 = vrot.slane %v981, %v1020
    %v1023 = vadd.f32 %v1015, %v1021
    %v1024 = vadd.f32 %v1016, %v1021
    %v1025 = vld [vmem:[%s13] sm:$0xff]
    %v1026 = vld [vmem:[%s13 + $0x8] sm:$0xff]
    %v1027 = vld [vmem:[%s13 + $0x10] sm:$0xff]
    %v1028 = vld [vmem:[%s13 + $0x18] sm:$0xff]
    %v1029 = vld [vmem:[%s14] sm:$0x1]
    %v1031 = vlaneseq
    %v1032 = vshrl.u32 %v1031, 7
    %v1033 = vsub.s32 0, %v1032
    %v1034 = vrot.slane %v1029, %v1033
    %v1037 = vsel %vm314, %v1023, 0
    %v1040 = vsel %vm314, %v1024, 0
    %1042 = vmatprep.subr.mxu0 0.0
    %1043 = vmatpush1.msra.mxu0 %v1025
    %1044 = vmatprep.subr.mxu0 0.0
    %1045 = vmatpush1.msra.mxu0 %v1026
    %1046 = vmatprep.subr.mxu0 0.0
    %1047 = vmatpush1.msra.mxu0 %v1027
    %1048 = vmatprep.subr.mxu0 0.0
    %1049 = vmatpush1.msra.mxu0 %v1028
    %1050 = vmatprep.subr.mxu0 0.0
    %1051 = vmatpush1.msra.mxu0 0.0
    %1052 = vmatprep.subr.mxu0 0.0
    %1053 = vmatpush1.msra.mxu0 0.0
    %1054 = vmatprep.subr.mxu0 0.0
    %1055 = vmatpush1.msra.mxu0 0.0
    %1056 = vmatprep.subr.mxu0 0.0
    %1057 = vmatpush1.msra.mxu0 0.0
    %1058 = vmatprep.subr.mxu0 0.0
    %1059 = vmatpush1.msra.mxu0 0.0
    %1060 = vmatprep.subr.mxu0 0.0
    %1061 = vmatpush1.msra.mxu0 0.0
    %1062 = vmatprep.subr.mxu0 0.0
    %1063 = vmatpush1.msra.mxu0 0.0
    %1064 = vmatprep.subr.mxu0 0.0
    %1065 = vmatpush1.msra.mxu0 0.0
    %1066 = vmatprep.subr.mxu0 0.0
    %1067 = vmatpush1.msra.mxu0 0.0
    %1068 = vmatprep.subr.mxu0 0.0
    %1069 = vmatpush1.msra.mxu0 0.0
    %1070 = vmatprep.subr.mxu0 0.0
    %1071 = vmatpush1.msra.mxu0 0.0
    %1072 = vmatprep.subr.mxu0 0.0
    %1073 = vmatpush1.msra.mxu0 0.0
    %1074 = vmatprep.subr.mxu0 0.0
    %1075 = vmatpush1.msra.mxu0 0.0
    %1076 = vmatprep.subr.mxu0 0.0
    %1077 = vmatpush1.msra.mxu0 0.0
    %1078 = vmatprep.subr.mxu0 0.0
    %1079 = vmatpush1.msra.mxu0 0.0
    %1080 = vmatprep.subr.mxu0 0.0
    %1081 = vmatpush1.msra.mxu0 0.0
    %1082 = vmatprep.subr.mxu0 0.0
    %1083 = vmatpush1.msra.mxu0 0.0
    %1084 = vmatprep.subr.mxu0 0.0
    %1085 = vmatpush1.msra.mxu0 0.0
    %1086 = vmatprep.subr.mxu0 0.0
    %1087 = vmatpush1.msra.mxu0 0.0
    %1088 = vmatprep.subr.mxu0 0.0
    %1089 = vmatpush1.msra.mxu0 0.0
    %1090 = vmatprep.subr.mxu0 0.0
    %1091 = vmatpush1.msra.mxu0 0.0
    %1092 = vmatprep.subr.mxu0 0.0
    %1093 = vmatpush1.msra.mxu0 0.0
    %1094 = vmatprep.subr.mxu0 0.0
    %1095 = vmatpush1.msra.mxu0 0.0
    %1096 = vmatprep.subr.mxu0 0.0
    %1097 = vmatpush1.msra.mxu0 0.0
    %1098 = vmatprep.subr.mxu0 0.0
    %1099 = vmatpush1.msra.mxu0 0.0
    %1100 = vmatprep.subr.mxu0 0.0
    %1101 = vmatpush1.msra.mxu0 0.0
    %1102 = vmatprep.subr.mxu0 0.0
    %1103 = vmatpush1.msra.mxu0 0.0
    %1104 = vmatprep.subr.mxu0 0.0
    %1105 = vmatpush1.msra.mxu0 0.0
    %1106 = vmatprep.mubr.f32.mxu0 0.0
    %1107 = vmatmul.mubr.f32.gmra.mrb[0].mxu0 %v1037
    %v1108 = vpop.f32.mrb[0].mxu0
    %v1109 = vadd.f32 %v1034, %v1108
    %v1110 = vpop.f32.mrb[0].mxu0
    %1111 = vmatprep.mubr.f32.mxu0 0.0
    %1112 = vmatmul.mubr.f32.gmra.mrb[0].mxu0 %v1040
    %v1113 = vpop.f32.mrb[0].mxu0
    %v1114 = vadd.f32 %v1034, %v1113
    %v1115 = vpop.f32.mrb[0].mxu0
    %1116 = vdwg.mxu0
    %v1117 = vmax.f32 %v1109, 0.0
    %v1118 = vmax.f32 %v1114, 0.0
    %v1119 = vld [vmem:[%s15] sm:$0xff]
    %v1120 = vld [vmem:[%s15 + $0x8] sm:$0xff]
    %v1121 = vld [vmem:[%s15 + $0x10] sm:$0xff]
    %v1122 = vld [vmem:[%s15 + $0x18] sm:$0xff]
    %v1123 = vld [vmem:[%s15 + $0x20] sm:$0xff]
    %v1124 = vld [vmem:[%s15 + $0x28] sm:$0xff]
    %v1125 = vld [vmem:[%s15 + $0x30] sm:$0xff]
    %v1126 = vld [vmem:[%s15 + $0x38] sm:$0xff]
    %v1127 = vld [vmem:[%s15 + $0x40] sm:$0xff]
    %v1128 = vld [vmem:[%s15 + $0x48] sm:$0xff]
    %v1129 = vld [vmem:[%s15 + $0x50] sm:$0xff]
    %v1130 = vld [vmem:[%s15 + $0x58] sm:$0xff]
    %v1131 = vld [vmem:[%s15 + $0x60] sm:$0xff]
    %v1132 = vld [vmem:[%s15 + $0x68] sm:$0xff]
    %v1133 = vld [vmem:[%s15 + $0x70] sm:$0xff]
    %v1134 = vld [vmem:[%s15 + $0x78] sm:$0xff]
    %v1135 = vld [vmem:[%s16] sm:$0x1]
    %v1137 = vlaneseq
    %v1138 = vshrl.u32 %v1137, 7
    %v1139 = vsub.s32 0, %v1138
    %v1140 = vrot.slane %v1135, %v1139
    %1142 = vmatprep.subr.mxu0 0.0
    %1143 = vmatpush1.msra.mxu0 %v1119
    %1144 = vmatprep.subr.mxu0 0.0
    %1145 = vmatpush1.msra.mxu0 %v1120
    %1146 = vmatprep.subr.mxu0 0.0
    %1147 = vmatpush1.msra.mxu0 %v1121
    %1148 = vmatprep.subr.mxu0 0.0
    %1149 = vmatpush1.msra.mxu0 %v1122
    %1150 = vmatprep.subr.mxu0 0.0
    %1151 = vmatpush1.msra.mxu0 %v1123
    %1152 = vmatprep.subr.mxu0 0.0
    %1153 = vmatpush1.msra.mxu0 %v1124
    %1154 = vmatprep.subr.mxu0 0.0
    %1155 = vmatpush1.msra.mxu0 %v1125
    %1156 = vmatprep.subr.mxu0 0.0
    %1157 = vmatpush1.msra.mxu0 %v1126
    %1158 = vmatprep.subr.mxu0 0.0
    %1159 = vmatpush1.msra.mxu0 %v1127
    %1160 = vmatprep.subr.mxu0 0.0
    %1161 = vmatpush1.msra.mxu0 %v1128
    %1162 = vmatprep.subr.mxu0 0.0
    %1163 = vmatpush1.msra.mxu0 %v1129
    %1164 = vmatprep.subr.mxu0 0.0
    %1165 = vmatpush1.msra.mxu0 %v1130
    %1166 = vmatprep.subr.mxu0 0.0
    %1167 = vmatpush1.msra.mxu0 %v1131
    %1168 = vmatprep.subr.mxu0 0.0
    %1169 = vmatpush1.msra.mxu0 %v1132
    %1170 = vmatprep.subr.mxu0 0.0
    %1171 = vmatpush1.msra.mxu0 %v1133
    %1172 = vmatprep.subr.mxu0 0.0
    %1173 = vmatpush1.msra.mxu0 %v1134
    %1174 = vmatprep.subr.mxu0 0.0
    %1175 = vmatpush1.msra.mxu0 0.0
    %1176 = vmatprep.subr.mxu0 0.0
    %1177 = vmatpush1.msra.mxu0 0.0
    %1178 = vmatprep.subr.mxu0 0.0
    %1179 = vmatpush1.msra.mxu0 0.0
    %1180 = vmatprep.subr.mxu0 0.0
    %1181 = vmatpush1.msra.mxu0 0.0
    %1182 = vmatprep.subr.mxu0 0.0
    %1183 = vmatpush1.msra.mxu0 0.0
    %1184 = vmatprep.subr.mxu0 0.0
    %1185 = vmatpush1.msra.mxu0 0.0
    %1186 = vmatprep.subr.mxu0 0.0
    %1187 = vmatpush1.msra.mxu0 0.0
    %1188 = vmatprep.subr.mxu0 0.0
    %1189 = vmatpush1.msra.mxu0 0.0
    %1190 = vmatprep.subr.mxu0 0.0
    %1191 = vmatpush1.msra.mxu0 0.0
    %1192 = vmatprep.subr.mxu0 0.0
    %1193 = vmatpush1.msra.mxu0 0.0
    %1194 = vmatprep.subr.mxu0 0.0
    %1195 = vmatpush1.msra.mxu0 0.0
    %1196 = vmatprep.subr.mxu0 0.0
    %1197 = vmatpush1.msra.mxu0 0.0
    %1198 = vmatprep.subr.mxu0 0.0
    %1199 = vmatpush1.msra.mxu0 0.0
    %1200 = vmatprep.subr.mxu0 0.0
    %1201 = vmatpush1.msra.mxu0 0.0
    %1202 = vmatprep.subr.mxu0 0.0
    %1203 = vmatpush1.msra.mxu0 0.0
    %1204 = vmatprep.subr.mxu0 0.0
    %1205 = vmatpush1.msra.mxu0 0.0
    %1206 = vmatprep.mubr.f32.mxu0 0.0
    %1207 = vmatmul.mubr.f32.gmra.mrb[0].mxu0 %v1117
    %v1208 = vpop.f32.mrb[0].mxu0
    %v1209 = vadd.f32 %v1140, %v1208
    %v1210 = vpop.f32.mrb[0].mxu0
    %1211 = vmatprep.mubr.f32.mxu0 0.0
    %1212 = vmatmul.mubr.f32.gmra.mrb[0].mxu0 %v1118
    %v1213 = vpop.f32.mrb[0].mxu0
    %v1214 = vadd.f32 %v1140, %v1213
    %v1215 = vpop.f32.mrb[0].mxu0
    %1216 = vdwg.mxu0
    %v1217 = vadd.f32 %v1023, %v1209
    %v1218 = vadd.f32 %v1024, %v1214
    %v1219 = vld [vmem:[%s17] sm:$0x1]
    %v1220 = vld [vmem:[%s18] sm:$0x1]
    %v1221 = vsel %vm314, %v1217, 0.0
    %1222 = vadd.xlane.f32.xlu0 %v1221
    %v1223 = vpop.xlane.xlu0 %1222
    %v1224 = vsel %vm314, %v1218, 0.0
    %1225 = vadd.xlane.f32.xlu0 %v1224
    %v1226 = vpop.xlane.xlu0 %1225
    %v1227 = vmul.f32 %v1223, %v988
    %v1228 = vmul.f32 %v1226, %v988
    %v1229 = vsub.f32 %v1217, %v1227
    %v1230 = vsub.f32 %v1218, %v1228
    %v1231 = vmul.f32 %v1229, %v1229
    %v1232 = vmul.f32 %v1230, %v1230
    %v1233 = vsel %vm314, %v1231, 0.0
    %1234 = vadd.xlane.f32.xlu0 %v1233
    %v1235 = vpop.xlane.xlu0 %1234
    %v1236 = vsel %vm314, %v1232, 0.0
    %1237 = vadd.xlane.f32.xlu0 %v1236
    %v1238 = vpop.xlane.xlu0 %1237
    %v1239 = vmul.f32 %v1235, %v988
    %v1240 = vmul.f32 %v1238, %v988
    %v1241 = vadd.f32 %v1239, 1e-05
    %v1242 = vadd.f32 %v1240, 1e-05
    %v1243 = vrsqrt.pop %v1241
    %v1244 = vrsqrt.pop %v1242
    %v1245 = vmul.f32 %v1229, %v1243
    %v1246 = vmul.f32 %v1230, %v1244
    %v1248 = vlaneseq
    %v1249 = vshrl.u32 %v1248, 7
    %v1250 = vsub.s32 0, %v1249
    %v1251 = vrot.slane %v1219, %v1250
    %v1253 = vmul.f32 %v1245, %v1251
    %v1254 = vmul.f32 %v1246, %v1251
    %v1256 = vlaneseq
    %v1257 = vshrl.u32 %v1256, 7
    %v1258 = vsub.s32 0, %v1257
    %v1259 = vrot.slane %v1220, %v1258
    %v1261 = vadd.f32 %v1253, %v1259
    %v1262 = vadd.f32 %v1254, %v1259
    %s1263 = scalar_lea.vmem %s7, 32
    %v1264 = vld [vmem:[%s1263] sm:$0xff]
    %v1265 = vld [vmem:[%s1263 + $0x8] sm:$0xff]
    %v1266 = vld [vmem:[%s1263 + $0x10] sm:$0xff]
    %v1267 = vld [vmem:[%s1263 + $0x18] sm:$0xff]
    %s1268 = scalar_lea.vmem %s8, 1
    %v1269 = vld [vmem:[%s1268] sm:$0x1]
    %v1271 = vlaneseq
    %v1272 = vshrl.u32 %v1271, 7
    %v1273 = vsub.s32 0, %v1272
    %v1274 = vrot.slane %v1269, %v1273
    %v1277 = vsel %vm314, %v1261, 0
    %v1280 = vsel %vm314, %v1262, 0
    %1282 = vmatprep.subr.mxu0 0.0
    %1283 = vmatpush1.msra.mxu0 %v1264
    %1284 = vmatprep.subr.mxu0 0.0
    %1285 = vmatpush1.msra.mxu0 %v1265
    %1286 = vmatprep.subr.mxu0 0.0
    %1287 = vmatpush1.msra.mxu0 %v1266
    %1288 = vmatprep.subr.mxu0 0.0
    %1289 = vmatpush1.msra.mxu0 %v1267
    %1290 = vmatprep.subr.mxu0 0.0
    %1291 = vmatpush1.msra.mxu0 0.0
    %1292 = vmatprep.subr.mxu0 0.0
    %1293 = vmatpush1.msra.mxu0 0.0
    %1294 = vmatprep.subr.mxu0 0.0
    %1295 = vmatpush1.msra.mxu0 0.0
    %1296 = vmatprep.subr.mxu0 0.0
    %1297 = vmatpush1.msra.mxu0 0.0
    %1298 = vmatprep.subr.mxu0 0.0
    %1299 = vmatpush1.msra.mxu0 0.0
    %1300 = vmatprep.subr.mxu0 0.0
    %1301 = vmatpush1.msra.mxu0 0.0
    %1302 = vmatprep.subr.mxu0 0.0
    %1303 = vmatpush1.msra.mxu0 0.0
    %1304 = vmatprep.subr.mxu0 0.0
    %1305 = vmatpush1.msra.mxu0 0.0
    %1306 = vmatprep.subr.mxu0 0.0
    %1307 = vmatpush1.msra.mxu0 0.0
    %1308 = vmatprep.subr.mxu0 0.0
    %1309 = vmatpush1.msra.mxu0 0.0
    %1310 = vmatprep.subr.mxu0 0.0
    %1311 = vmatpush1.msra.mxu0 0.0
    %1312 = vmatprep.subr.mxu0 0.0
    %1313 = vmatpush1.msra.mxu0 0.0
    %1314 = vmatprep.subr.mxu0 0.0
    %1315 = vmatpush1.msra.mxu0 0.0
    %1316 = vmatprep.subr.mxu0 0.0
    %1317 = vmatpush1.msra.mxu0 0.0
    %1318 = vmatprep.subr.mxu0 0.0
    %1319 = vmatpush1.msra.mxu0 0.0
    %1320 = vmatprep.subr.mxu0 0.0
    %1321 = vmatpush1.msra.mxu0 0.0
    %1322 = vmatprep.subr.mxu0 0.0
    %1323 = vmatpush1.msra.mxu0 0.0
    %1324 = vmatprep.subr.mxu0 0.0
    %1325 = vmatpush1.msra.mxu0 0.0
    %1326 = vmatprep.subr.mxu0 0.0
    %1327 = vmatpush1.msra.mxu0 0.0
    %1328 = vmatprep.subr.mxu0 0.0
    %1329 = vmatpush1.msra.mxu0 0.0
    %1330 = vmatprep.subr.mxu0 0.0
    %1331 = vmatpush1.msra.mxu0 0.0
    %1332 = vmatprep.subr.mxu0 0.0
    %1333 = vmatpush1.msra.mxu0 0.0
    %1334 = vmatprep.subr.mxu0 0.0
    %1335 = vmatpush1.msra.mxu0 0.0
    %1336 = vmatprep.subr.mxu0 0.0
    %1337 = vmatpush1.msra.mxu0 0.0
    %1338 = vmatprep.subr.mxu0 0.0
    %1339 = vmatpush1.msra.mxu0 0.0
    %1340 = vmatprep.subr.mxu0 0.0
    %1341 = vmatpush1.msra.mxu0 0.0
    %1342 = vmatprep.subr.mxu0 0.0
    %1343 = vmatpush1.msra.mxu0 0.0
    %1344 = vmatprep.subr.mxu0 0.0
    %1345 = vmatpush1.msra.mxu0 0.0
    %1346 = vmatprep.mubr.f32.mxu0 0.0
    %1347 = vmatmul.mubr.f32.gmra.mrb[0].mxu0 %v1277
    %v1348 = vpop.f32.mrb[0].mxu0
    %v1349 = vadd.f32 %v1274, %v1348
    %v1350 = vpop.f32.mrb[0].mxu0
    %1351 = vmatprep.mubr.f32.mxu0 0.0
    %1352 = vmatmul.mubr.f32.gmra.mrb[0].mxu0 %v1280
    %v1353 = vpop.f32.mrb[0].mxu0
    %v1354 = vadd.f32 %v1274, %v1353
    %v1355 = vpop.f32.mrb[0].mxu0
    %1356 = vdwg.mxu0
    %s1357 = scalar_lea.vmem %s9, 32
    %v1358 = vld [vmem:[%s1357] sm:$0xff]
    %v1359 = vld [vmem:[%s1357 + $0x8] sm:$0xff]
    %v1360 = vld [vmem:[%s1357 + $0x10] sm:$0xff]
    %v1361 = vld [vmem:[%s1357 + $0x18] sm:$0xff]
    %1364 = vrot.lane.b32.xlu0 %v1349, 96
    %v1365 = vpop.permute.xlu0 %1364
    %1366 = vrot.lane.b32.xlu0 %v1354, 96
    %v1367 = vpop.permute.xlu0 %1366
    %v1368 = vsel %vm406, %v1349, 0
    %v1370 = vsel %vm406, %v1354, 0
    %v1372 = vsel %vm406, %v1365, 0
    %v1374 = vsel %vm406, %v1367, 0
    %1376 = vmatprep.subr.mxu0 0.0
    %1377 = vmatpush1.xpose.msra.mxu0 %v1372
    %1378 = vmatprep.subr.mxu0 0.0
    %1379 = vmatpush1.xpose.msra.mxu0 %v1374
    %1380 = vmatprep.subr.mxu0 0.0
    %1381 = vmatpush1.xpose.msra.mxu0 0.0
    %1382 = vmatprep.subr.mxu0 0.0
    %1383 = vmatpush1.xpose.msra.mxu0 0.0
    %1384 = vmatprep.subr.mxu0 0.0
    %1385 = vmatpush1.xpose.msra.mxu0 0.0
    %1386 = vmatprep.subr.mxu0 0.0
    %1387 = vmatpush1.xpose.msra.mxu0 0.0
    %1388 = vmatprep.subr.mxu0 0.0
    %1389 = vmatpush1.xpose.msra.mxu0 0.0
    %1390 = vmatprep.subr.mxu0 0.0
    %1391 = vmatpush1.xpose.msra.mxu0 0.0
    %1392 = vmatprep.subr.mxu0 0.0
    %1393 = vmatpush1.xpose.msra.mxu0 0.0
    %1394 = vmatprep.subr.mxu0 0.0
    %1395 = vmatpush1.xpose.msra.mxu0 0.0
    %1396 = vmatprep.subr.mxu0 0.0
    %1397 = vmatpush1.xpose.msra.mxu0 0.0
    %1398 = vmatprep.subr.mxu0 0.0
    %1399 = vmatpush1.xpose.msra.mxu0 0.0
    %1400 = vmatprep.subr.mxu0 0.0
    %1401 = vmatpush1.xpose.msra.mxu0 0.0
    %1402 = vmatprep.subr.mxu0 0.0
    %1403 = vmatpush1.xpose.msra.mxu0 0.0
    %1404 = vmatprep.subr.mxu0 0.0
    %1405 = vmatpush1.xpose.msra.mxu0 0.0
    %1406 = vmatprep.subr.mxu0 0.0
    %1407 = vmatpush1.xpose.msra.mxu0 0.0
    %1408 = vmatprep.subr.mxu0 0.0
    %1409 = vmatpush1.xpose.msra.mxu0 0.0
    %1410 = vmatprep.subr.mxu0 0.0
    %1411 = vmatpush1.xpose.msra.mxu0 0.0
    %1412 = vmatprep.subr.mxu0 0.0
    %1413 = vmatpush1.xpose.msra.mxu0 0.0
    %1414 = vmatprep.subr.mxu0 0.0
    %1415 = vmatpush1.xpose.msra.mxu0 0.0
    %1416 = vmatprep.subr.mxu0 0.0
    %1417 = vmatpush1.xpose.msra.mxu0 0.0
    %1418 = vmatprep.subr.mxu0 0.0
    %1419 = vmatpush1.xpose.msra.mxu0 0.0
    %1420 = vmatprep.subr.mxu0 0.0
    %1421 = vmatpush1.xpose.msra.mxu0 0.0
    %1422 = vmatprep.subr.mxu0 0.0
    %1423 = vmatpush1.xpose.msra.mxu0 0.0
    %1424 = vmatprep.subr.mxu0 0.0
    %1425 = vmatpush1.xpose.msra.mxu0 0.0
    %1426 = vmatprep.subr.mxu0 0.0
    %1427 = vmatpush1.xpose.msra.mxu0 0.0
    %1428 = vmatprep.subr.mxu0 0.0
    %1429 = vmatpush1.xpose.msra.mxu0 0.0
    %1430 = vmatprep.subr.mxu0 0.0
    %1431 = vmatpush1.xpose.msra.mxu0 0.0
    %1432 = vmatprep.subr.mxu0 0.0
    %1433 = vmatpush1.xpose.msra.mxu0 0.0
    %1434 = vmatprep.subr.mxu0 0.0
    %1435 = vmatpush1.xpose.msra.mxu0 0.0
    %1436 = vmatprep.subr.mxu0 0.0
    %1437 = vmatpush1.xpose.msra.mxu0 0.0
    %1438 = vmatprep.subr.mxu0 0.0
    %1439 = vmatpush1.xpose.msra.mxu0 0.0
    %1440 = vmatprep.mubr.f32.mxu0 0.0
    %1441 = vmatmul.mubr.f32.gmra.mrb[0].mxu0 %v1368
    %v1442 = vpop.f32.mrb[0].mxu0
    %v1443 = vadd.f32 0.0, %v1442
    %v1444 = vpop.f32.mrb[0].mxu0
    %1445 = vmatprep.mubr.f32.mxu0 0.0
    %1446 = vmatmul.mubr.f32.gmra.mrb[0].mxu0 %v1370
    %v1447 = vpop.f32.mrb[0].mxu0
    %v1448 = vadd.f32 0.0, %v1447
    %v1449 = vpop.f32.mrb[0].mxu0
    %1450 = vdwg.mxu0
    %v1451 = vmul.f32 %v1443, 0.25
    %v1452 = vmul.f32 %v1448, 0.25
    %v1453 = vadd.f32 %v1451, %v301
    %v1454 = vadd.f32 %v1452, %v302
    %v1455 = vsel %vm406, %v1453, -inf
    %1456 = vmax.xlane.f32.xlu0 %v1455
    %v1457 = vpop.xlane.xlu0 %1456
    %v1458 = vsel %vm406, %v1454, -inf
    %1459 = vmax.xlane.f32.xlu0 %v1458
    %v1460 = vpop.xlane.xlu0 %1459
    %v1461 = vsub.f32 %v1453, %v1457
    %v1462 = vsub.f32 %v1454, %v1460
    %v1463 = vmul.f32 %v1461, 1.442695
    %v1464 = vpow.pop %v1463
    %v1465 = vmul.f32 %v1462, 1.442695
    %v1466 = vpow.pop %v1465
    %v1467 = vsel %vm406, %v1464, 0.0
    %1468 = vadd.xlane.f32.xlu0 %v1467
    %v1469 = vpop.xlane.xlu0 %1468
    %v1470 = vsel %vm406, %v1466, 0.0
    %1471 = vadd.xlane.f32.xlu0 %v1470
    %v1472 = vpop.xlane.xlu0 %1471
    %v1473 = vrcp.pop %v1469
    %v1474 = vrcp.pop %v1472
    %v1475 = vmul.f32 %v1464, %v1473
    %v1476 = vmul.f32 %v1466, %v1474
    %1477 = vrot.lane.b32.xlu0 %v1349, 64
    %v1478 = vpop.permute.xlu0 %1477
    %1479 = vrot.lane.b32.xlu0 %v1354, 64
    %v1480 = vpop.permute.xlu0 %1479
    %v1484 = vsel %vm406, %v1475, 0
    %v1487 = vsel %vm406, %v1476, 0
    %1489 = vmatprep.subr.mxu0 0.0
    %1490 = vmatpush1.msra.mxu0 %v1478
    %1491 = vmatprep.subr.mxu0 0.0
    %1492 = vmatpush1.msra.mxu0 %v1480
    %1493 = vmatprep.subr.mxu0 0.0
    %1494 = vmatpush1.msra.mxu0 0.0
    %1495 = vmatprep.subr.mxu0 0.0
    %1496 = vmatpush1.msra.mxu0 0.0
    %1497 = vmatprep.subr.mxu0 0.0
    %1498 = vmatpush1.msra.mxu0 0.0
    %1499 = vmatprep.subr.mxu0 0.0
    %1500 = vmatpush1.msra.mxu0 0.0
    %1501 = vmatprep.subr.mxu0 0.0
    %1502 = vmatpush1.msra.mxu0 0.0
    %1503 = vmatprep.subr.mxu0 0.0
    %1504 = vmatpush1.msra.mxu0 0.0
    %1505 = vmatprep.subr.mxu0 0.0
    %1506 = vmatpush1.msra.mxu0 0.0
    %1507 = vmatprep.subr.mxu0 0.0
    %1508 = vmatpush1.msra.mxu0 0.0
    %1509 = vmatprep.subr.mxu0 0.0
    %1510 = vmatpush1.msra.mxu0 0.0
    %1511 = vmatprep.subr.mxu0 0.0
    %1512 = vmatpush1.msra.mxu0 0.0
    %1513 = vmatprep.subr.mxu0 0.0
    %1514 = vmatpush1.msra.mxu0 0.0
    %1515 = vmatprep.subr.mxu0 0.0
    %1516 = vmatpush1.msra.mxu0 0.0
    %1517 = vmatprep.subr.mxu0 0.0
    %1518 = vmatpush1.msra.mxu0 0.0
    %1519 = vmatprep.subr.mxu0 0.0
    %1520 = vmatpush1.msra.mxu0 0.0
    %1521 = vmatprep.subr.mxu0 0.0
    %1522 = vmatpush1.msra.mxu0 0.0
    %1523 = vmatprep.subr.mxu0 0.0
    %1524 = vmatpush1.msra.mxu0 0.0
    %1525 = vmatprep.subr.mxu0 0.0
    %1526 = vmatpush1.msra.mxu0 0.0
    %1527 = vmatprep.subr.mxu0 0.0
    %1528 = vmatpush1.msra.mxu0 0.0
    %1529 = vmatprep.subr.mxu0 0.0
    %1530 = vmatpush1.msra.mxu0 0.0
    %1531 = vmatprep.subr.mxu0 0.0
    %1532 = vmatpush1.msra.mxu0 0.0
    %1533 = vmatprep.subr.mxu0 0.0
    %1534 = vmatpush1.msra.mxu0 0.0
    %1535 = vmatprep.subr.mxu0 0.0
    %1536 = vmatpush1.msra.mxu0 0.0
    %1537 = vmatprep.subr.mxu0 0.0
    %1538 = vmatpush1.msra.mxu0 0.0
    %1539 = vmatprep.subr.mxu0 0.0
    %1540 = vmatpush1.msra.mxu0 0.0
    %1541 = vmatprep.subr.mxu0 0.0
    %1542 = vmatpush1.msra.mxu0 0.0
    %1543 = vmatprep.subr.mxu0 0.0
    %1544 = vmatpush1.msra.mxu0 0.0
    %1545 = vmatprep.subr.mxu0 0.0
    %1546 = vmatpush1.msra.mxu0 0.0
    %1547 = vmatprep.subr.mxu0 0.0
    %1548 = vmatpush1.msra.mxu0 0.0
    %1549 = vmatprep.subr.mxu0 0.0
    %1550 = vmatpush1.msra.mxu0 0.0
    %1551 = vmatprep.subr.mxu0 0.0
    %1552 = vmatpush1.msra.mxu0 0.0
    %1553 = vmatprep.mubr.f32.mxu0 0.0
    %1554 = vmatmul.mubr.f32.gmra.mrb[0].mxu0 %v1484
    %v1555 = vpop.f32.mrb[0].mxu0
    %v1556 = vadd.f32 0.0, %v1555
    %v1557 = vpop.f32.mrb[0].mxu0
    %1558 = vmatprep.mubr.f32.mxu0 0.0
    %1559 = vmatmul.mubr.f32.gmra.mrb[0].mxu0 %v1487
    %v1560 = vpop.f32.mrb[0].mxu0
    %v1561 = vadd.f32 0.0, %v1560
    %v1562 = vpop.f32.mrb[0].mxu0
    %1563 = vdwg.mxu0
    %1564 = vrot.lane.b32.xlu0 %v1349, 112
    %v1565 = vpop.permute.xlu0 %1564
    %1566 = vrot.lane.b32.xlu0 %v1354, 112
    %v1567 = vpop.permute.xlu0 %1566
    %1568 = vrot.lane.b32.xlu0 %v1349, 80
    %v1569 = vpop.permute.xlu0 %1568
    %1570 = vrot.lane.b32.xlu0 %v1354, 80
    %v1571 = vpop.permute.xlu0 %1570
    %v1572 = vsel %vm406, %v1565, 0
    %v1574 = vsel %vm406, %v1567, 0
    %v1576 = vsel %vm406, %v1569, 0
    %v1578 = vsel %vm406, %v1571, 0
    %1580 = vmatprep.subr.mxu0 0.0
    %1581 = vmatpush1.xpose.msra.mxu0 %v1576
    %1582 = vmatprep.subr.mxu0 0.0
    %1583 = vmatpush1.xpose.msra.mxu0 %v1578
    %1584 = vmatprep.subr.mxu0 0.0
    %1585 = vmatpush1.xpose.msra.mxu0 0.0
    %1586 = vmatprep.subr.mxu0 0.0
    %1587 = vmatpush1.xpose.msra.mxu0 0.0
    %1588 = vmatprep.subr.mxu0 0.0
    %1589 = vmatpush1.xpose.msra.mxu0 0.0
    %1590 = vmatprep.subr.mxu0 0.0
    %1591 = vmatpush1.xpose.msra.mxu0 0.0
    %1592 = vmatprep.subr.mxu0 0.0
    %1593 = vmatpush1.xpose.msra.mxu0 0.0
    %1594 = vmatprep.subr.mxu0 0.0
    %1595 = vmatpush1.xpose.msra.mxu0 0.0
    %1596 = vmatprep.subr.mxu0 0.0
    %1597 = vmatpush1.xpose.msra.mxu0 0.0
    %1598 = vmatprep.subr.mxu0 0.0
    %1599 = vmatpush1.xpose.msra.mxu0 0.0
    %1600 = vmatprep.subr.mxu0 0.0
    %1601 = vmatpush1.xpose.msra.mxu0 0.0
    %1602 = vmatprep.subr.mxu0 0.0
    %1603 = vmatpush1.xpose.msra.mxu0 0.0
    %1604 = vmatprep.subr.mxu0 0.0
    %1605 = vmatpush1.xpose.msra.mxu0 0.0
    %1606 = vmatprep.subr.mxu0 0.0
    %1607 = vmatpush1.xpose.msra.mxu0 0.0
    %1608 = vmatprep.subr.mxu0 0.0
    %1609 = vmatpush1.xpose.msra.mxu0 0.0
    %1610 = vmatprep.subr.mxu0 0.0
    %1611 = vmatpush1.xpose.msra.mxu0 0.0
    %1612 = vmatprep.subr.mxu0 0.0
    %1613 = vmatpush1.xpose.msra.mxu0 0.0
    %1614 = vmatprep.subr.mxu0 0.0
    %1615 = vmatpush1.xpose.msra.mxu0 0.0
    %1616 = vmatprep.subr.mxu0 0.0
    %1617 = vmatpush1.xpose.msra.mxu0 0.0
    %1618 = vmatprep.subr.mxu0 0.0
    %1619 = vmatpush1.xpose.msra.mxu0 0.0
    %1620 = vmatprep.subr.mxu0 0.0
    %1621 = vmatpush1.xpose.msra.mxu0 0.0
    %1622 = vmatprep.subr.mxu0 0.0
    %1623 = vmatpush1.xpose.msra.mxu0 0.0
    %1624 = vmatprep.subr.mxu0 0.0
    %1625 = vmatpush1.xpose.msra.mxu0 0.0
    %1626 = vmatprep.subr.mxu0 0.0
    %1627 = vmatpush1.xpose.msra.mxu0 0.0
    %1628 = vmatprep.subr.mxu0 0.0
    %1629 = vmatpush1.xpose.msra.mxu0 0.0
    %1630 = vmatprep.subr.mxu0 0.0
    %1631 = vmatpush1.xpose.msra.mxu0 0.0
    %1632 = vmatprep.subr.mxu0 0.0
    %1633 = vmatpush1.xpose.msra.mxu0 0.0
    %1634 = vmatprep.subr.mxu0 0.0
    %1635 = vmatpush1.xpose.msra.mxu0 0.0
    %1636 = vmatprep.subr.mxu0 0.0
    %1637 = vmatpush1.xpose.msra.mxu0 0.0
    %1638 = vmatprep.subr.mxu0 0.0
    %1639 = vmatpush1.xpose.msra.mxu0 0.0
    %1640 = vmatprep.subr.mxu0 0.0
    %1641 = vmatpush1.xpose.msra.mxu0 0.0
    %1642 = vmatprep.subr.mxu0 0.0
    %1643 = vmatpush1.xpose.msra.mxu0 0.0
    %1644 = vmatprep.mubr.f32.mxu0 0.0
    %1645 = vmatmul.mubr.f32.gmra.mrb[0].mxu0 %v1572
    %v1646 = vpop.f32.mrb[0].mxu0
    %v1647 = vadd.f32 0.0, %v1646
    %v1648 = vpop.f32.mrb[0].mxu0
    %1649 = vmatprep.mubr.f32.mxu0 0.0
    %1650 = vmatmul.mubr.f32.gmra.mrb[0].mxu0 %v1574
    %v1651 = vpop.f32.mrb[0].mxu0
    %v1652 = vadd.f32 0.0, %v1651
    %v1653 = vpop.f32.mrb[0].mxu0
    %1654 = vdwg.mxu0
    %v1655 = vmul.f32 %v1647, 0.25
    %v1656 = vmul.f32 %v1652, 0.25
    %v1657 = vadd.f32 %v1655, %v301
    %v1658 = vadd.f32 %v1656, %v302
    %v1659 = vsel %vm406, %v1657, -inf
    %1660 = vmax.xlane.f32.xlu0 %v1659
    %v1661 = vpop.xlane.xlu0 %1660
    %v1662 = vsel %vm406, %v1658, -inf
    %1663 = vmax.xlane.f32.xlu0 %v1662
    %v1664 = vpop.xlane.xlu0 %1663
    %v1665 = vsub.f32 %v1657, %v1661
    %v1666 = vsub.f32 %v1658, %v1664
    %v1667 = vmul.f32 %v1665, 1.442695
    %v1668 = vpow.pop %v1667
    %v1669 = vmul.f32 %v1666, 1.442695
    %v1670 = vpow.pop %v1669
    %v1671 = vsel %vm406, %v1668, 0.0
    %1672 = vadd.xlane.f32.xlu0 %v1671
    %v1673 = vpop.xlane.xlu0 %1672
    %v1674 = vsel %vm406, %v1670, 0.0
    %1675 = vadd.xlane.f32.xlu0 %v1674
    %v1676 = vpop.xlane.xlu0 %1675
    %v1677 = vrcp.pop %v1673
    %v1678 = vrcp.pop %v1676
    %v1679 = vmul.f32 %v1668, %v1677
    %v1680 = vmul.f32 %v1670, %v1678
    %1681 = vrot.lane.b32.xlu0 %v1349, 48
    %v1682 = vpop.permute.xlu0 %1681
    %1683 = vrot.lane.b32.xlu0 %v1354, 48
    %v1684 = vpop.permute.xlu0 %1683
    %v1688 = vsel %vm406, %v1679, 0
    %v1691 = vsel %vm406, %v1680, 0
    %1693 = vmatprep.subr.mxu0 0.0
    %1694 = vmatpush1.msra.mxu0 %v1682
    %1695 = vmatprep.subr.mxu0 0.0
    %1696 = vmatpush1.msra.mxu0 %v1684
    %1697 = vmatprep.subr.mxu0 0.0
    %1698 = vmatpush1.msra.mxu0 0.0
    %1699 = vmatprep.subr.mxu0 0.0
    %1700 = vmatpush1.msra.mxu0 0.0
    %1701 = vmatprep.subr.mxu0 0.0
    %1702 = vmatpush1.msra.mxu0 0.0
    %1703 = vmatprep.subr.mxu0 0.0
    %1704 = vmatpush1.msra.mxu0 0.0
    %1705 = vmatprep.subr.mxu0 0.0
    %1706 = vmatpush1.msra.mxu0 0.0
    %1707 = vmatprep.subr.mxu0 0.0
    %1708 = vmatpush1.msra.mxu0 0.0
    %1709 = vmatprep.subr.mxu0 0.0
    %1710 = vmatpush1.msra.mxu0 0.0
    %1711 = vmatprep.subr.mxu0 0.0
    %1712 = vmatpush1.msra.mxu0 0.0
    %1713 = vmatprep.subr.mxu0 0.0
    %1714 = vmatpush1.msra.mxu0 0.0
    %1715 = vmatprep.subr.mxu0 0.0
    %1716 = vmatpush1.msra.mxu0 0.0
    %1717 = vmatprep.subr.mxu0 0.0
    %1718 = vmatpush1.msra.mxu0 0.0
    %1719 = vmatprep.subr.mxu0 0.0
    %1720 = vmatpush1.msra.mxu0 0.0
    %1721 = vmatprep.subr.mxu0 0.0
    %1722 = vmatpush1.msra.mxu0 0.0
    %1723 = vmatprep.subr.mxu0 0.0
    %1724 = vmatpush1.msra.mxu0 0.0
    %1725 = vmatprep.subr.mxu0 0.0
    %1726 = vmatpush1.msra.mxu0 0.0
    %1727 = vmatprep.subr.mxu0 0.0
    %1728 = vmatpush1.msra.mxu0 0.0
    %1729 = vmatprep.subr.mxu0 0.0
    %1730 = vmatpush1.msra.mxu0 0.0
    %1731 = vmatprep.subr.mxu0 0.0
    %1732 = vmatpush1.msra.mxu0 0.0
    %1733 = vmatprep.subr.mxu0 0.0
    %1734 = vmatpush1.msra.mxu0 0.0
    %1735 = vmatprep.subr.mxu0 0.0
    %1736 = vmatpush1.msra.mxu0 0.0
    %1737 = vmatprep.subr.mxu0 0.0
    %1738 = vmatpush1.msra.mxu0 0.0
    %1739 = vmatprep.subr.mxu0 0.0
    %1740 = vmatpush1.msra.mxu0 0.0
    %1741 = vmatprep.subr.mxu0 0.0
    %1742 = vmatpush1.msra.mxu0 0.0
    %1743 = vmatprep.subr.mxu0 0.0
    %1744 = vmatpush1.msra.mxu0 0.0
    %1745 = vmatprep.subr.mxu0 0.0
    %1746 = vmatpush1.msra.mxu0 0.0
    %1747 = vmatprep.subr.mxu0 0.0
    %1748 = vmatpush1.msra.mxu0 0.0
    %1749 = vmatprep.subr.mxu0 0.0
    %1750 = vmatpush1.msra.mxu0 0.0
    %1751 = vmatprep.subr.mxu0 0.0
    %1752 = vmatpush1.msra.mxu0 0.0
    %1753 = vmatprep.subr.mxu0 0.0
    %1754 = vmatpush1.msra.mxu0 0.0
    %1755 = vmatprep.subr.mxu0 0.0
    %1756 = vmatpush1.msra.mxu0 0.0
    %1757 = vmatprep.mubr.f32.mxu0 0.0
    %1758 = vmatmul.mubr.f32.gmra.mrb[0].mxu0 %v1688
    %v1759 = vpop.f32.mrb[0].mxu0
    %v1760 = vadd.f32 0.0, %v1759
    %v1761 = vpop.f32.mrb[0].mxu0
    %1762 = vmatprep.mubr.f32.mxu0 0.0
    %1763 = vmatmul.mubr.f32.gmra.mrb[0].mxu0 %v1691
    %v1764 = vpop.f32.mrb[0].mxu0
    %v1765 = vadd.f32 0.0, %v1764
    %v1766 = vpop.f32.mrb[0].mxu0
    %1767 = vdwg.mxu0
    %v1769 = vsel %vm406, %v1760, 0
    %v1772 = vsel %vm406, %v1765, 0
    %1774 = vmatprep.subr.mxu0 0.0
    %1775 = vmatpush1.msra.mxu0 %v1360
    %1776 = vmatprep.subr.mxu0 0.0
    %1777 = vmatpush1.msra.mxu0 %v1361
    %1778 = vmatprep.subr.mxu0 0.0
    %1779 = vmatpush1.msra.mxu0 0.0
    %1780 = vmatprep.subr.mxu0 0.0
    %1781 = vmatpush1.msra.mxu0 0.0
    %1782 = vmatprep.subr.mxu0 0.0
    %1783 = vmatpush1.msra.mxu0 0.0
    %1784 = vmatprep.subr.mxu0 0.0
    %1785 = vmatpush1.msra.mxu0 0.0
    %1786 = vmatprep.subr.mxu0 0.0
    %1787 = vmatpush1.msra.mxu0 0.0
    %1788 = vmatprep.subr.mxu0 0.0
    %1789 = vmatpush1.msra.mxu0 0.0
    %1790 = vmatprep.subr.mxu0 0.0
    %1791 = vmatpush1.msra.mxu0 0.0
    %1792 = vmatprep.subr.mxu0 0.0
    %1793 = vmatpush1.msra.mxu0 0.0
    %1794 = vmatprep.subr.mxu0 0.0
    %1795 = vmatpush1.msra.mxu0 0.0
    %1796 = vmatprep.subr.mxu0 0.0
    %1797 = vmatpush1.msra.mxu0 0.0
    %1798 = vmatprep.subr.mxu0 0.0
    %1799 = vmatpush1.msra.mxu0 0.0
    %1800 = vmatprep.subr.mxu0 0.0
    %1801 = vmatpush1.msra.mxu0 0.0
    %1802 = vmatprep.subr.mxu0 0.0
    %1803 = vmatpush1.msra.mxu0 0.0
    %1804 = vmatprep.subr.mxu0 0.0
    %1805 = vmatpush1.msra.mxu0 0.0
    %1806 = vmatprep.subr.mxu0 0.0
    %1807 = vmatpush1.msra.mxu0 0.0
    %1808 = vmatprep.subr.mxu0 0.0
    %1809 = vmatpush1.msra.mxu0 0.0
    %1810 = vmatprep.subr.mxu0 0.0
    %1811 = vmatpush1.msra.mxu0 0.0
    %1812 = vmatprep.subr.mxu0 0.0
    %1813 = vmatpush1.msra.mxu0 0.0
    %1814 = vmatprep.subr.mxu0 0.0
    %1815 = vmatpush1.msra.mxu0 0.0
    %1816 = vmatprep.subr.mxu0 0.0
    %1817 = vmatpush1.msra.mxu0 0.0
    %1818 = vmatprep.subr.mxu0 0.0
    %1819 = vmatpush1.msra.mxu0 0.0
    %1820 = vmatprep.subr.mxu0 0.0
    %1821 = vmatpush1.msra.mxu0 0.0
    %1822 = vmatprep.subr.mxu0 0.0
    %1823 = vmatpush1.msra.mxu0 0.0
    %1824 = vmatprep.subr.mxu0 0.0
    %1825 = vmatpush1.msra.mxu0 0.0
    %1826 = vmatprep.subr.mxu0 0.0
    %1827 = vmatpush1.msra.mxu0 0.0
    %1828 = vmatprep.subr.mxu0 0.0
    %1829 = vmatpush1.msra.mxu0 0.0
    %1830 = vmatprep.subr.mxu0 0.0
    %1831 = vmatpush1.msra.mxu0 0.0
    %1832 = vmatprep.subr.mxu0 0.0
    %1833 = vmatpush1.msra.mxu0 0.0
    %1834 = vmatprep.subr.mxu0 0.0
    %1835 = vmatpush1.msra.mxu0 0.0
    %1836 = vmatprep.subr.mxu0 0.0
    %1837 = vmatpush1.msra.mxu0 0.0
    %1838 = vmatprep.mubr.f32.mxu0 0.0
    %1839 = vmatmul.mubr.f32.gmra.mrb[0].mxu0 %v1769
    %v1840 = vpop.f32.mrb[0].mxu0
    %v1841 = vadd.f32 0.0, %v1840
    %v1842 = vpop.f32.mrb[0].mxu0
    %1843 = vmatprep.mubr.f32.mxu0 0.0
    %1844 = vmatmul.mubr.f32.gmra.mrb[0].mxu0 %v1772
    %v1845 = vpop.f32.mrb[0].mxu0
    %v1846 = vadd.f32 0.0, %v1845
    %v1847 = vpop.f32.mrb[0].mxu0
    %1848 = vdwg.mxu0
    %v1850 = vsel %vm406, %v1556, 0
    %v1853 = vsel %vm406, %v1561, 0
    %1855 = vmatprep.subr.mxu0 0.0
    %1856 = vmatpush1.msra.mxu0 %v1358
    %1857 = vmatprep.subr.mxu0 0.0
    %1858 = vmatpush1.msra.mxu0 %v1359
    %1859 = vmatprep.subr.mxu0 0.0
    %1860 = vmatpush1.msra.mxu0 0.0
    %1861 = vmatprep.subr.mxu0 0.0
    %1862 = vmatpush1.msra.mxu0 0.0
    %1863 = vmatprep.subr.mxu0 0.0
    %1864 = vmatpush1.msra.mxu0 0.0
    %1865 = vmatprep.subr.mxu0 0.0
    %1866 = vmatpush1.msra.mxu0 0.0
    %1867 = vmatprep.subr.mxu0 0.0
    %1868 = vmatpush1.msra.mxu0 0.0
    %1869 = vmatprep.subr.mxu0 0.0
    %1870 = vmatpush1.msra.mxu0 0.0
    %1871 = vmatprep.subr.mxu0 0.0
    %1872 = vmatpush1.msra.mxu0 0.0
    %1873 = vmatprep.subr.mxu0 0.0
    %1874 = vmatpush1.msra.mxu0 0.0
    %1875 = vmatprep.subr.mxu0 0.0
    %1876 = vmatpush1.msra.mxu0 0.0
    %1877 = vmatprep.subr.mxu0 0.0
    %1878 = vmatpush1.msra.mxu0 0.0
    %1879 = vmatprep.subr.mxu0 0.0
    %1880 = vmatpush1.msra.mxu0 0.0
    %1881 = vmatprep.subr.mxu0 0.0
    %1882 = vmatpush1.msra.mxu0 0.0
    %1883 = vmatprep.subr.mxu0 0.0
    %1884 = vmatpush1.msra.mxu0 0.0
    %1885 = vmatprep.subr.mxu0 0.0
    %1886 = vmatpush1.msra.mxu0 0.0
    %1887 = vmatprep.subr.mxu0 0.0
    %1888 = vmatpush1.msra.mxu0 0.0
    %1889 = vmatprep.subr.mxu0 0.0
    %1890 = vmatpush1.msra.mxu0 0.0
    %1891 = vmatprep.subr.mxu0 0.0
    %1892 = vmatpush1.msra.mxu0 0.0
    %1893 = vmatprep.subr.mxu0 0.0
    %1894 = vmatpush1.msra.mxu0 0.0
    %1895 = vmatprep.subr.mxu0 0.0
    %1896 = vmatpush1.msra.mxu0 0.0
    %1897 = vmatprep.subr.mxu0 0.0
    %1898 = vmatpush1.msra.mxu0 0.0
    %1899 = vmatprep.subr.mxu0 0.0
    %1900 = vmatpush1.msra.mxu0 0.0
    %1901 = vmatprep.subr.mxu0 0.0
    %1902 = vmatpush1.msra.mxu0 0.0
    %1903 = vmatprep.subr.mxu0 0.0
    %1904 = vmatpush1.msra.mxu0 0.0
    %1905 = vmatprep.subr.mxu0 0.0
    %1906 = vmatpush1.msra.mxu0 0.0
    %1907 = vmatprep.subr.mxu0 0.0
    %1908 = vmatpush1.msra.mxu0 0.0
    %1909 = vmatprep.subr.mxu0 0.0
    %1910 = vmatpush1.msra.mxu0 0.0
    %1911 = vmatprep.subr.mxu0 0.0
    %1912 = vmatpush1.msra.mxu0 0.0
    %1913 = vmatprep.subr.mxu0 0.0
    %1914 = vmatpush1.msra.mxu0 0.0
    %1915 = vmatprep.subr.mxu0 0.0
    %1916 = vmatpush1.msra.mxu0 0.0
    %1917 = vmatprep.subr.mxu0 0.0
    %1918 = vmatpush1.msra.mxu0 0.0
    %1919 = vmatprep.mubr.f32.mxu0 0.0
    %1920 = vmatmul.mubr.f32.gmra.mrb[0].mxu0 %v1850
    %v1921 = vpop.f32.mrb[0].mxu0
    %v1922 = vadd.f32 %v1841, %v1921
    %v1923 = vpop.f32.mrb[0].mxu0
    %1924 = vmatprep.mubr.f32.mxu0 0.0
    %1925 = vmatmul.mubr.f32.gmra.mrb[0].mxu0 %v1853
    %v1926 = vpop.f32.mrb[0].mxu0
    %v1927 = vadd.f32 %v1846, %v1926
    %v1928 = vpop.f32.mrb[0].mxu0
    %1929 = vdwg.mxu0
    %s1930 = scalar_lea.vmem %s10, 1
    %v1931 = vld [vmem:[%s1930] sm:$0x1]
    %v1933 = vlaneseq
    %v1934 = vshrl.u32 %v1933, 7
    %v1935 = vsub.s32 0, %v1934
    %v1936 = vrot.slane %v1931, %v1935
    %v1938 = vadd.f32 %v1922, %v1936
    %v1939 = vadd.f32 %v1927, %v1936
    %v1940 = vadd.f32 %v1261, %v1938
    %v1941 = vadd.f32 %v1262, %v1939
    %s1942 = scalar_lea.vmem %s11, 1
    %v1943 = vld [vmem:[%s1942] sm:$0x1]
    %s1944 = scalar_lea.vmem %s12, 1
    %v1945 = vld [vmem:[%s1944] sm:$0x1]
    %v1946 = vsel %vm314, %v1940, 0.0
    %1947 = vadd.xlane.f32.xlu0 %v1946
    %v1948 = vpop.xlane.xlu0 %1947
    %v1949 = vsel %vm314, %v1941, 0.0
    %1950 = vadd.xlane.f32.xlu0 %v1949
    %v1951 = vpop.xlane.xlu0 %1950
    %v1952 = vmul.f32 %v1948, %v988
    %v1953 = vmul.f32 %v1951, %v988
    %v1954 = vsub.f32 %v1940, %v1952
    %v1955 = vsub.f32 %v1941, %v1953
    %v1956 = vmul.f32 %v1954, %v1954
    %v1957 = vmul.f32 %v1955, %v1955
    %v1958 = vsel %vm314, %v1956, 0.0
    %1959 = vadd.xlane.f32.xlu0 %v1958
    %v1960 = vpop.xlane.xlu0 %1959
    %v1961 = vsel %vm314, %v1957, 0.0
    %1962 = vadd.xlane.f32.xlu0 %v1961
    %v1963 = vpop.xlane.xlu0 %1962
    %v1964 = vmul.f32 %v1960, %v988
    %v1965 = vmul.f32 %v1963, %v988
    %v1966 = vadd.f32 %v1964, 1e-05
    %v1967 = vadd.f32 %v1965, 1e-05
    %v1968 = vrsqrt.pop %v1966
    %v1969 = vrsqrt.pop %v1967
    %v1970 = vmul.f32 %v1954, %v1968
    %v1971 = vmul.f32 %v1955, %v1969
    %v1973 = vlaneseq
    %v1974 = vshrl.u32 %v1973, 7
    %v1975 = vsub.s32 0, %v1974
    %v1976 = vrot.slane %v1943, %v1975
    %v1978 = vmul.f32 %v1970, %v1976
    %v1979 = vmul.f32 %v1971, %v1976
    %v1981 = vlaneseq
    %v1982 = vshrl.u32 %v1981, 7
    %v1983 = vsub.s32 0, %v1982
    %v1984 = vrot.slane %v1945, %v1983
    %v1986 = vadd.f32 %v1978, %v1984
    %v1987 = vadd.f32 %v1979, %v1984
    %s1988 = scalar_lea.vmem %s13, 32
    %v1989 = vld [vmem:[%s1988] sm:$0xff]
    %v1990 = vld [vmem:[%s1988 + $0x8] sm:$0xff]
    %v1991 = vld [vmem:[%s1988 + $0x10] sm:$0xff]
    %v1992 = vld [vmem:[%s1988 + $0x18] sm:$0xff]
    %s1993 = scalar_lea.vmem %s14, 1
    %v1994 = vld [vmem:[%s1993] sm:$0x1]
    %v1996 = vlaneseq
    %v1997 = vshrl.u32 %v1996, 7
    %v1998 = vsub.s32 0, %v1997
    %v1999 = vrot.slane %v1994, %v1998
    %v2002 = vsel %vm314, %v1986, 0
    %v2005 = vsel %vm314, %v1987, 0
    %2007 = vmatprep.subr.mxu0 0.0
    %2008 = vmatpush1.msra.mxu0 %v1989
    %2009 = vmatprep.subr.mxu0 0.0
    %2010 = vmatpush1.msra.mxu0 %v1990
    %2011 = vmatprep.subr.mxu0 0.0
    %2012 = vmatpush1.msra.mxu0 %v1991
    %2013 = vmatprep.subr.mxu0 0.0
    %2014 = vmatpush1.msra.mxu0 %v1992
    %2015 = vmatprep.subr.mxu0 0.0
    %2016 = vmatpush1.msra.mxu0 0.0
    %2017 = vmatprep.subr.mxu0 0.0
    %2018 = vmatpush1.msra.mxu0 0.0
    %2019 = vmatprep.subr.mxu0 0.0
    %2020 = vmatpush1.msra.mxu0 0.0
    %2021 = vmatprep.subr.mxu0 0.0
    %2022 = vmatpush1.msra.mxu0 0.0
    %2023 = vmatprep.subr.mxu0 0.0
    %2024 = vmatpush1.msra.mxu0 0.0
    %2025 = vmatprep.subr.mxu0 0.0
    %2026 = vmatpush1.msra.mxu0 0.0
    %2027 = vmatprep.subr.mxu0 0.0
    %2028 = vmatpush1.msra.mxu0 0.0
    %2029 = vmatprep.subr.mxu0 0.0
    %2030 = vmatpush1.msra.mxu0 0.0
    %2031 = vmatprep.subr.mxu0 0.0
    %2032 = vmatpush1.msra.mxu0 0.0
    %2033 = vmatprep.subr.mxu0 0.0
    %2034 = vmatpush1.msra.mxu0 0.0
    %2035 = vmatprep.subr.mxu0 0.0
    %2036 = vmatpush1.msra.mxu0 0.0
    %2037 = vmatprep.subr.mxu0 0.0
    %2038 = vmatpush1.msra.mxu0 0.0
    %2039 = vmatprep.subr.mxu0 0.0
    %2040 = vmatpush1.msra.mxu0 0.0
    %2041 = vmatprep.subr.mxu0 0.0
    %2042 = vmatpush1.msra.mxu0 0.0
    %2043 = vmatprep.subr.mxu0 0.0
    %2044 = vmatpush1.msra.mxu0 0.0
    %2045 = vmatprep.subr.mxu0 0.0
    %2046 = vmatpush1.msra.mxu0 0.0
    %2047 = vmatprep.subr.mxu0 0.0
    %2048 = vmatpush1.msra.mxu0 0.0
    %2049 = vmatprep.subr.mxu0 0.0
    %2050 = vmatpush1.msra.mxu0 0.0
    %2051 = vmatprep.subr.mxu0 0.0
    %2052 = vmatpush1.msra.mxu0 0.0
    %2053 = vmatprep.subr.mxu0 0.0
    %2054 = vmatpush1.msra.mxu0 0.0
    %2055 = vmatprep.subr.mxu0 0.0
    %2056 = vmatpush1.msra.mxu0 0.0
    %2057 = vmatprep.subr.mxu0 0.0
    %2058 = vmatpush1.msra.mxu0 0.0
    %2059 = vmatprep.subr.mxu0 0.0
    %2060 = vmatpush1.msra.mxu0 0.0
    %2061 = vmatprep.subr.mxu0 0.0
    %2062 = vmatpush1.msra.mxu0 0.0
    %2063 = vmatprep.subr.mxu0 0.0
    %2064 = vmatpush1.msra.mxu0 0.0
    %2065 = vmatprep.subr.mxu0 0.0
    %2066 = vmatpush1.msra.mxu0 0.0
    %2067 = vmatprep.subr.mxu0 0.0
    %2068 = vmatpush1.msra.mxu0 0.0
    %2069 = vmatprep.subr.mxu0 0.0
    %2070 = vmatpush1.msra.mxu0 0.0
    %2071 = vmatprep.mubr.f32.mxu0 0.0
    %2072 = vmatmul.mubr.f32.gmra.mrb[0].mxu0 %v2002
    %v2073 = vpop.f32.mrb[0].mxu0
    %v2074 = vadd.f32 %v1999, %v2073
    %v2075 = vpop.f32.mrb[0].mxu0
    %2076 = vmatprep.mubr.f32.mxu0 0.0
    %2077 = vmatmul.mubr.f32.gmra.mrb[0].mxu0 %v2005
    %v2078 = vpop.f32.mrb[0].mxu0
    %v2079 = vadd.f32 %v1999, %v2078
    %v2080 = vpop.f32.mrb[0].mxu0
    %2081 = vdwg.mxu0
    %v2082 = vmax.f32 %v2074, 0.0
    %v2083 = vmax.f32 %v2079, 0.0
    %s2084 = scalar_lea.vmem %s15, 128
    %v2085 = vld [vmem:[%s2084] sm:$0xff]
    %v2086 = vld [vmem:[%s2084 + $0x8] sm:$0xff]
    %v2087 = vld [vmem:[%s2084 + $0x10] sm:$0xff]
    %v2088 = vld [vmem:[%s2084 + $0x18] sm:$0xff]
    %v2089 = vld [vmem:[%s2084 + $0x20] sm:$0xff]
    %v2090 = vld [vmem:[%s2084 + $0x28] sm:$0xff]
    %v2091 = vld [vmem:[%s2084 + $0x30] sm:$0xff]
    %v2092 = vld [vmem:[%s2084 + $0x38] sm:$0xff]
    %v2093 = vld [vmem:[%s2084 + $0x40] sm:$0xff]
    %v2094 = vld [vmem:[%s2084 + $0x48] sm:$0xff]
    %v2095 = vld [vmem:[%s2084 + $0x50] sm:$0xff]
    %v2096 = vld [vmem:[%s2084 + $0x58] sm:$0xff]
    %v2097 = vld [vmem:[%s2084 + $0x60] sm:$0xff]
    %v2098 = vld [vmem:[%s2084 + $0x68] sm:$0xff]
    %v2099 = vld [vmem:[%s2084 + $0x70] sm:$0xff]
    %v2100 = vld [vmem:[%s2084 + $0x78] sm:$0xff]
    %s2101 = scalar_lea.vmem %s16, 1
    %v2102 = vld [vmem:[%s2101] sm:$0x1]
    %v2104 = vlaneseq
    %v2105 = vshrl.u32 %v2104, 7
    %v2106 = vsub.s32 0, %v2105
    %v2107 = vrot.slane %v2102, %v2106
    %2109 = vmatprep.subr.mxu0 0.0
    %2110 = vmatpush1.msra.mxu0 %v2085
    %2111 = vmatprep.subr.mxu0 0.0
    %2112 = vmatpush1.msra.mxu0 %v2086
    %2113 = vmatprep.subr.mxu0 0.0
    %2114 = vmatpush1.msra.mxu0 %v2087
    %2115 = vmatprep.subr.mxu0 0.0
    %2116 = vmatpush1.msra.mxu0 %v2088
    %2117 = vmatprep.subr.mxu0 0.0
    %2118 = vmatpush1.msra.mxu0 %v2089
    %2119 = vmatprep.subr.mxu0 0.0
    %2120 = vmatpush1.msra.mxu0 %v2090
    %2121 = vmatprep.subr.mxu0 0.0
    %2122 = vmatpush1.msra.mxu0 %v2091
    %2123 = vmatprep.subr.mxu0 0.0
    %2124 = vmatpush1.msra.mxu0 %v2092
    %2125 = vmatprep.subr.mxu0 0.0
    %2126 = vmatpush1.msra.mxu0 %v2093
    %2127 = vmatprep.subr.mxu0 0.0
    %2128 = vmatpush1.msra.mxu0 %v2094
    %2129 = vmatprep.subr.mxu0 0.0
    %2130 = vmatpush1.msra.mxu0 %v2095
    %2131 = vmatprep.subr.mxu0 0.0
    %2132 = vmatpush1.msra.mxu0 %v2096
    %2133 = vmatprep.subr.mxu0 0.0
    %2134 = vmatpush1.msra.mxu0 %v2097
    %2135 = vmatprep.subr.mxu0 0.0
    %2136 = vmatpush1.msra.mxu0 %v2098
    %2137 = vmatprep.subr.mxu0 0.0
    %2138 = vmatpush1.msra.mxu0 %v2099
    %2139 = vmatprep.subr.mxu0 0.0
    %2140 = vmatpush1.msra.mxu0 %v2100
    %2141 = vmatprep.subr.mxu0 0.0
    %2142 = vmatpush1.msra.mxu0 0.0
    %2143 = vmatprep.subr.mxu0 0.0
    %2144 = vmatpush1.msra.mxu0 0.0
    %2145 = vmatprep.subr.mxu0 0.0
    %2146 = vmatpush1.msra.mxu0 0.0
    %2147 = vmatprep.subr.mxu0 0.0
    %2148 = vmatpush1.msra.mxu0 0.0
    %2149 = vmatprep.subr.mxu0 0.0
    %2150 = vmatpush1.msra.mxu0 0.0
    %2151 = vmatprep.subr.mxu0 0.0
    %2152 = vmatpush1.msra.mxu0 0.0
    %2153 = vmatprep.subr.mxu0 0.0
    %2154 = vmatpush1.msra.mxu0 0.0
    %2155 = vmatprep.subr.mxu0 0.0
    %2156 = vmatpush1.msra.mxu0 0.0
    %2157 = vmatprep.subr.mxu0 0.0
    %2158 = vmatpush1.msra.mxu0 0.0
    %2159 = vmatprep.subr.mxu0 0.0
    %2160 = vmatpush1.msra.mxu0 0.0
    %2161 = vmatprep.subr.mxu0 0.0
    %2162 = vmatpush1.msra.mxu0 0.0
    %2163 = vmatprep.subr.mxu0 0.0
    %2164 = vmatpush1.msra.mxu0 0.0
    %2165 = vmatprep.subr.mxu0 0.0
    %2166 = vmatpush1.msra.mxu0 0.0
    %2167 = vmatprep.subr.mxu0 0.0
    %2168 = vmatpush1.msra.mxu0 0.0
    %2169 = vmatprep.subr.mxu0 0.0
    %2170 = vmatpush1.msra.mxu0 0.0
    %2171 = vmatprep.subr.mxu0 0.0
    %2172 = vmatpush1.msra.mxu0 0.0
    %2173 = vmatprep.mubr.f32.mxu0 0.0
    %2174 = vmatmul.mubr.f32.gmra.mrb[0].mxu0 %v2082
    %v2175 = vpop.f32.mrb[0].mxu0
    %v2176 = vadd.f32 %v2107, %v2175
    %v2177 = vpop.f32.mrb[0].mxu0
    %2178 = vmatprep.mubr.f32.mxu0 0.0
    %2179 = vmatmul.mubr.f32.gmra.mrb[0].mxu0 %v2083
    %v2180 = vpop.f32.mrb[0].mxu0
    %v2181 = vadd.f32 %v2107, %v2180
    %v2182 = vpop.f32.mrb[0].mxu0
    %2183 = vdwg.mxu0
    %v2184 = vadd.f32 %v1986, %v2176
    %v2185 = vadd.f32 %v1987, %v2181
    %s2186 = scalar_lea.vmem %s17, 1
    %v2187 = vld [vmem:[%s2186] sm:$0x1]
    %s2188 = scalar_lea.vmem %s18, 1
    %v2189 = vld [vmem:[%s2188] sm:$0x1]
    %v2190 = vsel %vm314, %v2184, 0.0
    %2191 = vadd.xlane.f32.xlu0 %v2190
    %v2192 = vpop.xlane.xlu0 %2191
    %v2193 = vsel %vm314, %v2185, 0.0
    %2194 = vadd.xlane.f32.xlu0 %v2193
    %v2195 = vpop.xlane.xlu0 %2194
    %v2196 = vmul.f32 %v2192, %v988
    %v2197 = vmul.f32 %v2195, %v988
    %v2198 = vsub.f32 %v2184, %v2196
    %v2199 = vsub.f32 %v2185, %v2197
    %v2200 = vmul.f32 %v2198, %v2198
    %v2201 = vmul.f32 %v2199, %v2199
    %v2202 = vsel %vm314, %v2200, 0.0
    %2203 = vadd.xlane.f32.xlu0 %v2202
    %v2204 = vpop.xlane.xlu0 %2203
    %v2205 = vsel %vm314, %v2201, 0.0
    %2206 = vadd.xlane.f32.xlu0 %v2205
    %v2207 = vpop.xlane.xlu0 %2206
    %v2208 = vmul.f32 %v2204, %v988
    %v2209 = vmul.f32 %v2207, %v988
    %v2210 = vadd.f32 %v2208, 1e-05
    %v2211 = vadd.f32 %v2209, 1e-05
    %v2212 = vrsqrt.pop %v2210
    %v2213 = vrsqrt.pop %v2211
    %v2214 = vmul.f32 %v2198, %v2212
    %v2215 = vmul.f32 %v2199, %v2213
    %v2217 = vlaneseq
    %v2218 = vshrl.u32 %v2217, 7
    %v2219 = vsub.s32 0, %v2218
    %v2220 = vrot.slane %v2187, %v2219
    %v2222 = vmul.f32 %v2214, %v2220
    %v2223 = vmul.f32 %v2215, %v2220
    %v2225 = vlaneseq
    %v2226 = vshrl.u32 %v2225, 7
    %v2227 = vsub.s32 0, %v2226
    %v2228 = vrot.slane %v2189, %v2227
    %v2230 = vadd.f32 %v2222, %v2228
    %v2231 = vadd.f32 %v2223, %v2228
    %v2232 = vld [vmem:[%s19] sm:$0xff]
    %v2233 = vld [vmem:[%s19 + $0x8] sm:$0xff]
    %v2234 = vld [vmem:[%s19 + $0x10] sm:$0xff]
    %v2235 = vld [vmem:[%s19 + $0x18] sm:$0xff]
    %v2236 = vld [vmem:[%s20] sm:$0x1]
    %v2238 = vlaneseq
    %v2239 = vshrl.u32 %v2238, 7
    %v2240 = vsub.s32 0, %v2239
    %v2241 = vrot.slane %v2236, %v2240
    %v2244 = vsel %vm314, %v2230, 0
    %v2247 = vsel %vm314, %v2231, 0
    %2249 = vmatprep.subr.mxu0 0.0
    %2250 = vmatpush1.msra.mxu0 %v2232
    %2251 = vmatprep.subr.mxu0 0.0
    %2252 = vmatpush1.msra.mxu0 %v2233
    %2253 = vmatprep.subr.mxu0 0.0
    %2254 = vmatpush1.msra.mxu0 %v2234
    %2255 = vmatprep.subr.mxu0 0.0
    %2256 = vmatpush1.msra.mxu0 %v2235
    %2257 = vmatprep.subr.mxu0 0.0
    %2258 = vmatpush1.msra.mxu0 0.0
    %2259 = vmatprep.subr.mxu0 0.0
    %2260 = vmatpush1.msra.mxu0 0.0
    %2261 = vmatprep.subr.mxu0 0.0
    %2262 = vmatpush1.msra.mxu0 0.0
    %2263 = vmatprep.subr.mxu0 0.0
    %2264 = vmatpush1.msra.mxu0 0.0
    %2265 = vmatprep.subr.mxu0 0.0
    %2266 = vmatpush1.msra.mxu0 0.0
    %2267 = vmatprep.subr.mxu0 0.0
    %2268 = vmatpush1.msra.mxu0 0.0
    %2269 = vmatprep.subr.mxu0 0.0
    %2270 = vmatpush1.msra.mxu0 0.0
    %2271 = vmatprep.subr.mxu0 0.0
    %2272 = vmatpush1.msra.mxu0 0.0
    %2273 = vmatprep.subr.mxu0 0.0
    %2274 = vmatpush1.msra.mxu0 0.0
    %2275 = vmatprep.subr.mxu0 0.0
    %2276 = vmatpush1.msra.mxu0 0.0
    %2277 = vmatprep.subr.mxu0 0.0
    %2278 = vmatpush1.msra.mxu0 0.0
    %2279 = vmatprep.subr.mxu0 0.0
    %2280 = vmatpush1.msra.mxu0 0.0
    %2281 = vmatprep.subr.mxu0 0.0
    %2282 = vmatpush1.msra.mxu0 0.0
    %2283 = vmatprep.subr.mxu0 0.0
    %2284 = vmatpush1.msra.mxu0 0.0
    %2285 = vmatprep.subr.mxu0 0.0
    %2286 = vmatpush1.msra.mxu0 0.0
    %2287 = vmatprep.subr.mxu0 0.0
    %2288 = vmatpush1.msra.mxu0 0.0
    %2289 = vmatprep.subr.mxu0 0.0
    %2290 = vmatpush1.msra.mxu0 0.0
    %2291 = vmatprep.subr.mxu0 0.0
    %2292 = vmatpush1.msra.mxu0 0.0
    %2293 = vmatprep.subr.mxu0 0.0
    %2294 = vmatpush1.msra.mxu0 0.0
    %2295 = vmatprep.subr.mxu0 0.0
    %2296 = vmatpush1.msra.mxu0 0.0
    %2297 = vmatprep.subr.mxu0 0.0
    %2298 = vmatpush1.msra.mxu0 0.0
    %2299 = vmatprep.subr.mxu0 0.0
    %2300 = vmatpush1.msra.mxu0 0.0
    %2301 = vmatprep.subr.mxu0 0.0
    %2302 = vmatpush1.msra.mxu0 0.0
    %2303 = vmatprep.subr.mxu0 0.0
    %2304 = vmatpush1.msra.mxu0 0.0
    %2305 = vmatprep.subr.mxu0 0.0
    %2306 = vmatpush1.msra.mxu0 0.0
    %2307 = vmatprep.subr.mxu0 0.0
    %2308 = vmatpush1.msra.mxu0 0.0
    %2309 = vmatprep.subr.mxu0 0.0
    %2310 = vmatpush1.msra.mxu0 0.0
    %2311 = vmatprep.subr.mxu0 0.0
    %2312 = vmatpush1.msra.mxu0 0.0
    %2313 = vmatprep.mubr.f32.mxu0 0.0
    %2314 = vmatmul.mubr.f32.gmra.mrb[0].mxu0 %v2244
    %v2315 = vpop.f32.mrb[0].mxu0
    %v2316 = vadd.f32 %v2241, %v2315
    %v2317 = vpop.f32.mrb[0].mxu0
    %2318 = vmatprep.mubr.f32.mxu0 0.0
    %2319 = vmatmul.mubr.f32.gmra.mrb[0].mxu0 %v2247
    %v2320 = vpop.f32.mrb[0].mxu0
    %v2321 = vadd.f32 %v2241, %v2320
    %v2322 = vpop.f32.mrb[0].mxu0
    %2323 = vdwg.mxu0
    %2324 = vst [vmem:[%s25] sm:$0xff] %v2316
    %2325 = vst [vmem:[%s25 + $0x8] sm:$0xff] %v2321
    %v2326 = vld [vmem:[%s21] sm:$0xff]
    %v2327 = vld [vmem:[%s21 + $0x8] sm:$0xff]
    %v2328 = vmul.f32 %v2230, %v2326
    %v2329 = vmul.f32 %v2231, %v2327
    %v2330 = vsel %vm314, %v2328, 0.0
    %2331 = vadd.xlane.f32.xlu0 %v2330
    %v2332 = vpop.xlane.xlu0 %2331
    %v2333 = vsel %vm314, %v2329, 0.0
    %2334 = vadd.xlane.f32.xlu0 %v2333
    %v2335 = vpop.xlane.xlu0 %2334
    %v2336 = vld [vmem:[%s22] sm:$0xff]
    %v2337 = vld [vmem:[%s22 + $0x8] sm:$0xff]
    %v2338 = vmul.f32 %v2230, %v2336
    %v2339 = vmul.f32 %v2231, %v2337
    %v2340 = vsel %vm314, %v2338, 0.0
    %2341 = vadd.xlane.f32.xlu0 %v2340
    %v2342 = vpop.xlane.xlu0 %2341
    %v2343 = vsel %vm314, %v2339, 0.0
    %2344 = vadd.xlane.f32.xlu0 %v2343
    %v2345 = vpop.xlane.xlu0 %2344
    %vm2346 = vcmask 7168
    %v2347 = vsel %vm2346, %v2332, %v2342
    %v2348 = vsel %vm2346, %v2335, %v2345
    %vm2349 = vcmask 15360
    %v2350 = vsel %vm2349, %v2347, 0.0
    %v2351 = vsel %vm2349, %v2348, 0.0
    %v2352 = vld [vmem:[%s23] sm:$0x3]
    %v2353 = vld [vmem:[%s24] sm:$0x1]
    %v2355 = vlaneseq
    %v2356 = vshrl.u32 %v2355, 7
    %v2357 = vsub.s32 0, %v2356
    %v2358 = vrot.slane %v2353, %v2357
    %v2361 = vsel %vm406, %v2352, 0
    %2363 = vmatprep.subr.mxu0 0.0
    %2364 = vmatpush1.msra.mxu0 %v2350
    %2365 = vmatprep.subr.mxu0 0.0
    %2366 = vmatpush1.msra.mxu0 %v2351
    %2367 = vmatprep.subr.mxu0 0.0
    %2368 = vmatpush1.msra.mxu0 0.0
    %2369 = vmatprep.subr.mxu0 0.0
    %2370 = vmatpush1.msra.mxu0 0.0
    %2371 = vmatprep.subr.mxu0 0.0
    %2372 = vmatpush1.msra.mxu0 0.0
    %2373 = vmatprep.subr.mxu0 0.0
    %2374 = vmatpush1.msra.mxu0 0.0
    %2375 = vmatprep.subr.mxu0 0.0
    %2376 = vmatpush1.msra.mxu0 0.0
    %2377 = vmatprep.subr.mxu0 0.0
    %2378 = vmatpush1.msra.mxu0 0.0
    %2379 = vmatprep.subr.mxu0 0.0
    %2380 = vmatpush1.msra.mxu0 0.0
    %2381 = vmatprep.subr.mxu0 0.0
    %2382 = vmatpush1.msra.mxu0 0.0
    %2383 = vmatprep.subr.mxu0 0.0
    %2384 = vmatpush1.msra.mxu0 0.0
    %2385 = vmatprep.subr.mxu0 0.0
    %2386 = vmatpush1.msra.mxu0 0.0
    %2387 = vmatprep.subr.mxu0 0.0
    %2388 = vmatpush1.msra.mxu0 0.0
    %2389 = vmatprep.subr.mxu0 0.0
    %2390 = vmatpush1.msra.mxu0 0.0
    %2391 = vmatprep.subr.mxu0 0.0
    %2392 = vmatpush1.msra.mxu0 0.0
    %2393 = vmatprep.subr.mxu0 0.0
    %2394 = vmatpush1.msra.mxu0 0.0
    %2395 = vmatprep.subr.mxu0 0.0
    %2396 = vmatpush1.msra.mxu0 0.0
    %2397 = vmatprep.subr.mxu0 0.0
    %2398 = vmatpush1.msra.mxu0 0.0
    %2399 = vmatprep.subr.mxu0 0.0
    %2400 = vmatpush1.msra.mxu0 0.0
    %2401 = vmatprep.subr.mxu0 0.0
    %2402 = vmatpush1.msra.mxu0 0.0
    %2403 = vmatprep.subr.mxu0 0.0
    %2404 = vmatpush1.msra.mxu0 0.0
    %2405 = vmatprep.subr.mxu0 0.0
    %2406 = vmatpush1.msra.mxu0 0.0
    %2407 = vmatprep.subr.mxu0 0.0
    %2408 = vmatpush1.msra.mxu0 0.0
    %2409 = vmatprep.subr.mxu0 0.0
    %2410 = vmatpush1.msra.mxu0 0.0
    %2411 = vmatprep.subr.mxu0 0.0
    %2412 = vmatpush1.msra.mxu0 0.0
    %2413 = vmatprep.subr.mxu0 0.0
    %2414 = vmatpush1.msra.mxu0 0.0
    %2415 = vmatprep.subr.mxu0 0.0
    %2416 = vmatpush1.msra.mxu0 0.0
    %2417 = vmatprep.subr.mxu0 0.0
    %2418 = vmatpush1.msra.mxu0 0.0
    %2419 = vmatprep.subr.mxu0 0.0
    %2420 = vmatpush1.msra.mxu0 0.0
    %2421 = vmatprep.subr.mxu0 0.0
    %2422 = vmatpush1.msra.mxu0 0.0
    %2423 = vmatprep.subr.mxu0 0.0
    %2424 = vmatpush1.msra.mxu0 0.0
    %2425 = vmatprep.subr.mxu0 0.0
    %2426 = vmatpush1.msra.mxu0 0.0
    %2427 = vmatprep.mubr.f32.mxu0 0.0
    %2428 = vmatmul.mubr.f32.gmra.mrb[0].mxu0 %v2361
    %v2429 = vpop.f32.mrb[0].mxu0
    %v2430 = vadd.f32 %v2358, %v2429
    %v2431 = vpop.f32.mrb[0].mxu0
    %2432 = vdwg.mxu0
    %2433 = vst [vmem:[#allocation2] sm:$0x3] %v2430
    // Predicated region
    $region102: #{bert_forward.1} parent=1 // pred_check
      _
    $region103: #{bert_forward.1} parent=1 // pred_check_branch
      %2435 = sbr.rel (0) target = $region105
    $region104: #{bert_forward.1} parent=1 // pred_region
      _
    $region105: #{bert_forward.1} parent=1 // pred_fallthru
      _
    // Predicated region
    $region106: #{bert_forward.1} parent=1 // pred_check
      _
    $region107: #{bert_forward.1} parent=1 // pred_check_branch
      %2437 = sbr.rel (0) target = $region109
    $region108: #{bert_forward.1} parent=1 // pred_region
      %s2439 = ssub.s32 32, 32
      %2440 = vsyncadd [#allocation3], %s2439
      %s2442 = sshll.u32 [#allocation2], 4
      %s2443 = int_to_ptr.vmem [resolvable:$true] %s2442
      %2445 = dma.vmem_to_hbm [thread:$0]  %s2443, 32, %s26, [#allocation3]
    $region109: #{bert_forward.1} parent=1 // pred_fallthru
      _
    // Predicated region
    $region110: #{bert_forward.1} parent=1 // pred_check
      _
    $region111: #{bert_forward.1} parent=1 // pred_check_branch
      %2447 = sbr.rel (0) target = $region113
    $region112: #{bert_forward.1} parent=1 // pred_region
      _
    $region113: #{bert_forward.1} parent=1 // pred_fallthru
      _
    // Predicated region
    $region114: #{bert_forward.1} parent=1 // pred_check
      _
    $region115: #{bert_forward.1} parent=1 // pred_check_branch
      %2449 = sbr.rel (0) target = $region117
    $region116: #{bert_forward.1} parent=1 // pred_region
      %2450 = dma.done [#allocation3], 32
    $region117: #{bert_forward.1} parent=1 // pred_fallthru
      _
    %2451 = vsyncpa [#allocation3], 1

</llo_original>
